<compile_context>
chip_gen: v7x
topology: tpu7x:2x2x1
jax: 0.10.0
libtpu: 0.0.40
codegen_flags: <defaults>
</compile_context>

<pallas_src>
import functools

import jax
import jax.numpy as jnp
import numpy as np
from jax import lax
from jax.experimental import pallas as pl
from jax.experimental.pallas import tpu as pltpu

CHUNK = 128          # lanes per inner chunk (one vreg width)
PAIR = 2 * CHUNK     # two chunks interleaved per fori_loop iteration
DEFAULT_TILE = 8192  # lanes per grid step (multiple of PAIR)


def _round_up(a, m):
    return ((a + m - 1) // m) * m


def _inv_cov_kernel(pos_ref, out_ref, *, num_neighbors, num_dimensions,
                    n_pairs, sigma, phi, tau):
    """One grid step: invert the NxN covariance for `2*n_pairs` x 128 lanes.

    pos_ref: (D*N, tile)  rows ordered d*N + n  (coordinate-major)
    out_ref: (N*N, tile)  rows ordered i*N + j  (row-major flattened inverse)
    """
    N = num_neighbors
    D = num_dimensions
    sigma2 = float(sigma) * float(sigma)
    tau2 = float(tau) * float(tau)
    neg_inv_phi = -1.0 / float(phi)

    # Built once per grid step (outside the fori_loop body; no LICM inside).
    col_idx = lax.broadcasted_iota(jnp.int32, (N, CHUNK), 0)  # column index
    mask0 = col_idx == 0

    def recip(p):
        # EUP approx reciprocal + one Newton step: off the VALU critical path,
        # ~f32 accuracy so the error does not compound over the N pivots.
        ip = pl.reciprocal(p, approx=True)
        return ip * (2.0 - p * ip)

    def process(start):
        x = pos_ref[:, pl.ds(start, CHUNK)].astype(jnp.float32)   # (D*N, 128)

        # --- pairwise squared distances, accumulated per coordinate ---
        d2 = None
        for d in range(D):                                         # D tiny/static
            xd = x[d * N:(d + 1) * N, :]                           # (N, 128)
            diff = xd[:, None, :] - xd[None, :, :]                 # (N, N, 128)
            sq = diff * diff
            d2 = sq if d2 is None else d2 + sq

        # --- exponential covariance (exactly the module's formula) ---
        cov = sigma2 * jnp.exp(jnp.sqrt(d2) * neg_inv_phi)         # (N, N, 128)

        # Rows of the covariance matrix + tau^2 nugget on the diagonal.
        M = [jnp.where(col_idx == i, cov[i] + tau2, cov[i]) for i in range(N)]
        Inv = [None] * N

        # --- batched Gauss-Jordan inverse, one vreg per matrix row ---
        # k == 0: Inv is still the identity, so its update collapses.
        ip0 = recip(M[0][0:1, :])                                  # (1, 128)
        row0 = M[0] * ip0
        M[0] = row0
        Inv[0] = jnp.where(mask0, ip0, 0.0)
        for i in range(1, N):
            f = M[i][0:1, :]                                       # (1, 128)
            M[i] = M[i] - f * row0
            Inv[i] = jnp.where(col_idx == i, 1.0,
                               jnp.where(mask0, -(f * ip0), 0.0))

        for k in range(1, N):                                      # N small -> unroll
            last = k == N - 1
            ipk = recip(M[k][k:k + 1, :])                          # (1, 128)
            rowk_I = Inv[k] * ipk
            Inv[k] = rowk_I
            if not last:
                rowk_M = M[k] * ipk
                M[k] = rowk_M
            for i in range(N):
                if i == k:
                    continue
                f = M[i][k:k + 1, :]                               # (1, 128)
                Inv[i] = Inv[i] - f * rowk_I
                if not last:              # M is never read after the last step
                    M[i] = M[i] - f * rowk_M

        out_ref[:, pl.ds(start, CHUNK)] = (
            jnp.concatenate(Inv, axis=0).astype(out_ref.dtype))    # (N*N, 128)

    def body(c, carry):
        base = pl.multiple_of(c * PAIR, PAIR)
        # Two independent chunks in one basic block -> the LLO scheduler can
        # interleave their serial pivot chains (ILP).
        process(base)
        process(pl.multiple_of(base + CHUNK, CHUNK))
        return carry

    lax.fori_loop(0, n_pairs, body, 0)


def inverse_cov_matrix_from_positions(pos, *, num_neighbors, num_dimensions,
                                      sigma, phi, tau, batch_tile=DEFAULT_TILE):
    """Equivalent of InverseCovMatrixFromPositions.forward.

    pos: (B, num_neighbors * num_dimensions) -> (B, num_neighbors * num_neighbors)
    """
    B = pos.shape[0]
    N, D = num_neighbors, num_dimensions

    # (B, N*D) -> (D, N, B) -> (D*N, B): coordinate-major rows so the kernel
    # takes contiguous static sublane slices per coordinate.
    x = pos.reshape(B, N, D).astype(jnp.float32)
    x_t = jnp.transpose(x, (2, 1, 0)).reshape(D * N, B)

    # Lane padding / tiling: tile is a multiple of PAIR (two interleaved
    # chunks).  Keep the grid at >= 2 "parallel" steps when the batch allows
    # it, so both TensorCores get work on v7x.
    B_pair = _round_up(B, PAIR)
    tile = max(PAIR, (int(batch_tile) // PAIR) * PAIR)
    if B_pair >= 2 * PAIR:
        half = _round_up((B_pair + 1) // 2, PAIR)   # ~half the batch, aligned
        tile = min(tile, half)
    else:
        tile = B_pair
    Bpad = _round_up(B_pair, tile)
    if Bpad != B:
        x_t = jnp.pad(x_t, ((0, 0), (0, Bpad - B)))

    kernel = functools.partial(
        _inv_cov_kernel,
        num_neighbors=N, num_dimensions=D, n_pairs=tile // PAIR,
        sigma=float(sigma), phi=float(phi), tau=float(tau))

    out = pl.pallas_call(
        kernel,
        out_shape=jax.ShapeDtypeStruct((N * N, Bpad), jnp.float32),
        grid_spec=pltpu.PrefetchScalarGridSpec(
            num_scalar_prefetch=0,
            grid=(Bpad // tile,),
            in_specs=[pl.BlockSpec((D * N, tile), lambda b: (0, b))],
            out_specs=pl.BlockSpec((N * N, tile), lambda b: (0, b)),
        ),
        compiler_params=pltpu.CompilerParams(
            dimension_semantics=("parallel",)),
    )(x_t)

    # Single external relayout back to the PyTorch layout (B, N*N).
    return out[:, :B].T


def _reference(pos, N, D, sigma, phi, tau):
    """Pure-JAX reference mirroring the PyTorch module."""
    B = pos.shape[0]
    x = pos.reshape(B, N, D)
    diff = x[:, :, None, :] - x[:, None, :, :]
    dist = jnp.sqrt(jnp.sum(diff * diff, axis=-1))
    cov = sigma ** 2 * jnp.exp(-dist / phi) + tau ** 2 * jnp.eye(N)
    return jnp.linalg.inv(cov).reshape(B, -1)


if __name__ == "__main__":
    # deterministic module "parameters" / hyperparameters
    num_neighbors = 8
    num_dimensions = 2
    sigma, phi, tau = 1.5, 2.0, 0.5

    batch = 16
    key = jax.random.PRNGKey(0)
    pos = jax.random.normal(key, (batch, num_neighbors * num_dimensions),
                            dtype=jnp.float32) * 2.0

    out = inverse_cov_matrix_from_positions(
        pos, num_neighbors=num_neighbors, num_dimensions=num_dimensions,
        sigma=sigma, phi=phi, tau=tau)
    out = jax.block_until_ready(out)

    ref = _reference(pos, num_neighbors, num_dimensions, sigma, phi, tau)
    assert out.shape == (batch, num_neighbors * num_neighbors)
    np.testing.assert_allclose(np.asarray(out), np.asarray(ref),
                               rtol=2e-3, atol=2e-3)

    print("KERNEL_OK")
</pallas_src>

<mosaic_0001>
module attributes {stable_mosaic.version = 11 : i64} {
  func.func @_inv_cov_kernel(%arg0: i32, %arg1: memref<16x256xf32, #tpu.memory_space<vmem>>, %arg2: memref<64x256xf32, #tpu.memory_space<vmem>>) attributes {dimension_semantics = [#tpu.dimension_semantics<parallel>], iteration_bounds = array<i64: 1>, scalar_prefetch = 0 : i64, scratch_operands = 0 : i64, tpu.core_type = #tpu.core_type<tc>, window_params = [{transform_indices = @transform_0, window_bounds = array<i64: 16, 256>}, {transform_indices = @transform_1, window_bounds = array<i64: 64, 256>}]} {
    %0 = tpu.iota {dimensions = array<i32: 0>} : vector<8x128xi32>
    %c0_i32 = arith.constant 0 : i32
    %1 = vector.broadcast %c0_i32 : i32 to vector<8x128xi32>
    %2 = arith.cmpi eq, %0, %1 : vector<8x128xi32>
    %c0_i32_0 = arith.constant 0 : i32
    %c256_i32 = arith.constant 256 : i32
    %3 = arith.muli %c0_i32_0, %c256_i32 : i32
    %4 = tpu.assume_multiple %3, 256 : i32
    %c0 = arith.constant 0 : index
    %5 = arith.index_cast %4 : i32 to index
    %6 = vector.load %arg1[%c0, %5] : memref<16x256xf32, #tpu.memory_space<vmem>>, vector<16x128xf32>
    %7 = vector.extract_strided_slice %6 {offsets = [0, 0], sizes = [8, 128], strides = [1, 1]} : vector<16x128xf32> to vector<8x128xf32>
    %8 = vector.shape_cast %7 : vector<8x128xf32> to vector<8x1x128xf32>
    %9 = vector.shape_cast %7 : vector<8x128xf32> to vector<1x8x128xf32>
    %10 = vector.broadcast %8 : vector<8x1x128xf32> to vector<8x8x128xf32>
    %11 = vector.broadcast %9 : vector<1x8x128xf32> to vector<8x8x128xf32>
    %12 = arith.subf %10, %11 : vector<8x8x128xf32>
    %13 = arith.mulf %12, %12 : vector<8x8x128xf32>
    %14 = vector.extract_strided_slice %6 {offsets = [8, 0], sizes = [8, 128], strides = [1, 1]} : vector<16x128xf32> to vector<8x128xf32>
    %15 = vector.shape_cast %14 : vector<8x128xf32> to vector<8x1x128xf32>
    %16 = vector.shape_cast %14 : vector<8x128xf32> to vector<1x8x128xf32>
    %17 = vector.broadcast %15 : vector<8x1x128xf32> to vector<8x8x128xf32>
    %18 = vector.broadcast %16 : vector<1x8x128xf32> to vector<8x8x128xf32>
    %19 = arith.subf %17, %18 : vector<8x8x128xf32>
    %20 = arith.mulf %19, %19 : vector<8x8x128xf32>
    %21 = arith.addf %13, %20 : vector<8x8x128xf32>
    %22 = math.sqrt %21 : vector<8x8x128xf32>
    %cst = arith.constant -5.000000e-01 : f32
    %23 = vector.broadcast %cst : f32 to vector<8x8x128xf32>
    %24 = arith.mulf %22, %23 : vector<8x8x128xf32>
    %25 = math.exp %24 : vector<8x8x128xf32>
    %cst_1 = arith.constant 2.250000e+00 : f32
    %26 = vector.broadcast %cst_1 : f32 to vector<8x8x128xf32>
    %27 = arith.mulf %26, %25 : vector<8x8x128xf32>
    %c0_i32_2 = arith.constant 0 : i32
    %28 = vector.broadcast %c0_i32_2 : i32 to vector<8x128xi32>
    %29 = arith.cmpi eq, %0, %28 : vector<8x128xi32>
    %30 = vector.extract_strided_slice %27 {offsets = [0, 0, 0], sizes = [1, 8, 128], strides = [1, 1, 1]} : vector<8x8x128xf32> to vector<1x8x128xf32>
    %31 = vector.shape_cast %30 : vector<1x8x128xf32> to vector<8x128xf32>
    %cst_3 = arith.constant 2.500000e-01 : f32
    %32 = vector.broadcast %cst_3 : f32 to vector<8x128xf32>
    %33 = arith.addf %31, %32 : vector<8x128xf32>
    %34 = vector.extract_strided_slice %27 {offsets = [0, 0, 0], sizes = [1, 8, 128], strides = [1, 1, 1]} : vector<8x8x128xf32> to vector<1x8x128xf32>
    %35 = vector.shape_cast %34 : vector<1x8x128xf32> to vector<8x128xf32>
    %36 = arith.select %29, %33, %35 : vector<8x128xi1>, vector<8x128xf32>
    %c1_i32 = arith.constant 1 : i32
    %37 = vector.broadcast %c1_i32 : i32 to vector<8x128xi32>
    %38 = arith.cmpi eq, %0, %37 : vector<8x128xi32>
    %39 = vector.extract_strided_slice %27 {offsets = [1, 0, 0], sizes = [1, 8, 128], strides = [1, 1, 1]} : vector<8x8x128xf32> to vector<1x8x128xf32>
    %40 = vector.shape_cast %39 : vector<1x8x128xf32> to vector<8x128xf32>
    %cst_4 = arith.constant 2.500000e-01 : f32
    %41 = vector.broadcast %cst_4 : f32 to vector<8x128xf32>
    %42 = arith.addf %40, %41 : vector<8x128xf32>
    %43 = vector.extract_strided_slice %27 {offsets = [1, 0, 0], sizes = [1, 8, 128], strides = [1, 1, 1]} : vector<8x8x128xf32> to vector<1x8x128xf32>
    %44 = vector.shape_cast %43 : vector<1x8x128xf32> to vector<8x128xf32>
    %45 = arith.select %38, %42, %44 : vector<8x128xi1>, vector<8x128xf32>
    %c2_i32 = arith.constant 2 : i32
    %46 = vector.broadcast %c2_i32 : i32 to vector<8x128xi32>
    %47 = arith.cmpi eq, %0, %46 : vector<8x128xi32>
    %48 = vector.extract_strided_slice %27 {offsets = [2, 0, 0], sizes = [1, 8, 128], strides = [1, 1, 1]} : vector<8x8x128xf32> to vector<1x8x128xf32>
    %49 = vector.shape_cast %48 : vector<1x8x128xf32> to vector<8x128xf32>
    %cst_5 = arith.constant 2.500000e-01 : f32
    %50 = vector.broadcast %cst_5 : f32 to vector<8x128xf32>
    %51 = arith.addf %49, %50 : vector<8x128xf32>
    %52 = vector.extract_strided_slice %27 {offsets = [2, 0, 0], sizes = [1, 8, 128], strides = [1, 1, 1]} : vector<8x8x128xf32> to vector<1x8x128xf32>
    %53 = vector.shape_cast %52 : vector<1x8x128xf32> to vector<8x128xf32>
    %54 = arith.select %47, %51, %53 : vector<8x128xi1>, vector<8x128xf32>
    %c3_i32 = arith.constant 3 : i32
    %55 = vector.broadcast %c3_i32 : i32 to vector<8x128xi32>
    %56 = arith.cmpi eq, %0, %55 : vector<8x128xi32>
    %57 = vector.extract_strided_slice %27 {offsets = [3, 0, 0], sizes = [1, 8, 128], strides = [1, 1, 1]} : vector<8x8x128xf32> to vector<1x8x128xf32>
    %58 = vector.shape_cast %57 : vector<1x8x128xf32> to vector<8x128xf32>
    %cst_6 = arith.constant 2.500000e-01 : f32
    %59 = vector.broadcast %cst_6 : f32 to vector<8x128xf32>
    %60 = arith.addf %58, %59 : vector<8x128xf32>
    %61 = vector.extract_strided_slice %27 {offsets = [3, 0, 0], sizes = [1, 8, 128], strides = [1, 1, 1]} : vector<8x8x128xf32> to vector<1x8x128xf32>
    %62 = vector.shape_cast %61 : vector<1x8x128xf32> to vector<8x128xf32>
    %63 = arith.select %56, %60, %62 : vector<8x128xi1>, vector<8x128xf32>
    %c4_i32 = arith.constant 4 : i32
    %64 = vector.broadcast %c4_i32 : i32 to vector<8x128xi32>
    %65 = arith.cmpi eq, %0, %64 : vector<8x128xi32>
    %66 = vector.extract_strided_slice %27 {offsets = [4, 0, 0], sizes = [1, 8, 128], strides = [1, 1, 1]} : vector<8x8x128xf32> to vector<1x8x128xf32>
    %67 = vector.shape_cast %66 : vector<1x8x128xf32> to vector<8x128xf32>
    %cst_7 = arith.constant 2.500000e-01 : f32
    %68 = vector.broadcast %cst_7 : f32 to vector<8x128xf32>
    %69 = arith.addf %67, %68 : vector<8x128xf32>
    %70 = vector.extract_strided_slice %27 {offsets = [4, 0, 0], sizes = [1, 8, 128], strides = [1, 1, 1]} : vector<8x8x128xf32> to vector<1x8x128xf32>
    %71 = vector.shape_cast %70 : vector<1x8x128xf32> to vector<8x128xf32>
    %72 = arith.select %65, %69, %71 : vector<8x128xi1>, vector<8x128xf32>
    %c5_i32 = arith.constant 5 : i32
    %73 = vector.broadcast %c5_i32 : i32 to vector<8x128xi32>
    %74 = arith.cmpi eq, %0, %73 : vector<8x128xi32>
    %75 = vector.extract_strided_slice %27 {offsets = [5, 0, 0], sizes = [1, 8, 128], strides = [1, 1, 1]} : vector<8x8x128xf32> to vector<1x8x128xf32>
    %76 = vector.shape_cast %75 : vector<1x8x128xf32> to vector<8x128xf32>
    %cst_8 = arith.constant 2.500000e-01 : f32
    %77 = vector.broadcast %cst_8 : f32 to vector<8x128xf32>
    %78 = arith.addf %76, %77 : vector<8x128xf32>
    %79 = vector.extract_strided_slice %27 {offsets = [5, 0, 0], sizes = [1, 8, 128], strides = [1, 1, 1]} : vector<8x8x128xf32> to vector<1x8x128xf32>
    %80 = vector.shape_cast %79 : vector<1x8x128xf32> to vector<8x128xf32>
    %81 = arith.select %74, %78, %80 : vector<8x128xi1>, vector<8x128xf32>
    %c6_i32 = arith.constant 6 : i32
    %82 = vector.broadcast %c6_i32 : i32 to vector<8x128xi32>
    %83 = arith.cmpi eq, %0, %82 : vector<8x128xi32>
    %84 = vector.extract_strided_slice %27 {offsets = [6, 0, 0], sizes = [1, 8, 128], strides = [1, 1, 1]} : vector<8x8x128xf32> to vector<1x8x128xf32>
    %85 = vector.shape_cast %84 : vector<1x8x128xf32> to vector<8x128xf32>
    %cst_9 = arith.constant 2.500000e-01 : f32
    %86 = vector.broadcast %cst_9 : f32 to vector<8x128xf32>
    %87 = arith.addf %85, %86 : vector<8x128xf32>
    %88 = vector.extract_strided_slice %27 {offsets = [6, 0, 0], sizes = [1, 8, 128], strides = [1, 1, 1]} : vector<8x8x128xf32> to vector<1x8x128xf32>
    %89 = vector.shape_cast %88 : vector<1x8x128xf32> to vector<8x128xf32>
    %90 = arith.select %83, %87, %89 : vector<8x128xi1>, vector<8x128xf32>
    %c7_i32 = arith.constant 7 : i32
    %91 = vector.broadcast %c7_i32 : i32 to vector<8x128xi32>
    %92 = arith.cmpi eq, %0, %91 : vector<8x128xi32>
    %93 = vector.extract_strided_slice %27 {offsets = [7, 0, 0], sizes = [1, 8, 128], strides = [1, 1, 1]} : vector<8x8x128xf32> to vector<1x8x128xf32>
    %94 = vector.shape_cast %93 : vector<1x8x128xf32> to vector<8x128xf32>
    %cst_10 = arith.constant 2.500000e-01 : f32
    %95 = vector.broadcast %cst_10 : f32 to vector<8x128xf32>
    %96 = arith.addf %94, %95 : vector<8x128xf32>
    %97 = vector.extract_strided_slice %27 {offsets = [7, 0, 0], sizes = [1, 8, 128], strides = [1, 1, 1]} : vector<8x8x128xf32> to vector<1x8x128xf32>
    %98 = vector.shape_cast %97 : vector<1x8x128xf32> to vector<8x128xf32>
    %99 = arith.select %92, %96, %98 : vector<8x128xi1>, vector<8x128xf32>
    %100 = vector.extract_strided_slice %36 {offsets = [0, 0], sizes = [1, 128], strides = [1, 1]} : vector<8x128xf32> to vector<1x128xf32>
    %101 = tpu.reciprocal %100 {approx = true} : vector<1x128xf32> -> vector<1x128xf32>
    %102 = arith.mulf %100, %101 : vector<1x128xf32>
    %cst_11 = arith.constant 2.000000e+00 : f32
    %103 = vector.broadcast %cst_11 : f32 to vector<1x128xf32>
    %104 = arith.subf %103, %102 : vector<1x128xf32>
    %105 = arith.mulf %101, %104 : vector<1x128xf32>
    %106 = vector.broadcast %105 : vector<1x128xf32> to vector<8x128xf32>
    %107 = arith.mulf %36, %106 : vector<8x128xf32>
    %cst_12 = arith.constant 0.000000e+00 : f32
    %108 = vector.shape_cast %105 : vector<1x128xf32> to vector<1x128xf32>
    %109 = vector.broadcast %108 : vector<1x128xf32> to vector<8x128xf32>
    %110 = vector.broadcast %cst_12 : f32 to vector<8x128xf32>
    %111 = arith.select %2, %109, %110 : vector<8x128xi1>, vector<8x128xf32>
    %112 = vector.extract_strided_slice %45 {offsets = [0, 0], sizes = [1, 128], strides = [1, 1]} : vector<8x128xf32> to vector<1x128xf32>
    %113 = vector.broadcast %112 : vector<1x128xf32> to vector<8x128xf32>
    %114 = arith.mulf %113, %107 : vector<8x128xf32>
    %115 = arith.subf %45, %114 : vector<8x128xf32>
    %c1_i32_13 = arith.constant 1 : i32
    %116 = vector.broadcast %c1_i32_13 : i32 to vector<8x128xi32>
    %117 = arith.cmpi eq, %0, %116 : vector<8x128xi32>
    %118 = arith.mulf %112, %105 : vector<1x128xf32>
    %cst_14 = arith.constant 0.000000e+00 : f32
    %119 = vector.broadcast %cst_14 : f32 to vector<1x128xf32>
    %120 = arith.subf %119, %118 : vector<1x128xf32>
    %cst_15 = arith.constant 0.000000e+00 : f32
    %121 = vector.shape_cast %120 : vector<1x128xf32> to vector<1x128xf32>
    %122 = vector.broadcast %121 : vector<1x128xf32> to vector<8x128xf32>
    %123 = vector.broadcast %cst_15 : f32 to vector<8x128xf32>
    %124 = arith.select %2, %122, %123 : vector<8x128xi1>, vector<8x128xf32>
    %cst_16 = arith.constant 1.000000e+00 : f32
    %125 = vector.broadcast %cst_16 : f32 to vector<8x128xf32>
    %126 = arith.select %117, %125, %124 : vector<8x128xi1>, vector<8x128xf32>
    %127 = vector.extract_strided_slice %54 {offsets = [0, 0], sizes = [1, 128], strides = [1, 1]} : vector<8x128xf32> to vector<1x128xf32>
    %128 = vector.broadcast %127 : vector<1x128xf32> to vector<8x128xf32>
    %129 = arith.mulf %128, %107 : vector<8x128xf32>
    %130 = arith.subf %54, %129 : vector<8x128xf32>
    %c2_i32_17 = arith.constant 2 : i32
    %131 = vector.broadcast %c2_i32_17 : i32 to vector<8x128xi32>
    %132 = arith.cmpi eq, %0, %131 : vector<8x128xi32>
    %133 = arith.mulf %127, %105 : vector<1x128xf32>
    %cst_18 = arith.constant 0.000000e+00 : f32
    %134 = vector.broadcast %cst_18 : f32 to vector<1x128xf32>
    %135 = arith.subf %134, %133 : vector<1x128xf32>
    %cst_19 = arith.constant 0.000000e+00 : f32
    %136 = vector.shape_cast %135 : vector<1x128xf32> to vector<1x128xf32>
    %137 = vector.broadcast %136 : vector<1x128xf32> to vector<8x128xf32>
    %138 = vector.broadcast %cst_19 : f32 to vector<8x128xf32>
    %139 = arith.select %2, %137, %138 : vector<8x128xi1>, vector<8x128xf32>
    %cst_20 = arith.constant 1.000000e+00 : f32
    %140 = vector.broadcast %cst_20 : f32 to vector<8x128xf32>
    %141 = arith.select %132, %140, %139 : vector<8x128xi1>, vector<8x128xf32>
    %142 = vector.extract_strided_slice %63 {offsets = [0, 0], sizes = [1, 128], strides = [1, 1]} : vector<8x128xf32> to vector<1x128xf32>
    %143 = vector.broadcast %142 : vector<1x128xf32> to vector<8x128xf32>
    %144 = arith.mulf %143, %107 : vector<8x128xf32>
    %145 = arith.subf %63, %144 : vector<8x128xf32>
    %c3_i32_21 = arith.constant 3 : i32
    %146 = vector.broadcast %c3_i32_21 : i32 to vector<8x128xi32>
    %147 = arith.cmpi eq, %0, %146 : vector<8x128xi32>
    %148 = arith.mulf %142, %105 : vector<1x128xf32>
    %cst_22 = arith.constant 0.000000e+00 : f32
    %149 = vector.broadcast %cst_22 : f32 to vector<1x128xf32>
    %150 = arith.subf %149, %148 : vector<1x128xf32>
    %cst_23 = arith.constant 0.000000e+00 : f32
    %151 = vector.shape_cast %150 : vector<1x128xf32> to vector<1x128xf32>
    %152 = vector.broadcast %151 : vector<1x128xf32> to vector<8x128xf32>
    %153 = vector.broadcast %cst_23 : f32 to vector<8x128xf32>
    %154 = arith.select %2, %152, %153 : vector<8x128xi1>, vector<8x128xf32>
    %cst_24 = arith.constant 1.000000e+00 : f32
    %155 = vector.broadcast %cst_24 : f32 to vector<8x128xf32>
    %156 = arith.select %147, %155, %154 : vector<8x128xi1>, vector<8x128xf32>
    %157 = vector.extract_strided_slice %72 {offsets = [0, 0], sizes = [1, 128], strides = [1, 1]} : vector<8x128xf32> to vector<1x128xf32>
    %158 = vector.broadcast %157 : vector<1x128xf32> to vector<8x128xf32>
    %159 = arith.mulf %158, %107 : vector<8x128xf32>
    %160 = arith.subf %72, %159 : vector<8x128xf32>
    %c4_i32_25 = arith.constant 4 : i32
    %161 = vector.broadcast %c4_i32_25 : i32 to vector<8x128xi32>
    %162 = arith.cmpi eq, %0, %161 : vector<8x128xi32>
    %163 = arith.mulf %157, %105 : vector<1x128xf32>
    %cst_26 = arith.constant 0.000000e+00 : f32
    %164 = vector.broadcast %cst_26 : f32 to vector<1x128xf32>
    %165 = arith.subf %164, %163 : vector<1x128xf32>
    %cst_27 = arith.constant 0.000000e+00 : f32
    %166 = vector.shape_cast %165 : vector<1x128xf32> to vector<1x128xf32>
    %167 = vector.broadcast %166 : vector<1x128xf32> to vector<8x128xf32>
    %168 = vector.broadcast %cst_27 : f32 to vector<8x128xf32>
    %169 = arith.select %2, %167, %168 : vector<8x128xi1>, vector<8x128xf32>
    %cst_28 = arith.constant 1.000000e+00 : f32
    %170 = vector.broadcast %cst_28 : f32 to vector<8x128xf32>
    %171 = arith.select %162, %170, %169 : vector<8x128xi1>, vector<8x128xf32>
    %172 = vector.extract_strided_slice %81 {offsets = [0, 0], sizes = [1, 128], strides = [1, 1]} : vector<8x128xf32> to vector<1x128xf32>
    %173 = vector.broadcast %172 : vector<1x128xf32> to vector<8x128xf32>
    %174 = arith.mulf %173, %107 : vector<8x128xf32>
    %175 = arith.subf %81, %174 : vector<8x128xf32>
    %c5_i32_29 = arith.constant 5 : i32
    %176 = vector.broadcast %c5_i32_29 : i32 to vector<8x128xi32>
    %177 = arith.cmpi eq, %0, %176 : vector<8x128xi32>
    %178 = arith.mulf %172, %105 : vector<1x128xf32>
    %cst_30 = arith.constant 0.000000e+00 : f32
    %179 = vector.broadcast %cst_30 : f32 to vector<1x128xf32>
    %180 = arith.subf %179, %178 : vector<1x128xf32>
    %cst_31 = arith.constant 0.000000e+00 : f32
    %181 = vector.shape_cast %180 : vector<1x128xf32> to vector<1x128xf32>
    %182 = vector.broadcast %181 : vector<1x128xf32> to vector<8x128xf32>
    %183 = vector.broadcast %cst_31 : f32 to vector<8x128xf32>
    %184 = arith.select %2, %182, %183 : vector<8x128xi1>, vector<8x128xf32>
    %cst_32 = arith.constant 1.000000e+00 : f32
    %185 = vector.broadcast %cst_32 : f32 to vector<8x128xf32>
    %186 = arith.select %177, %185, %184 : vector<8x128xi1>, vector<8x128xf32>
    %187 = vector.extract_strided_slice %90 {offsets = [0, 0], sizes = [1, 128], strides = [1, 1]} : vector<8x128xf32> to vector<1x128xf32>
    %188 = vector.broadcast %187 : vector<1x128xf32> to vector<8x128xf32>
    %189 = arith.mulf %188, %107 : vector<8x128xf32>
    %190 = arith.subf %90, %189 : vector<8x128xf32>
    %c6_i32_33 = arith.constant 6 : i32
    %191 = vector.broadcast %c6_i32_33 : i32 to vector<8x128xi32>
    %192 = arith.cmpi eq, %0, %191 : vector<8x128xi32>
    %193 = arith.mulf %187, %105 : vector<1x128xf32>
    %cst_34 = arith.constant 0.000000e+00 : f32
    %194 = vector.broadcast %cst_34 : f32 to vector<1x128xf32>
    %195 = arith.subf %194, %193 : vector<1x128xf32>
    %cst_35 = arith.constant 0.000000e+00 : f32
    %196 = vector.shape_cast %195 : vector<1x128xf32> to vector<1x128xf32>
    %197 = vector.broadcast %196 : vector<1x128xf32> to vector<8x128xf32>
    %198 = vector.broadcast %cst_35 : f32 to vector<8x128xf32>
    %199 = arith.select %2, %197, %198 : vector<8x128xi1>, vector<8x128xf32>
    %cst_36 = arith.constant 1.000000e+00 : f32
    %200 = vector.broadcast %cst_36 : f32 to vector<8x128xf32>
    %201 = arith.select %192, %200, %199 : vector<8x128xi1>, vector<8x128xf32>
    %202 = vector.extract_strided_slice %99 {offsets = [0, 0], sizes = [1, 128], strides = [1, 1]} : vector<8x128xf32> to vector<1x128xf32>
    %203 = vector.broadcast %202 : vector<1x128xf32> to vector<8x128xf32>
    %204 = arith.mulf %203, %107 : vector<8x128xf32>
    %205 = arith.subf %99, %204 : vector<8x128xf32>
    %c7_i32_37 = arith.constant 7 : i32
    %206 = vector.broadcast %c7_i32_37 : i32 to vector<8x128xi32>
    %207 = arith.cmpi eq, %0, %206 : vector<8x128xi32>
    %208 = arith.mulf %202, %105 : vector<1x128xf32>
    %cst_38 = arith.constant 0.000000e+00 : f32
    %209 = vector.broadcast %cst_38 : f32 to vector<1x128xf32>
    %210 = arith.subf %209, %208 : vector<1x128xf32>
    %cst_39 = arith.constant 0.000000e+00 : f32
    %211 = vector.shape_cast %210 : vector<1x128xf32> to vector<1x128xf32>
    %212 = vector.broadcast %211 : vector<1x128xf32> to vector<8x128xf32>
    %213 = vector.broadcast %cst_39 : f32 to vector<8x128xf32>
    %214 = arith.select %2, %212, %213 : vector<8x128xi1>, vector<8x128xf32>
    %cst_40 = arith.constant 1.000000e+00 : f32
    %215 = vector.broadcast %cst_40 : f32 to vector<8x128xf32>
    %216 = arith.select %207, %215, %214 : vector<8x128xi1>, vector<8x128xf32>
    %217 = vector.extract_strided_slice %115 {offsets = [1, 0], sizes = [1, 128], strides = [1, 1]} : vector<8x128xf32> to vector<1x128xf32>
    %218 = tpu.reciprocal %217 {approx = true} : vector<1x128xf32> -> vector<1x128xf32>
    %219 = arith.mulf %217, %218 : vector<1x128xf32>
    %cst_41 = arith.constant 2.000000e+00 : f32
    %220 = vector.broadcast %cst_41 : f32 to vector<1x128xf32>
    %221 = arith.subf %220, %219 : vector<1x128xf32>
    %222 = arith.mulf %218, %221 : vector<1x128xf32>
    %223 = vector.broadcast %222 : vector<1x128xf32> to vector<8x128xf32>
    %224 = arith.mulf %126, %223 : vector<8x128xf32>
    %225 = vector.broadcast %222 : vector<1x128xf32> to vector<8x128xf32>
    %226 = arith.mulf %115, %225 : vector<8x128xf32>
    %227 = vector.extract_strided_slice %107 {offsets = [1, 0], sizes = [1, 128], strides = [1, 1]} : vector<8x128xf32> to vector<1x128xf32>
    %228 = vector.broadcast %227 : vector<1x128xf32> to vector<8x128xf32>
    %229 = arith.mulf %228, %224 : vector<8x128xf32>
    %230 = arith.subf %111, %229 : vector<8x128xf32>
    %231 = vector.broadcast %227 : vector<1x128xf32> to vector<8x128xf32>
    %232 = arith.mulf %231, %226 : vector<8x128xf32>
    %233 = arith.subf %107, %232 : vector<8x128xf32>
    %234 = vector.extract_strided_slice %130 {offsets = [1, 0], sizes = [1, 128], strides = [1, 1]} : vector<8x128xf32> to vector<1x128xf32>
    %235 = vector.broadcast %234 : vector<1x128xf32> to vector<8x128xf32>
    %236 = arith.mulf %235, %224 : vector<8x128xf32>
    %237 = arith.subf %141, %236 : vector<8x128xf32>
    %238 = vector.broadcast %234 : vector<1x128xf32> to vector<8x128xf32>
    %239 = arith.mulf %238, %226 : vector<8x128xf32>
    %240 = arith.subf %130, %239 : vector<8x128xf32>
    %241 = vector.extract_strided_slice %145 {offsets = [1, 0], sizes = [1, 128], strides = [1, 1]} : vector<8x128xf32> to vector<1x128xf32>
    %242 = vector.broadcast %241 : vector<1x128xf32> to vector<8x128xf32>
    %243 = arith.mulf %242, %224 : vector<8x128xf32>
    %244 = arith.subf %156, %243 : vector<8x128xf32>
    %245 = vector.broadcast %241 : vector<1x128xf32> to vector<8x128xf32>
    %246 = arith.mulf %245, %226 : vector<8x128xf32>
    %247 = arith.subf %145, %246 : vector<8x128xf32>
    %248 = vector.extract_strided_slice %160 {offsets = [1, 0], sizes = [1, 128], strides = [1, 1]} : vector<8x128xf32> to vector<1x128xf32>
    %249 = vector.broadcast %248 : vector<1x128xf32> to vector<8x128xf32>
    %250 = arith.mulf %249, %224 : vector<8x128xf32>
    %251 = arith.subf %171, %250 : vector<8x128xf32>
    %252 = vector.broadcast %248 : vector<1x128xf32> to vector<8x128xf32>
    %253 = arith.mulf %252, %226 : vector<8x128xf32>
    %254 = arith.subf %160, %253 : vector<8x128xf32>
    %255 = vector.extract_strided_slice %175 {offsets = [1, 0], sizes = [1, 128], strides = [1, 1]} : vector<8x128xf32> to vector<1x128xf32>
    %256 = vector.broadcast %255 : vector<1x128xf32> to vector<8x128xf32>
    %257 = arith.mulf %256, %224 : vector<8x128xf32>
    %258 = arith.subf %186, %257 : vector<8x128xf32>
    %259 = vector.broadcast %255 : vector<1x128xf32> to vector<8x128xf32>
    %260 = arith.mulf %259, %226 : vector<8x128xf32>
    %261 = arith.subf %175, %260 : vector<8x128xf32>
    %262 = vector.extract_strided_slice %190 {offsets = [1, 0], sizes = [1, 128], strides = [1, 1]} : vector<8x128xf32> to vector<1x128xf32>
    %263 = vector.broadcast %262 : vector<1x128xf32> to vector<8x128xf32>
    %264 = arith.mulf %263, %224 : vector<8x128xf32>
    %265 = arith.subf %201, %264 : vector<8x128xf32>
    %266 = vector.broadcast %262 : vector<1x128xf32> to vector<8x128xf32>
    %267 = arith.mulf %266, %226 : vector<8x128xf32>
    %268 = arith.subf %190, %267 : vector<8x128xf32>
    %269 = vector.extract_strided_slice %205 {offsets = [1, 0], sizes = [1, 128], strides = [1, 1]} : vector<8x128xf32> to vector<1x128xf32>
    %270 = vector.broadcast %269 : vector<1x128xf32> to vector<8x128xf32>
    %271 = arith.mulf %270, %224 : vector<8x128xf32>
    %272 = arith.subf %216, %271 : vector<8x128xf32>
    %273 = vector.broadcast %269 : vector<1x128xf32> to vector<8x128xf32>
    %274 = arith.mulf %273, %226 : vector<8x128xf32>
    %275 = arith.subf %205, %274 : vector<8x128xf32>
    %276 = vector.extract_strided_slice %240 {offsets = [2, 0], sizes = [1, 128], strides = [1, 1]} : vector<8x128xf32> to vector<1x128xf32>
    %277 = tpu.reciprocal %276 {approx = true} : vector<1x128xf32> -> vector<1x128xf32>
    %278 = arith.mulf %276, %277 : vector<1x128xf32>
    %cst_42 = arith.constant 2.000000e+00 : f32
    %279 = vector.broadcast %cst_42 : f32 to vector<1x128xf32>
    %280 = arith.subf %279, %278 : vector<1x128xf32>
    %281 = arith.mulf %277, %280 : vector<1x128xf32>
    %282 = vector.broadcast %281 : vector<1x128xf32> to vector<8x128xf32>
    %283 = arith.mulf %237, %282 : vector<8x128xf32>
    %284 = vector.broadcast %281 : vector<1x128xf32> to vector<8x128xf32>
    %285 = arith.mulf %240, %284 : vector<8x128xf32>
    %286 = vector.extract_strided_slice %233 {offsets = [2, 0], sizes = [1, 128], strides = [1, 1]} : vector<8x128xf32> to vector<1x128xf32>
    %287 = vector.broadcast %286 : vector<1x128xf32> to vector<8x128xf32>
    %288 = arith.mulf %287, %283 : vector<8x128xf32>
    %289 = arith.subf %230, %288 : vector<8x128xf32>
    %290 = vector.broadcast %286 : vector<1x128xf32> to vector<8x128xf32>
    %291 = arith.mulf %290, %285 : vector<8x128xf32>
    %292 = arith.subf %233, %291 : vector<8x128xf32>
    %293 = vector.extract_strided_slice %226 {offsets = [2, 0], sizes = [1, 128], strides = [1, 1]} : vector<8x128xf32> to vector<1x128xf32>
    %294 = vector.broadcast %293 : vector<1x128xf32> to vector<8x128xf32>
    %295 = arith.mulf %294, %283 : vector<8x128xf32>
    %296 = arith.subf %224, %295 : vector<8x128xf32>
    %297 = vector.broadcast %293 : vector<1x128xf32> to vector<8x128xf32>
    %298 = arith.mulf %297, %285 : vector<8x128xf32>
    %299 = arith.subf %226, %298 : vector<8x128xf32>
    %300 = vector.extract_strided_slice %247 {offsets = [2, 0], sizes = [1, 128], strides = [1, 1]} : vector<8x128xf32> to vector<1x128xf32>
    %301 = vector.broadcast %300 : vector<1x128xf32> to vector<8x128xf32>
    %302 = arith.mulf %301, %283 : vector<8x128xf32>
    %303 = arith.subf %244, %302 : vector<8x128xf32>
    %304 = vector.broadcast %300 : vector<1x128xf32> to vector<8x128xf32>
    %305 = arith.mulf %304, %285 : vector<8x128xf32>
    %306 = arith.subf %247, %305 : vector<8x128xf32>
    %307 = vector.extract_strided_slice %254 {offsets = [2, 0], sizes = [1, 128], strides = [1, 1]} : vector<8x128xf32> to vector<1x128xf32>
    %308 = vector.broadcast %307 : vector<1x128xf32> to vector<8x128xf32>
    %309 = arith.mulf %308, %283 : vector<8x128xf32>
    %310 = arith.subf %251, %309 : vector<8x128xf32>
    %311 = vector.broadcast %307 : vector<1x128xf32> to vector<8x128xf32>
    %312 = arith.mulf %311, %285 : vector<8x128xf32>
    %313 = arith.subf %254, %312 : vector<8x128xf32>
    %314 = vector.extract_strided_slice %261 {offsets = [2, 0], sizes = [1, 128], strides = [1, 1]} : vector<8x128xf32> to vector<1x128xf32>
    %315 = vector.broadcast %314 : vector<1x128xf32> to vector<8x128xf32>
    %316 = arith.mulf %315, %283 : vector<8x128xf32>
    %317 = arith.subf %258, %316 : vector<8x128xf32>
    %318 = vector.broadcast %314 : vector<1x128xf32> to vector<8x128xf32>
    %319 = arith.mulf %318, %285 : vector<8x128xf32>
    %320 = arith.subf %261, %319 : vector<8x128xf32>
    %321 = vector.extract_strided_slice %268 {offsets = [2, 0], sizes = [1, 128], strides = [1, 1]} : vector<8x128xf32> to vector<1x128xf32>
    %322 = vector.broadcast %321 : vector<1x128xf32> to vector<8x128xf32>
    %323 = arith.mulf %322, %283 : vector<8x128xf32>
    %324 = arith.subf %265, %323 : vector<8x128xf32>
    %325 = vector.broadcast %321 : vector<1x128xf32> to vector<8x128xf32>
    %326 = arith.mulf %325, %285 : vector<8x128xf32>
    %327 = arith.subf %268, %326 : vector<8x128xf32>
    %328 = vector.extract_strided_slice %275 {offsets = [2, 0], sizes = [1, 128], strides = [1, 1]} : vector<8x128xf32> to vector<1x128xf32>
    %329 = vector.broadcast %328 : vector<1x128xf32> to vector<8x128xf32>
    %330 = arith.mulf %329, %283 : vector<8x128xf32>
    %331 = arith.subf %272, %330 : vector<8x128xf32>
    %332 = vector.broadcast %328 : vector<1x128xf32> to vector<8x128xf32>
    %333 = arith.mulf %332, %285 : vector<8x128xf32>
    %334 = arith.subf %275, %333 : vector<8x128xf32>
    %335 = vector.extract_strided_slice %306 {offsets = [3, 0], sizes = [1, 128], strides = [1, 1]} : vector<8x128xf32> to vector<1x128xf32>
    %336 = tpu.reciprocal %335 {approx = true} : vector<1x128xf32> -> vector<1x128xf32>
    %337 = arith.mulf %335, %336 : vector<1x128xf32>
    %cst_43 = arith.constant 2.000000e+00 : f32
    %338 = vector.broadcast %cst_43 : f32 to vector<1x128xf32>
    %339 = arith.subf %338, %337 : vector<1x128xf32>
    %340 = arith.mulf %336, %339 : vector<1x128xf32>
    %341 = vector.broadcast %340 : vector<1x128xf32> to vector<8x128xf32>
    %342 = arith.mulf %303, %341 : vector<8x128xf32>
    %343 = vector.broadcast %340 : vector<1x128xf32> to vector<8x128xf32>
    %344 = arith.mulf %306, %343 : vector<8x128xf32>
    %345 = vector.extract_strided_slice %292 {offsets = [3, 0], sizes = [1, 128], strides = [1, 1]} : vector<8x128xf32> to vector<1x128xf32>
    %346 = vector.broadcast %345 : vector<1x128xf32> to vector<8x128xf32>
    %347 = arith.mulf %346, %342 : vector<8x128xf32>
    %348 = arith.subf %289, %347 : vector<8x128xf32>
    %349 = vector.broadcast %345 : vector<1x128xf32> to vector<8x128xf32>
    %350 = arith.mulf %349, %344 : vector<8x128xf32>
    %351 = arith.subf %292, %350 : vector<8x128xf32>
    %352 = vector.extract_strided_slice %299 {offsets = [3, 0], sizes = [1, 128], strides = [1, 1]} : vector<8x128xf32> to vector<1x128xf32>
    %353 = vector.broadcast %352 : vector<1x128xf32> to vector<8x128xf32>
    %354 = arith.mulf %353, %342 : vector<8x128xf32>
    %355 = arith.subf %296, %354 : vector<8x128xf32>
    %356 = vector.broadcast %352 : vector<1x128xf32> to vector<8x128xf32>
    %357 = arith.mulf %356, %344 : vector<8x128xf32>
    %358 = arith.subf %299, %357 : vector<8x128xf32>
    %359 = vector.extract_strided_slice %285 {offsets = [3, 0], sizes = [1, 128], strides = [1, 1]} : vector<8x128xf32> to vector<1x128xf32>
    %360 = vector.broadcast %359 : vector<1x128xf32> to vector<8x128xf32>
    %361 = arith.mulf %360, %342 : vector<8x128xf32>
    %362 = arith.subf %283, %361 : vector<8x128xf32>
    %363 = vector.broadcast %359 : vector<1x128xf32> to vector<8x128xf32>
    %364 = arith.mulf %363, %344 : vector<8x128xf32>
    %365 = arith.subf %285, %364 : vector<8x128xf32>
    %366 = vector.extract_strided_slice %313 {offsets = [3, 0], sizes = [1, 128], strides = [1, 1]} : vector<8x128xf32> to vector<1x128xf32>
    %367 = vector.broadcast %366 : vector<1x128xf32> to vector<8x128xf32>
    %368 = arith.mulf %367, %342 : vector<8x128xf32>
    %369 = arith.subf %310, %368 : vector<8x128xf32>
    %370 = vector.broadcast %366 : vector<1x128xf32> to vector<8x128xf32>
    %371 = arith.mulf %370, %344 : vector<8x128xf32>
    %372 = arith.subf %313, %371 : vector<8x128xf32>
    %373 = vector.extract_strided_slice %320 {offsets = [3, 0], sizes = [1, 128], strides = [1, 1]} : vector<8x128xf32> to vector<1x128xf32>
    %374 = vector.broadcast %373 : vector<1x128xf32> to vector<8x128xf32>
    %375 = arith.mulf %374, %342 : vector<8x128xf32>
    %376 = arith.subf %317, %375 : vector<8x128xf32>
    %377 = vector.broadcast %373 : vector<1x128xf32> to vector<8x128xf32>
    %378 = arith.mulf %377, %344 : vector<8x128xf32>
    %379 = arith.subf %320, %378 : vector<8x128xf32>
    %380 = vector.extract_strided_slice %327 {offsets = [3, 0], sizes = [1, 128], strides = [1, 1]} : vector<8x128xf32> to vector<1x128xf32>
    %381 = vector.broadcast %380 : vector<1x128xf32> to vector<8x128xf32>
    %382 = arith.mulf %381, %342 : vector<8x128xf32>
    %383 = arith.subf %324, %382 : vector<8x128xf32>
    %384 = vector.broadcast %380 : vector<1x128xf32> to vector<8x128xf32>
    %385 = arith.mulf %384, %344 : vector<8x128xf32>
    %386 = arith.subf %327, %385 : vector<8x128xf32>
    %387 = vector.extract_strided_slice %334 {offsets = [3, 0], sizes = [1, 128], strides = [1, 1]} : vector<8x128xf32> to vector<1x128xf32>
    %388 = vector.broadcast %387 : vector<1x128xf32> to vector<8x128xf32>
    %389 = arith.mulf %388, %342 : vector<8x128xf32>
    %390 = arith.subf %331, %389 : vector<8x128xf32>
    %391 = vector.broadcast %387 : vector<1x128xf32> to vector<8x128xf32>
    %392 = arith.mulf %391, %344 : vector<8x128xf32>
    %393 = arith.subf %334, %392 : vector<8x128xf32>
    %394 = vector.extract_strided_slice %372 {offsets = [4, 0], sizes = [1, 128], strides = [1, 1]} : vector<8x128xf32> to vector<1x128xf32>
    %395 = tpu.reciprocal %394 {approx = true} : vector<1x128xf32> -> vector<1x128xf32>
    %396 = arith.mulf %394, %395 : vector<1x128xf32>
    %cst_44 = arith.constant 2.000000e+00 : f32
    %397 = vector.broadcast %cst_44 : f32 to vector<1x128xf32>
    %398 = arith.subf %397, %396 : vector<1x128xf32>
    %399 = arith.mulf %395, %398 : vector<1x128xf32>
    %400 = vector.broadcast %399 : vector<1x128xf32> to vector<8x128xf32>
    %401 = arith.mulf %369, %400 : vector<8x128xf32>
    %402 = vector.broadcast %399 : vector<1x128xf32> to vector<8x128xf32>
    %403 = arith.mulf %372, %402 : vector<8x128xf32>
    %404 = vector.extract_strided_slice %351 {offsets = [4, 0], sizes = [1, 128], strides = [1, 1]} : vector<8x128xf32> to vector<1x128xf32>
    %405 = vector.broadcast %404 : vector<1x128xf32> to vector<8x128xf32>
    %406 = arith.mulf %405, %401 : vector<8x128xf32>
    %407 = arith.subf %348, %406 : vector<8x128xf32>
    %408 = vector.broadcast %404 : vector<1x128xf32> to vector<8x128xf32>
    %409 = arith.mulf %408, %403 : vector<8x128xf32>
    %410 = arith.subf %351, %409 : vector<8x128xf32>
    %411 = vector.extract_strided_slice %358 {offsets = [4, 0], sizes = [1, 128], strides = [1, 1]} : vector<8x128xf32> to vector<1x128xf32>
    %412 = vector.broadcast %411 : vector<1x128xf32> to vector<8x128xf32>
    %413 = arith.mulf %412, %401 : vector<8x128xf32>
    %414 = arith.subf %355, %413 : vector<8x128xf32>
    %415 = vector.broadcast %411 : vector<1x128xf32> to vector<8x128xf32>
    %416 = arith.mulf %415, %403 : vector<8x128xf32>
    %417 = arith.subf %358, %416 : vector<8x128xf32>
    %418 = vector.extract_strided_slice %365 {offsets = [4, 0], sizes = [1, 128], strides = [1, 1]} : vector<8x128xf32> to vector<1x128xf32>
    %419 = vector.broadcast %418 : vector<1x128xf32> to vector<8x128xf32>
    %420 = arith.mulf %419, %401 : vector<8x128xf32>
    %421 = arith.subf %362, %420 : vector<8x128xf32>
    %422 = vector.broadcast %418 : vector<1x128xf32> to vector<8x128xf32>
    %423 = arith.mulf %422, %403 : vector<8x128xf32>
    %424 = arith.subf %365, %423 : vector<8x128xf32>
    %425 = vector.extract_strided_slice %344 {offsets = [4, 0], sizes = [1, 128], strides = [1, 1]} : vector<8x128xf32> to vector<1x128xf32>
    %426 = vector.broadcast %425 : vector<1x128xf32> to vector<8x128xf32>
    %427 = arith.mulf %426, %401 : vector<8x128xf32>
    %428 = arith.subf %342, %427 : vector<8x128xf32>
    %429 = vector.broadcast %425 : vector<1x128xf32> to vector<8x128xf32>
    %430 = arith.mulf %429, %403 : vector<8x128xf32>
    %431 = arith.subf %344, %430 : vector<8x128xf32>
    %432 = vector.extract_strided_slice %379 {offsets = [4, 0], sizes = [1, 128], strides = [1, 1]} : vector<8x128xf32> to vector<1x128xf32>
    %433 = vector.broadcast %432 : vector<1x128xf32> to vector<8x128xf32>
    %434 = arith.mulf %433, %401 : vector<8x128xf32>
    %435 = arith.subf %376, %434 : vector<8x128xf32>
    %436 = vector.broadcast %432 : vector<1x128xf32> to vector<8x128xf32>
    %437 = arith.mulf %436, %403 : vector<8x128xf32>
    %438 = arith.subf %379, %437 : vector<8x128xf32>
    %439 = vector.extract_strided_slice %386 {offsets = [4, 0], sizes = [1, 128], strides = [1, 1]} : vector<8x128xf32> to vector<1x128xf32>
    %440 = vector.broadcast %439 : vector<1x128xf32> to vector<8x128xf32>
    %441 = arith.mulf %440, %401 : vector<8x128xf32>
    %442 = arith.subf %383, %441 : vector<8x128xf32>
    %443 = vector.broadcast %439 : vector<1x128xf32> to vector<8x128xf32>
    %444 = arith.mulf %443, %403 : vector<8x128xf32>
    %445 = arith.subf %386, %444 : vector<8x128xf32>
    %446 = vector.extract_strided_slice %393 {offsets = [4, 0], sizes = [1, 128], strides = [1, 1]} : vector<8x128xf32> to vector<1x128xf32>
    %447 = vector.broadcast %446 : vector<1x128xf32> to vector<8x128xf32>
    %448 = arith.mulf %447, %401 : vector<8x128xf32>
    %449 = arith.subf %390, %448 : vector<8x128xf32>
    %450 = vector.broadcast %446 : vector<1x128xf32> to vector<8x128xf32>
    %451 = arith.mulf %450, %403 : vector<8x128xf32>
    %452 = arith.subf %393, %451 : vector<8x128xf32>
    %453 = vector.extract_strided_slice %438 {offsets = [5, 0], sizes = [1, 128], strides = [1, 1]} : vector<8x128xf32> to vector<1x128xf32>
    %454 = tpu.reciprocal %453 {approx = true} : vector<1x128xf32> -> vector<1x128xf32>
    %455 = arith.mulf %453, %454 : vector<1x128xf32>
    %cst_45 = arith.constant 2.000000e+00 : f32
    %456 = vector.broadcast %cst_45 : f32 to vector<1x128xf32>
    %457 = arith.subf %456, %455 : vector<1x128xf32>
    %458 = arith.mulf %454, %457 : vector<1x128xf32>
    %459 = vector.broadcast %458 : vector<1x128xf32> to vector<8x128xf32>
    %460 = arith.mulf %435, %459 : vector<8x128xf32>
    %461 = vector.broadcast %458 : vector<1x128xf32> to vector<8x128xf32>
    %462 = arith.mulf %438, %461 : vector<8x128xf32>
    %463 = vector.extract_strided_slice %410 {offsets = [5, 0], sizes = [1, 128], strides = [1, 1]} : vector<8x128xf32> to vector<1x128xf32>
    %464 = vector.broadcast %463 : vector<1x128xf32> to vector<8x128xf32>
    %465 = arith.mulf %464, %460 : vector<8x128xf32>
    %466 = arith.subf %407, %465 : vector<8x128xf32>
    %467 = vector.broadcast %463 : vector<1x128xf32> to vector<8x128xf32>
    %468 = arith.mulf %467, %462 : vector<8x128xf32>
    %469 = arith.subf %410, %468 : vector<8x128xf32>
    %470 = vector.extract_strided_slice %417 {offsets = [5, 0], sizes = [1, 128], strides = [1, 1]} : vector<8x128xf32> to vector<1x128xf32>
    %471 = vector.broadcast %470 : vector<1x128xf32> to vector<8x128xf32>
    %472 = arith.mulf %471, %460 : vector<8x128xf32>
    %473 = arith.subf %414, %472 : vector<8x128xf32>
    %474 = vector.broadcast %470 : vector<1x128xf32> to vector<8x128xf32>
    %475 = arith.mulf %474, %462 : vector<8x128xf32>
    %476 = arith.subf %417, %475 : vector<8x128xf32>
    %477 = vector.extract_strided_slice %424 {offsets = [5, 0], sizes = [1, 128], strides = [1, 1]} : vector<8x128xf32> to vector<1x128xf32>
    %478 = vector.broadcast %477 : vector<1x128xf32> to vector<8x128xf32>
    %479 = arith.mulf %478, %460 : vector<8x128xf32>
    %480 = arith.subf %421, %479 : vector<8x128xf32>
    %481 = vector.broadcast %477 : vector<1x128xf32> to vector<8x128xf32>
    %482 = arith.mulf %481, %462 : vector<8x128xf32>
    %483 = arith.subf %424, %482 : vector<8x128xf32>
    %484 = vector.extract_strided_slice %431 {offsets = [5, 0], sizes = [1, 128], strides = [1, 1]} : vector<8x128xf32> to vector<1x128xf32>
    %485 = vector.broadcast %484 : vector<1x128xf32> to vector<8x128xf32>
    %486 = arith.mulf %485, %460 : vector<8x128xf32>
    %487 = arith.subf %428, %486 : vector<8x128xf32>
    %488 = vector.broadcast %484 : vector<1x128xf32> to vector<8x128xf32>
    %489 = arith.mulf %488, %462 : vector<8x128xf32>
    %490 = arith.subf %431, %489 : vector<8x128xf32>
    %491 = vector.extract_strided_slice %403 {offsets = [5, 0], sizes = [1, 128], strides = [1, 1]} : vector<8x128xf32> to vector<1x128xf32>
    %492 = vector.broadcast %491 : vector<1x128xf32> to vector<8x128xf32>
    %493 = arith.mulf %492, %460 : vector<8x128xf32>
    %494 = arith.subf %401, %493 : vector<8x128xf32>
    %495 = vector.broadcast %491 : vector<1x128xf32> to vector<8x128xf32>
    %496 = arith.mulf %495, %462 : vector<8x128xf32>
    %497 = arith.subf %403, %496 : vector<8x128xf32>
    %498 = vector.extract_strided_slice %445 {offsets = [5, 0], sizes = [1, 128], strides = [1, 1]} : vector<8x128xf32> to vector<1x128xf32>
    %499 = vector.broadcast %498 : vector<1x128xf32> to vector<8x128xf32>
    %500 = arith.mulf %499, %460 : vector<8x128xf32>
    %501 = arith.subf %442, %500 : vector<8x128xf32>
    %502 = vector.broadcast %498 : vector<1x128xf32> to vector<8x128xf32>
    %503 = arith.mulf %502, %462 : vector<8x128xf32>
    %504 = arith.subf %445, %503 : vector<8x128xf32>
    %505 = vector.extract_strided_slice %452 {offsets = [5, 0], sizes = [1, 128], strides = [1, 1]} : vector<8x128xf32> to vector<1x128xf32>
    %506 = vector.broadcast %505 : vector<1x128xf32> to vector<8x128xf32>
    %507 = arith.mulf %506, %460 : vector<8x128xf32>
    %508 = arith.subf %449, %507 : vector<8x128xf32>
    %509 = vector.broadcast %505 : vector<1x128xf32> to vector<8x128xf32>
    %510 = arith.mulf %509, %462 : vector<8x128xf32>
    %511 = arith.subf %452, %510 : vector<8x128xf32>
    %512 = vector.extract_strided_slice %504 {offsets = [6, 0], sizes = [1, 128], strides = [1, 1]} : vector<8x128xf32> to vector<1x128xf32>
    %513 = tpu.reciprocal %512 {approx = true} : vector<1x128xf32> -> vector<1x128xf32>
    %514 = arith.mulf %512, %513 : vector<1x128xf32>
    %cst_46 = arith.constant 2.000000e+00 : f32
    %515 = vector.broadcast %cst_46 : f32 to vector<1x128xf32>
    %516 = arith.subf %515, %514 : vector<1x128xf32>
    %517 = arith.mulf %513, %516 : vector<1x128xf32>
    %518 = vector.broadcast %517 : vector<1x128xf32> to vector<8x128xf32>
    %519 = arith.mulf %501, %518 : vector<8x128xf32>
    %520 = vector.broadcast %517 : vector<1x128xf32> to vector<8x128xf32>
    %521 = arith.mulf %504, %520 : vector<8x128xf32>
    %522 = vector.extract_strided_slice %469 {offsets = [6, 0], sizes = [1, 128], strides = [1, 1]} : vector<8x128xf32> to vector<1x128xf32>
    %523 = vector.broadcast %522 : vector<1x128xf32> to vector<8x128xf32>
    %524 = arith.mulf %523, %519 : vector<8x128xf32>
    %525 = arith.subf %466, %524 : vector<8x128xf32>
    %526 = vector.broadcast %522 : vector<1x128xf32> to vector<8x128xf32>
    %527 = arith.mulf %526, %521 : vector<8x128xf32>
    %528 = arith.subf %469, %527 : vector<8x128xf32>
    %529 = vector.extract_strided_slice %476 {offsets = [6, 0], sizes = [1, 128], strides = [1, 1]} : vector<8x128xf32> to vector<1x128xf32>
    %530 = vector.broadcast %529 : vector<1x128xf32> to vector<8x128xf32>
    %531 = arith.mulf %530, %519 : vector<8x128xf32>
    %532 = arith.subf %473, %531 : vector<8x128xf32>
    %533 = vector.broadcast %529 : vector<1x128xf32> to vector<8x128xf32>
    %534 = arith.mulf %533, %521 : vector<8x128xf32>
    %535 = arith.subf %476, %534 : vector<8x128xf32>
    %536 = vector.extract_strided_slice %483 {offsets = [6, 0], sizes = [1, 128], strides = [1, 1]} : vector<8x128xf32> to vector<1x128xf32>
    %537 = vector.broadcast %536 : vector<1x128xf32> to vector<8x128xf32>
    %538 = arith.mulf %537, %519 : vector<8x128xf32>
    %539 = arith.subf %480, %538 : vector<8x128xf32>
    %540 = vector.broadcast %536 : vector<1x128xf32> to vector<8x128xf32>
    %541 = arith.mulf %540, %521 : vector<8x128xf32>
    %542 = arith.subf %483, %541 : vector<8x128xf32>
    %543 = vector.extract_strided_slice %490 {offsets = [6, 0], sizes = [1, 128], strides = [1, 1]} : vector<8x128xf32> to vector<1x128xf32>
    %544 = vector.broadcast %543 : vector<1x128xf32> to vector<8x128xf32>
    %545 = arith.mulf %544, %519 : vector<8x128xf32>
    %546 = arith.subf %487, %545 : vector<8x128xf32>
    %547 = vector.broadcast %543 : vector<1x128xf32> to vector<8x128xf32>
    %548 = arith.mulf %547, %521 : vector<8x128xf32>
    %549 = arith.subf %490, %548 : vector<8x128xf32>
    %550 = vector.extract_strided_slice %497 {offsets = [6, 0], sizes = [1, 128], strides = [1, 1]} : vector<8x128xf32> to vector<1x128xf32>
    %551 = vector.broadcast %550 : vector<1x128xf32> to vector<8x128xf32>
    %552 = arith.mulf %551, %519 : vector<8x128xf32>
    %553 = arith.subf %494, %552 : vector<8x128xf32>
    %554 = vector.broadcast %550 : vector<1x128xf32> to vector<8x128xf32>
    %555 = arith.mulf %554, %521 : vector<8x128xf32>
    %556 = arith.subf %497, %555 : vector<8x128xf32>
    %557 = vector.extract_strided_slice %462 {offsets = [6, 0], sizes = [1, 128], strides = [1, 1]} : vector<8x128xf32> to vector<1x128xf32>
    %558 = vector.broadcast %557 : vector<1x128xf32> to vector<8x128xf32>
    %559 = arith.mulf %558, %519 : vector<8x128xf32>
    %560 = arith.subf %460, %559 : vector<8x128xf32>
    %561 = vector.broadcast %557 : vector<1x128xf32> to vector<8x128xf32>
    %562 = arith.mulf %561, %521 : vector<8x128xf32>
    %563 = arith.subf %462, %562 : vector<8x128xf32>
    %564 = vector.extract_strided_slice %511 {offsets = [6, 0], sizes = [1, 128], strides = [1, 1]} : vector<8x128xf32> to vector<1x128xf32>
    %565 = vector.broadcast %564 : vector<1x128xf32> to vector<8x128xf32>
    %566 = arith.mulf %565, %519 : vector<8x128xf32>
    %567 = arith.subf %508, %566 : vector<8x128xf32>
    %568 = vector.broadcast %564 : vector<1x128xf32> to vector<8x128xf32>
    %569 = arith.mulf %568, %521 : vector<8x128xf32>
    %570 = arith.subf %511, %569 : vector<8x128xf32>
    %571 = vector.extract_strided_slice %570 {offsets = [7, 0], sizes = [1, 128], strides = [1, 1]} : vector<8x128xf32> to vector<1x128xf32>
    %572 = tpu.reciprocal %571 {approx = true} : vector<1x128xf32> -> vector<1x128xf32>
    %573 = arith.mulf %571, %572 : vector<1x128xf32>
    %cst_47 = arith.constant 2.000000e+00 : f32
    %574 = vector.broadcast %cst_47 : f32 to vector<1x128xf32>
    %575 = arith.subf %574, %573 : vector<1x128xf32>
    %576 = arith.mulf %572, %575 : vector<1x128xf32>
    %577 = vector.broadcast %576 : vector<1x128xf32> to vector<8x128xf32>
    %578 = arith.mulf %567, %577 : vector<8x128xf32>
    %579 = vector.extract_strided_slice %528 {offsets = [7, 0], sizes = [1, 128], strides = [1, 1]} : vector<8x128xf32> to vector<1x128xf32>
    %580 = vector.broadcast %579 : vector<1x128xf32> to vector<8x128xf32>
    %581 = arith.mulf %580, %578 : vector<8x128xf32>
    %582 = arith.subf %525, %581 : vector<8x128xf32>
    %583 = vector.extract_strided_slice %535 {offsets = [7, 0], sizes = [1, 128], strides = [1, 1]} : vector<8x128xf32> to vector<1x128xf32>
    %584 = vector.broadcast %583 : vector<1x128xf32> to vector<8x128xf32>
    %585 = arith.mulf %584, %578 : vector<8x128xf32>
    %586 = arith.subf %532, %585 : vector<8x128xf32>
    %587 = vector.extract_strided_slice %542 {offsets = [7, 0], sizes = [1, 128], strides = [1, 1]} : vector<8x128xf32> to vector<1x128xf32>
    %588 = vector.broadcast %587 : vector<1x128xf32> to vector<8x128xf32>
    %589 = arith.mulf %588, %578 : vector<8x128xf32>
    %590 = arith.subf %539, %589 : vector<8x128xf32>
    %591 = vector.extract_strided_slice %549 {offsets = [7, 0], sizes = [1, 128], strides = [1, 1]} : vector<8x128xf32> to vector<1x128xf32>
    %592 = vector.broadcast %591 : vector<1x128xf32> to vector<8x128xf32>
    %593 = arith.mulf %592, %578 : vector<8x128xf32>
    %594 = arith.subf %546, %593 : vector<8x128xf32>
    %595 = vector.extract_strided_slice %556 {offsets = [7, 0], sizes = [1, 128], strides = [1, 1]} : vector<8x128xf32> to vector<1x128xf32>
    %596 = vector.broadcast %595 : vector<1x128xf32> to vector<8x128xf32>
    %597 = arith.mulf %596, %578 : vector<8x128xf32>
    %598 = arith.subf %553, %597 : vector<8x128xf32>
    %599 = vector.extract_strided_slice %563 {offsets = [7, 0], sizes = [1, 128], strides = [1, 1]} : vector<8x128xf32> to vector<1x128xf32>
    %600 = vector.broadcast %599 : vector<1x128xf32> to vector<8x128xf32>
    %601 = arith.mulf %600, %578 : vector<8x128xf32>
    %602 = arith.subf %560, %601 : vector<8x128xf32>
    %603 = vector.extract_strided_slice %521 {offsets = [7, 0], sizes = [1, 128], strides = [1, 1]} : vector<8x128xf32> to vector<1x128xf32>
    %604 = vector.broadcast %603 : vector<1x128xf32> to vector<8x128xf32>
    %605 = arith.mulf %604, %578 : vector<8x128xf32>
    %606 = arith.subf %519, %605 : vector<8x128xf32>
    %607 = tpu.concatenate %582, %586, %590, %594, %598, %602, %606, %578 in 0 : vector<8x128xf32>, vector<8x128xf32>, vector<8x128xf32>, vector<8x128xf32>, vector<8x128xf32>, vector<8x128xf32>, vector<8x128xf32>, vector<8x128xf32> -> vector<64x128xf32>
    %c0_48 = arith.constant 0 : index
    %608 = arith.index_cast %4 : i32 to index
    %609 = vector.load %arg2[%c0_48, %608] : memref<64x256xf32, #tpu.memory_space<vmem>>, vector<64x128xf32>
    tpu.vector_store %arg2[%c0_48, %608], %607 {strides = array<i32>} : memref<64x256xf32, #tpu.memory_space<vmem>>, vector<64x128xf32>,
    %c128_i32 = arith.constant 128 : i32
    %610 = arith.addi %4, %c128_i32 : i32
    %611 = tpu.assume_multiple %610, 128 : i32
    %c0_49 = arith.constant 0 : index
    %612 = arith.index_cast %611 : i32 to index
    %613 = vector.load %arg1[%c0_49, %612] : memref<16x256xf32, #tpu.memory_space<vmem>>, vector<16x128xf32>
    %614 = vector.extract_strided_slice %613 {offsets = [0, 0], sizes = [8, 128], strides = [1, 1]} : vector<16x128xf32> to vector<8x128xf32>
    %615 = vector.shape_cast %614 : vector<8x128xf32> to vector<8x1x128xf32>
    %616 = vector.shape_cast %614 : vector<8x128xf32> to vector<1x8x128xf32>
    %617 = vector.broadcast %615 : vector<8x1x128xf32> to vector<8x8x128xf32>
    %618 = vector.broadcast %616 : vector<1x8x128xf32> to vector<8x8x128xf32>
    %619 = arith.subf %617, %618 : vector<8x8x128xf32>
    %620 = arith.mulf %619, %619 : vector<8x8x128xf32>
    %621 = vector.extract_strided_slice %613 {offsets = [8, 0], sizes = [8, 128], strides = [1, 1]} : vector<16x128xf32> to vector<8x128xf32>
    %622 = vector.shape_cast %621 : vector<8x128xf32> to vector<8x1x128xf32>
    %623 = vector.shape_cast %621 : vector<8x128xf32> to vector<1x8x128xf32>
    %624 = vector.broadcast %622 : vector<8x1x128xf32> to vector<8x8x128xf32>
    %625 = vector.broadcast %623 : vector<1x8x128xf32> to vector<8x8x128xf32>
    %626 = arith.subf %624, %625 : vector<8x8x128xf32>
    %627 = arith.mulf %626, %626 : vector<8x8x128xf32>
    %628 = arith.addf %620, %627 : vector<8x8x128xf32>
    %629 = math.sqrt %628 : vector<8x8x128xf32>
    %cst_50 = arith.constant -5.000000e-01 : f32
    %630 = vector.broadcast %cst_50 : f32 to vector<8x8x128xf32>
    %631 = arith.mulf %629, %630 : vector<8x8x128xf32>
    %632 = math.exp %631 : vector<8x8x128xf32>
    %cst_51 = arith.constant 2.250000e+00 : f32
    %633 = vector.broadcast %cst_51 : f32 to vector<8x8x128xf32>
    %634 = arith.mulf %633, %632 : vector<8x8x128xf32>
    %c0_i32_52 = arith.constant 0 : i32
    %635 = vector.broadcast %c0_i32_52 : i32 to vector<8x128xi32>
    %636 = arith.cmpi eq, %0, %635 : vector<8x128xi32>
    %637 = vector.extract_strided_slice %634 {offsets = [0, 0, 0], sizes = [1, 8, 128], strides = [1, 1, 1]} : vector<8x8x128xf32> to vector<1x8x128xf32>
    %638 = vector.shape_cast %637 : vector<1x8x128xf32> to vector<8x128xf32>
    %cst_53 = arith.constant 2.500000e-01 : f32
    %639 = vector.broadcast %cst_53 : f32 to vector<8x128xf32>
    %640 = arith.addf %638, %639 : vector<8x128xf32>
    %641 = vector.extract_strided_slice %634 {offsets = [0, 0, 0], sizes = [1, 8, 128], strides = [1, 1, 1]} : vector<8x8x128xf32> to vector<1x8x128xf32>
    %642 = vector.shape_cast %641 : vector<1x8x128xf32> to vector<8x128xf32>
    %643 = arith.select %636, %640, %642 : vector<8x128xi1>, vector<8x128xf32>
    %c1_i32_54 = arith.constant 1 : i32
    %644 = vector.broadcast %c1_i32_54 : i32 to vector<8x128xi32>
    %645 = arith.cmpi eq, %0, %644 : vector<8x128xi32>
    %646 = vector.extract_strided_slice %634 {offsets = [1, 0, 0], sizes = [1, 8, 128], strides = [1, 1, 1]} : vector<8x8x128xf32> to vector<1x8x128xf32>
    %647 = vector.shape_cast %646 : vector<1x8x128xf32> to vector<8x128xf32>
    %cst_55 = arith.constant 2.500000e-01 : f32
    %648 = vector.broadcast %cst_55 : f32 to vector<8x128xf32>
    %649 = arith.addf %647, %648 : vector<8x128xf32>
    %650 = vector.extract_strided_slice %634 {offsets = [1, 0, 0], sizes = [1, 8, 128], strides = [1, 1, 1]} : vector<8x8x128xf32> to vector<1x8x128xf32>
    %651 = vector.shape_cast %650 : vector<1x8x128xf32> to vector<8x128xf32>
    %652 = arith.select %645, %649, %651 : vector<8x128xi1>, vector<8x128xf32>
    %c2_i32_56 = arith.constant 2 : i32
    %653 = vector.broadcast %c2_i32_56 : i32 to vector<8x128xi32>
    %654 = arith.cmpi eq, %0, %653 : vector<8x128xi32>
    %655 = vector.extract_strided_slice %634 {offsets = [2, 0, 0], sizes = [1, 8, 128], strides = [1, 1, 1]} : vector<8x8x128xf32> to vector<1x8x128xf32>
    %656 = vector.shape_cast %655 : vector<1x8x128xf32> to vector<8x128xf32>
    %cst_57 = arith.constant 2.500000e-01 : f32
    %657 = vector.broadcast %cst_57 : f32 to vector<8x128xf32>
    %658 = arith.addf %656, %657 : vector<8x128xf32>
    %659 = vector.extract_strided_slice %634 {offsets = [2, 0, 0], sizes = [1, 8, 128], strides = [1, 1, 1]} : vector<8x8x128xf32> to vector<1x8x128xf32>
    %660 = vector.shape_cast %659 : vector<1x8x128xf32> to vector<8x128xf32>
    %661 = arith.select %654, %658, %660 : vector<8x128xi1>, vector<8x128xf32>
    %c3_i32_58 = arith.constant 3 : i32
    %662 = vector.broadcast %c3_i32_58 : i32 to vector<8x128xi32>
    %663 = arith.cmpi eq, %0, %662 : vector<8x128xi32>
    %664 = vector.extract_strided_slice %634 {offsets = [3, 0, 0], sizes = [1, 8, 128], strides = [1, 1, 1]} : vector<8x8x128xf32> to vector<1x8x128xf32>
    %665 = vector.shape_cast %664 : vector<1x8x128xf32> to vector<8x128xf32>
    %cst_59 = arith.constant 2.500000e-01 : f32
    %666 = vector.broadcast %cst_59 : f32 to vector<8x128xf32>
    %667 = arith.addf %665, %666 : vector<8x128xf32>
    %668 = vector.extract_strided_slice %634 {offsets = [3, 0, 0], sizes = [1, 8, 128], strides = [1, 1, 1]} : vector<8x8x128xf32> to vector<1x8x128xf32>
    %669 = vector.shape_cast %668 : vector<1x8x128xf32> to vector<8x128xf32>
    %670 = arith.select %663, %667, %669 : vector<8x128xi1>, vector<8x128xf32>
    %c4_i32_60 = arith.constant 4 : i32
    %671 = vector.broadcast %c4_i32_60 : i32 to vector<8x128xi32>
    %672 = arith.cmpi eq, %0, %671 : vector<8x128xi32>
    %673 = vector.extract_strided_slice %634 {offsets = [4, 0, 0], sizes = [1, 8, 128], strides = [1, 1, 1]} : vector<8x8x128xf32> to vector<1x8x128xf32>
    %674 = vector.shape_cast %673 : vector<1x8x128xf32> to vector<8x128xf32>
    %cst_61 = arith.constant 2.500000e-01 : f32
    %675 = vector.broadcast %cst_61 : f32 to vector<8x128xf32>
    %676 = arith.addf %674, %675 : vector<8x128xf32>
    %677 = vector.extract_strided_slice %634 {offsets = [4, 0, 0], sizes = [1, 8, 128], strides = [1, 1, 1]} : vector<8x8x128xf32> to vector<1x8x128xf32>
    %678 = vector.shape_cast %677 : vector<1x8x128xf32> to vector<8x128xf32>
    %679 = arith.select %672, %676, %678 : vector<8x128xi1>, vector<8x128xf32>
    %c5_i32_62 = arith.constant 5 : i32
    %680 = vector.broadcast %c5_i32_62 : i32 to vector<8x128xi32>
    %681 = arith.cmpi eq, %0, %680 : vector<8x128xi32>
    %682 = vector.extract_strided_slice %634 {offsets = [5, 0, 0], sizes = [1, 8, 128], strides = [1, 1, 1]} : vector<8x8x128xf32> to vector<1x8x128xf32>
    %683 = vector.shape_cast %682 : vector<1x8x128xf32> to vector<8x128xf32>
    %cst_63 = arith.constant 2.500000e-01 : f32
    %684 = vector.broadcast %cst_63 : f32 to vector<8x128xf32>
    %685 = arith.addf %683, %684 : vector<8x128xf32>
    %686 = vector.extract_strided_slice %634 {offsets = [5, 0, 0], sizes = [1, 8, 128], strides = [1, 1, 1]} : vector<8x8x128xf32> to vector<1x8x128xf32>
    %687 = vector.shape_cast %686 : vector<1x8x128xf32> to vector<8x128xf32>
    %688 = arith.select %681, %685, %687 : vector<8x128xi1>, vector<8x128xf32>
    %c6_i32_64 = arith.constant 6 : i32
    %689 = vector.broadcast %c6_i32_64 : i32 to vector<8x128xi32>
    %690 = arith.cmpi eq, %0, %689 : vector<8x128xi32>
    %691 = vector.extract_strided_slice %634 {offsets = [6, 0, 0], sizes = [1, 8, 128], strides = [1, 1, 1]} : vector<8x8x128xf32> to vector<1x8x128xf32>
    %692 = vector.shape_cast %691 : vector<1x8x128xf32> to vector<8x128xf32>
    %cst_65 = arith.constant 2.500000e-01 : f32
    %693 = vector.broadcast %cst_65 : f32 to vector<8x128xf32>
    %694 = arith.addf %692, %693 : vector<8x128xf32>
    %695 = vector.extract_strided_slice %634 {offsets = [6, 0, 0], sizes = [1, 8, 128], strides = [1, 1, 1]} : vector<8x8x128xf32> to vector<1x8x128xf32>
    %696 = vector.shape_cast %695 : vector<1x8x128xf32> to vector<8x128xf32>
    %697 = arith.select %690, %694, %696 : vector<8x128xi1>, vector<8x128xf32>
    %c7_i32_66 = arith.constant 7 : i32
    %698 = vector.broadcast %c7_i32_66 : i32 to vector<8x128xi32>
    %699 = arith.cmpi eq, %0, %698 : vector<8x128xi32>
    %700 = vector.extract_strided_slice %634 {offsets = [7, 0, 0], sizes = [1, 8, 128], strides = [1, 1, 1]} : vector<8x8x128xf32> to vector<1x8x128xf32>
    %701 = vector.shape_cast %700 : vector<1x8x128xf32> to vector<8x128xf32>
    %cst_67 = arith.constant 2.500000e-01 : f32
    %702 = vector.broadcast %cst_67 : f32 to vector<8x128xf32>
    %703 = arith.addf %701, %702 : vector<8x128xf32>
    %704 = vector.extract_strided_slice %634 {offsets = [7, 0, 0], sizes = [1, 8, 128], strides = [1, 1, 1]} : vector<8x8x128xf32> to vector<1x8x128xf32>
    %705 = vector.shape_cast %704 : vector<1x8x128xf32> to vector<8x128xf32>
    %706 = arith.select %699, %703, %705 : vector<8x128xi1>, vector<8x128xf32>
    %707 = vector.extract_strided_slice %643 {offsets = [0, 0], sizes = [1, 128], strides = [1, 1]} : vector<8x128xf32> to vector<1x128xf32>
    %708 = tpu.reciprocal %707 {approx = true} : vector<1x128xf32> -> vector<1x128xf32>
    %709 = arith.mulf %707, %708 : vector<1x128xf32>
    %cst_68 = arith.constant 2.000000e+00 : f32
    %710 = vector.broadcast %cst_68 : f32 to vector<1x128xf32>
    %711 = arith.subf %710, %709 : vector<1x128xf32>
    %712 = arith.mulf %708, %711 : vector<1x128xf32>
    %713 = vector.broadcast %712 : vector<1x128xf32> to vector<8x128xf32>
    %714 = arith.mulf %643, %713 : vector<8x128xf32>
    %cst_69 = arith.constant 0.000000e+00 : f32
    %715 = vector.shape_cast %712 : vector<1x128xf32> to vector<1x128xf32>
    %716 = vector.broadcast %715 : vector<1x128xf32> to vector<8x128xf32>
    %717 = vector.broadcast %cst_69 : f32 to vector<8x128xf32>
    %718 = arith.select %2, %716, %717 : vector<8x128xi1>, vector<8x128xf32>
    %719 = vector.extract_strided_slice %652 {offsets = [0, 0], sizes = [1, 128], strides = [1, 1]} : vector<8x128xf32> to vector<1x128xf32>
    %720 = vector.broadcast %719 : vector<1x128xf32> to vector<8x128xf32>
    %721 = arith.mulf %720, %714 : vector<8x128xf32>
    %722 = arith.subf %652, %721 : vector<8x128xf32>
    %c1_i32_70 = arith.constant 1 : i32
    %723 = vector.broadcast %c1_i32_70 : i32 to vector<8x128xi32>
    %724 = arith.cmpi eq, %0, %723 : vector<8x128xi32>
    %725 = arith.mulf %719, %712 : vector<1x128xf32>
    %cst_71 = arith.constant 0.000000e+00 : f32
    %726 = vector.broadcast %cst_71 : f32 to vector<1x128xf32>
    %727 = arith.subf %726, %725 : vector<1x128xf32>
    %cst_72 = arith.constant 0.000000e+00 : f32
    %728 = vector.shape_cast %727 : vector<1x128xf32> to vector<1x128xf32>
    %729 = vector.broadcast %728 : vector<1x128xf32> to vector<8x128xf32>
    %730 = vector.broadcast %cst_72 : f32 to vector<8x128xf32>
    %731 = arith.select %2, %729, %730 : vector<8x128xi1>, vector<8x128xf32>
    %cst_73 = arith.constant 1.000000e+00 : f32
    %732 = vector.broadcast %cst_73 : f32 to vector<8x128xf32>
    %733 = arith.select %724, %732, %731 : vector<8x128xi1>, vector<8x128xf32>
    %734 = vector.extract_strided_slice %661 {offsets = [0, 0], sizes = [1, 128], strides = [1, 1]} : vector<8x128xf32> to vector<1x128xf32>
    %735 = vector.broadcast %734 : vector<1x128xf32> to vector<8x128xf32>
    %736 = arith.mulf %735, %714 : vector<8x128xf32>
    %737 = arith.subf %661, %736 : vector<8x128xf32>
    %c2_i32_74 = arith.constant 2 : i32
    %738 = vector.broadcast %c2_i32_74 : i32 to vector<8x128xi32>
    %739 = arith.cmpi eq, %0, %738 : vector<8x128xi32>
    %740 = arith.mulf %734, %712 : vector<1x128xf32>
    %cst_75 = arith.constant 0.000000e+00 : f32
    %741 = vector.broadcast %cst_75 : f32 to vector<1x128xf32>
    %742 = arith.subf %741, %740 : vector<1x128xf32>
    %cst_76 = arith.constant 0.000000e+00 : f32
    %743 = vector.shape_cast %742 : vector<1x128xf32> to vector<1x128xf32>
    %744 = vector.broadcast %743 : vector<1x128xf32> to vector<8x128xf32>
    %745 = vector.broadcast %cst_76 : f32 to vector<8x128xf32>
    %746 = arith.select %2, %744, %745 : vector<8x128xi1>, vector<8x128xf32>
    %cst_77 = arith.constant 1.000000e+00 : f32
    %747 = vector.broadcast %cst_77 : f32 to vector<8x128xf32>
    %748 = arith.select %739, %747, %746 : vector<8x128xi1>, vector<8x128xf32>
    %749 = vector.extract_strided_slice %670 {offsets = [0, 0], sizes = [1, 128], strides = [1, 1]} : vector<8x128xf32> to vector<1x128xf32>
    %750 = vector.broadcast %749 : vector<1x128xf32> to vector<8x128xf32>
    %751 = arith.mulf %750, %714 : vector<8x128xf32>
    %752 = arith.subf %670, %751 : vector<8x128xf32>
    %c3_i32_78 = arith.constant 3 : i32
    %753 = vector.broadcast %c3_i32_78 : i32 to vector<8x128xi32>
    %754 = arith.cmpi eq, %0, %753 : vector<8x128xi32>
    %755 = arith.mulf %749, %712 : vector<1x128xf32>
    %cst_79 = arith.constant 0.000000e+00 : f32
    %756 = vector.broadcast %cst_79 : f32 to vector<1x128xf32>
    %757 = arith.subf %756, %755 : vector<1x128xf32>
    %cst_80 = arith.constant 0.000000e+00 : f32
    %758 = vector.shape_cast %757 : vector<1x128xf32> to vector<1x128xf32>
    %759 = vector.broadcast %758 : vector<1x128xf32> to vector<8x128xf32>
    %760 = vector.broadcast %cst_80 : f32 to vector<8x128xf32>
    %761 = arith.select %2, %759, %760 : vector<8x128xi1>, vector<8x128xf32>
    %cst_81 = arith.constant 1.000000e+00 : f32
    %762 = vector.broadcast %cst_81 : f32 to vector<8x128xf32>
    %763 = arith.select %754, %762, %761 : vector<8x128xi1>, vector<8x128xf32>
    %764 = vector.extract_strided_slice %679 {offsets = [0, 0], sizes = [1, 128], strides = [1, 1]} : vector<8x128xf32> to vector<1x128xf32>
    %765 = vector.broadcast %764 : vector<1x128xf32> to vector<8x128xf32>
    %766 = arith.mulf %765, %714 : vector<8x128xf32>
    %767 = arith.subf %679, %766 : vector<8x128xf32>
    %c4_i32_82 = arith.constant 4 : i32
    %768 = vector.broadcast %c4_i32_82 : i32 to vector<8x128xi32>
    %769 = arith.cmpi eq, %0, %768 : vector<8x128xi32>
    %770 = arith.mulf %764, %712 : vector<1x128xf32>
    %cst_83 = arith.constant 0.000000e+00 : f32
    %771 = vector.broadcast %cst_83 : f32 to vector<1x128xf32>
    %772 = arith.subf %771, %770 : vector<1x128xf32>
    %cst_84 = arith.constant 0.000000e+00 : f32
    %773 = vector.shape_cast %772 : vector<1x128xf32> to vector<1x128xf32>
    %774 = vector.broadcast %773 : vector<1x128xf32> to vector<8x128xf32>
    %775 = vector.broadcast %cst_84 : f32 to vector<8x128xf32>
    %776 = arith.select %2, %774, %775 : vector<8x128xi1>, vector<8x128xf32>
    %cst_85 = arith.constant 1.000000e+00 : f32
    %777 = vector.broadcast %cst_85 : f32 to vector<8x128xf32>
    %778 = arith.select %769, %777, %776 : vector<8x128xi1>, vector<8x128xf32>
    %779 = vector.extract_strided_slice %688 {offsets = [0, 0], sizes = [1, 128], strides = [1, 1]} : vector<8x128xf32> to vector<1x128xf32>
    %780 = vector.broadcast %779 : vector<1x128xf32> to vector<8x128xf32>
    %781 = arith.mulf %780, %714 : vector<8x128xf32>
    %782 = arith.subf %688, %781 : vector<8x128xf32>
    %c5_i32_86 = arith.constant 5 : i32
    %783 = vector.broadcast %c5_i32_86 : i32 to vector<8x128xi32>
    %784 = arith.cmpi eq, %0, %783 : vector<8x128xi32>
    %785 = arith.mulf %779, %712 : vector<1x128xf32>
    %cst_87 = arith.constant 0.000000e+00 : f32
    %786 = vector.broadcast %cst_87 : f32 to vector<1x128xf32>
    %787 = arith.subf %786, %785 : vector<1x128xf32>
    %cst_88 = arith.constant 0.000000e+00 : f32
    %788 = vector.shape_cast %787 : vector<1x128xf32> to vector<1x128xf32>
    %789 = vector.broadcast %788 : vector<1x128xf32> to vector<8x128xf32>
    %790 = vector.broadcast %cst_88 : f32 to vector<8x128xf32>
    %791 = arith.select %2, %789, %790 : vector<8x128xi1>, vector<8x128xf32>
    %cst_89 = arith.constant 1.000000e+00 : f32
    %792 = vector.broadcast %cst_89 : f32 to vector<8x128xf32>
    %793 = arith.select %784, %792, %791 : vector<8x128xi1>, vector<8x128xf32>
    %794 = vector.extract_strided_slice %697 {offsets = [0, 0], sizes = [1, 128], strides = [1, 1]} : vector<8x128xf32> to vector<1x128xf32>
    %795 = vector.broadcast %794 : vector<1x128xf32> to vector<8x128xf32>
    %796 = arith.mulf %795, %714 : vector<8x128xf32>
    %797 = arith.subf %697, %796 : vector<8x128xf32>
    %c6_i32_90 = arith.constant 6 : i32
    %798 = vector.broadcast %c6_i32_90 : i32 to vector<8x128xi32>
    %799 = arith.cmpi eq, %0, %798 : vector<8x128xi32>
    %800 = arith.mulf %794, %712 : vector<1x128xf32>
    %cst_91 = arith.constant 0.000000e+00 : f32
    %801 = vector.broadcast %cst_91 : f32 to vector<1x128xf32>
    %802 = arith.subf %801, %800 : vector<1x128xf32>
    %cst_92 = arith.constant 0.000000e+00 : f32
    %803 = vector.shape_cast %802 : vector<1x128xf32> to vector<1x128xf32>
    %804 = vector.broadcast %803 : vector<1x128xf32> to vector<8x128xf32>
    %805 = vector.broadcast %cst_92 : f32 to vector<8x128xf32>
    %806 = arith.select %2, %804, %805 : vector<8x128xi1>, vector<8x128xf32>
    %cst_93 = arith.constant 1.000000e+00 : f32
    %807 = vector.broadcast %cst_93 : f32 to vector<8x128xf32>
    %808 = arith.select %799, %807, %806 : vector<8x128xi1>, vector<8x128xf32>
    %809 = vector.extract_strided_slice %706 {offsets = [0, 0], sizes = [1, 128], strides = [1, 1]} : vector<8x128xf32> to vector<1x128xf32>
    %810 = vector.broadcast %809 : vector<1x128xf32> to vector<8x128xf32>
    %811 = arith.mulf %810, %714 : vector<8x128xf32>
    %812 = arith.subf %706, %811 : vector<8x128xf32>
    %c7_i32_94 = arith.constant 7 : i32
    %813 = vector.broadcast %c7_i32_94 : i32 to vector<8x128xi32>
    %814 = arith.cmpi eq, %0, %813 : vector<8x128xi32>
    %815 = arith.mulf %809, %712 : vector<1x128xf32>
    %cst_95 = arith.constant 0.000000e+00 : f32
    %816 = vector.broadcast %cst_95 : f32 to vector<1x128xf32>
    %817 = arith.subf %816, %815 : vector<1x128xf32>
    %cst_96 = arith.constant 0.000000e+00 : f32
    %818 = vector.shape_cast %817 : vector<1x128xf32> to vector<1x128xf32>
    %819 = vector.broadcast %818 : vector<1x128xf32> to vector<8x128xf32>
    %820 = vector.broadcast %cst_96 : f32 to vector<8x128xf32>
    %821 = arith.select %2, %819, %820 : vector<8x128xi1>, vector<8x128xf32>
    %cst_97 = arith.constant 1.000000e+00 : f32
    %822 = vector.broadcast %cst_97 : f32 to vector<8x128xf32>
    %823 = arith.select %814, %822, %821 : vector<8x128xi1>, vector<8x128xf32>
    %824 = vector.extract_strided_slice %722 {offsets = [1, 0], sizes = [1, 128], strides = [1, 1]} : vector<8x128xf32> to vector<1x128xf32>
    %825 = tpu.reciprocal %824 {approx = true} : vector<1x128xf32> -> vector<1x128xf32>
    %826 = arith.mulf %824, %825 : vector<1x128xf32>
    %cst_98 = arith.constant 2.000000e+00 : f32
    %827 = vector.broadcast %cst_98 : f32 to vector<1x128xf32>
    %828 = arith.subf %827, %826 : vector<1x128xf32>
    %829 = arith.mulf %825, %828 : vector<1x128xf32>
    %830 = vector.broadcast %829 : vector<1x128xf32> to vector<8x128xf32>
    %831 = arith.mulf %733, %830 : vector<8x128xf32>
    %832 = vector.broadcast %829 : vector<1x128xf32> to vector<8x128xf32>
    %833 = arith.mulf %722, %832 : vector<8x128xf32>
    %834 = vector.extract_strided_slice %714 {offsets = [1, 0], sizes = [1, 128], strides = [1, 1]} : vector<8x128xf32> to vector<1x128xf32>
    %835 = vector.broadcast %834 : vector<1x128xf32> to vector<8x128xf32>
    %836 = arith.mulf %835, %831 : vector<8x128xf32>
    %837 = arith.subf %718, %836 : vector<8x128xf32>
    %838 = vector.broadcast %834 : vector<1x128xf32> to vector<8x128xf32>
    %839 = arith.mulf %838, %833 : vector<8x128xf32>
    %840 = arith.subf %714, %839 : vector<8x128xf32>
    %841 = vector.extract_strided_slice %737 {offsets = [1, 0], sizes = [1, 128], strides = [1, 1]} : vector<8x128xf32> to vector<1x128xf32>
    %842 = vector.broadcast %841 : vector<1x128xf32> to vector<8x128xf32>
    %843 = arith.mulf %842, %831 : vector<8x128xf32>
    %844 = arith.subf %748, %843 : vector<8x128xf32>
    %845 = vector.broadcast %841 : vector<1x128xf32> to vector<8x128xf32>
    %846 = arith.mulf %845, %833 : vector<8x128xf32>
    %847 = arith.subf %737, %846 : vector<8x128xf32>
    %848 = vector.extract_strided_slice %752 {offsets = [1, 0], sizes = [1, 128], strides = [1, 1]} : vector<8x128xf32> to vector<1x128xf32>
    %849 = vector.broadcast %848 : vector<1x128xf32> to vector<8x128xf32>
    %850 = arith.mulf %849, %831 : vector<8x128xf32>
    %851 = arith.subf %763, %850 : vector<8x128xf32>
    %852 = vector.broadcast %848 : vector<1x128xf32> to vector<8x128xf32>
    %853 = arith.mulf %852, %833 : vector<8x128xf32>
    %854 = arith.subf %752, %853 : vector<8x128xf32>
    %855 = vector.extract_strided_slice %767 {offsets = [1, 0], sizes = [1, 128], strides = [1, 1]} : vector<8x128xf32> to vector<1x128xf32>
    %856 = vector.broadcast %855 : vector<1x128xf32> to vector<8x128xf32>
    %857 = arith.mulf %856, %831 : vector<8x128xf32>
    %858 = arith.subf %778, %857 : vector<8x128xf32>
    %859 = vector.broadcast %855 : vector<1x128xf32> to vector<8x128xf32>
    %860 = arith.mulf %859, %833 : vector<8x128xf32>
    %861 = arith.subf %767, %860 : vector<8x128xf32>
    %862 = vector.extract_strided_slice %782 {offsets = [1, 0], sizes = [1, 128], strides = [1, 1]} : vector<8x128xf32> to vector<1x128xf32>
    %863 = vector.broadcast %862 : vector<1x128xf32> to vector<8x128xf32>
    %864 = arith.mulf %863, %831 : vector<8x128xf32>
    %865 = arith.subf %793, %864 : vector<8x128xf32>
    %866 = vector.broadcast %862 : vector<1x128xf32> to vector<8x128xf32>
    %867 = arith.mulf %866, %833 : vector<8x128xf32>
    %868 = arith.subf %782, %867 : vector<8x128xf32>
    %869 = vector.extract_strided_slice %797 {offsets = [1, 0], sizes = [1, 128], strides = [1, 1]} : vector<8x128xf32> to vector<1x128xf32>
    %870 = vector.broadcast %869 : vector<1x128xf32> to vector<8x128xf32>
    %871 = arith.mulf %870, %831 : vector<8x128xf32>
    %872 = arith.subf %808, %871 : vector<8x128xf32>
    %873 = vector.broadcast %869 : vector<1x128xf32> to vector<8x128xf32>
    %874 = arith.mulf %873, %833 : vector<8x128xf32>
    %875 = arith.subf %797, %874 : vector<8x128xf32>
    %876 = vector.extract_strided_slice %812 {offsets = [1, 0], sizes = [1, 128], strides = [1, 1]} : vector<8x128xf32> to vector<1x128xf32>
    %877 = vector.broadcast %876 : vector<1x128xf32> to vector<8x128xf32>
    %878 = arith.mulf %877, %831 : vector<8x128xf32>
    %879 = arith.subf %823, %878 : vector<8x128xf32>
    %880 = vector.broadcast %876 : vector<1x128xf32> to vector<8x128xf32>
    %881 = arith.mulf %880, %833 : vector<8x128xf32>
    %882 = arith.subf %812, %881 : vector<8x128xf32>
    %883 = vector.extract_strided_slice %847 {offsets = [2, 0], sizes = [1, 128], strides = [1, 1]} : vector<8x128xf32> to vector<1x128xf32>
    %884 = tpu.reciprocal %883 {approx = true} : vector<1x128xf32> -> vector<1x128xf32>
    %885 = arith.mulf %883, %884 : vector<1x128xf32>
    %cst_99 = arith.constant 2.000000e+00 : f32
    %886 = vector.broadcast %cst_99 : f32 to vector<1x128xf32>
    %887 = arith.subf %886, %885 : vector<1x128xf32>
    %888 = arith.mulf %884, %887 : vector<1x128xf32>
    %889 = vector.broadcast %888 : vector<1x128xf32> to vector<8x128xf32>
    %890 = arith.mulf %844, %889 : vector<8x128xf32>
    %891 = vector.broadcast %888 : vector<1x128xf32> to vector<8x128xf32>
    %892 = arith.mulf %847, %891 : vector<8x128xf32>
    %893 = vector.extract_strided_slice %840 {offsets = [2, 0], sizes = [1, 128], strides = [1, 1]} : vector<8x128xf32> to vector<1x128xf32>
    %894 = vector.broadcast %893 : vector<1x128xf32> to vector<8x128xf32>
    %895 = arith.mulf %894, %890 : vector<8x128xf32>
    %896 = arith.subf %837, %895 : vector<8x128xf32>
    %897 = vector.broadcast %893 : vector<1x128xf32> to vector<8x128xf32>
    %898 = arith.mulf %897, %892 : vector<8x128xf32>
    %899 = arith.subf %840, %898 : vector<8x128xf32>
    %900 = vector.extract_strided_slice %833 {offsets = [2, 0], sizes = [1, 128], strides = [1, 1]} : vector<8x128xf32> to vector<1x128xf32>
    %901 = vector.broadcast %900 : vector<1x128xf32> to vector<8x128xf32>
    %902 = arith.mulf %901, %890 : vector<8x128xf32>
    %903 = arith.subf %831, %902 : vector<8x128xf32>
    %904 = vector.broadcast %900 : vector<1x128xf32> to vector<8x128xf32>
    %905 = arith.mulf %904, %892 : vector<8x128xf32>
    %906 = arith.subf %833, %905 : vector<8x128xf32>
    %907 = vector.extract_strided_slice %854 {offsets = [2, 0], sizes = [1, 128], strides = [1, 1]} : vector<8x128xf32> to vector<1x128xf32>
    %908 = vector.broadcast %907 : vector<1x128xf32> to vector<8x128xf32>
    %909 = arith.mulf %908, %890 : vector<8x128xf32>
    %910 = arith.subf %851, %909 : vector<8x128xf32>
    %911 = vector.broadcast %907 : vector<1x128xf32> to vector<8x128xf32>
    %912 = arith.mulf %911, %892 : vector<8x128xf32>
    %913 = arith.subf %854, %912 : vector<8x128xf32>
    %914 = vector.extract_strided_slice %861 {offsets = [2, 0], sizes = [1, 128], strides = [1, 1]} : vector<8x128xf32> to vector<1x128xf32>
    %915 = vector.broadcast %914 : vector<1x128xf32> to vector<8x128xf32>
    %916 = arith.mulf %915, %890 : vector<8x128xf32>
    %917 = arith.subf %858, %916 : vector<8x128xf32>
    %918 = vector.broadcast %914 : vector<1x128xf32> to vector<8x128xf32>
    %919 = arith.mulf %918, %892 : vector<8x128xf32>
    %920 = arith.subf %861, %919 : vector<8x128xf32>
    %921 = vector.extract_strided_slice %868 {offsets = [2, 0], sizes = [1, 128], strides = [1, 1]} : vector<8x128xf32> to vector<1x128xf32>
    %922 = vector.broadcast %921 : vector<1x128xf32> to vector<8x128xf32>
    %923 = arith.mulf %922, %890 : vector<8x128xf32>
    %924 = arith.subf %865, %923 : vector<8x128xf32>
    %925 = vector.broadcast %921 : vector<1x128xf32> to vector<8x128xf32>
    %926 = arith.mulf %925, %892 : vector<8x128xf32>
    %927 = arith.subf %868, %926 : vector<8x128xf32>
    %928 = vector.extract_strided_slice %875 {offsets = [2, 0], sizes = [1, 128], strides = [1, 1]} : vector<8x128xf32> to vector<1x128xf32>
    %929 = vector.broadcast %928 : vector<1x128xf32> to vector<8x128xf32>
    %930 = arith.mulf %929, %890 : vector<8x128xf32>
    %931 = arith.subf %872, %930 : vector<8x128xf32>
    %932 = vector.broadcast %928 : vector<1x128xf32> to vector<8x128xf32>
    %933 = arith.mulf %932, %892 : vector<8x128xf32>
    %934 = arith.subf %875, %933 : vector<8x128xf32>
    %935 = vector.extract_strided_slice %882 {offsets = [2, 0], sizes = [1, 128], strides = [1, 1]} : vector<8x128xf32> to vector<1x128xf32>
    %936 = vector.broadcast %935 : vector<1x128xf32> to vector<8x128xf32>
    %937 = arith.mulf %936, %890 : vector<8x128xf32>
    %938 = arith.subf %879, %937 : vector<8x128xf32>
    %939 = vector.broadcast %935 : vector<1x128xf32> to vector<8x128xf32>
    %940 = arith.mulf %939, %892 : vector<8x128xf32>
    %941 = arith.subf %882, %940 : vector<8x128xf32>
    %942 = vector.extract_strided_slice %913 {offsets = [3, 0], sizes = [1, 128], strides = [1, 1]} : vector<8x128xf32> to vector<1x128xf32>
    %943 = tpu.reciprocal %942 {approx = true} : vector<1x128xf32> -> vector<1x128xf32>
    %944 = arith.mulf %942, %943 : vector<1x128xf32>
    %cst_100 = arith.constant 2.000000e+00 : f32
    %945 = vector.broadcast %cst_100 : f32 to vector<1x128xf32>
    %946 = arith.subf %945, %944 : vector<1x128xf32>
    %947 = arith.mulf %943, %946 : vector<1x128xf32>
    %948 = vector.broadcast %947 : vector<1x128xf32> to vector<8x128xf32>
    %949 = arith.mulf %910, %948 : vector<8x128xf32>
    %950 = vector.broadcast %947 : vector<1x128xf32> to vector<8x128xf32>
    %951 = arith.mulf %913, %950 : vector<8x128xf32>
    %952 = vector.extract_strided_slice %899 {offsets = [3, 0], sizes = [1, 128], strides = [1, 1]} : vector<8x128xf32> to vector<1x128xf32>
    %953 = vector.broadcast %952 : vector<1x128xf32> to vector<8x128xf32>
    %954 = arith.mulf %953, %949 : vector<8x128xf32>
    %955 = arith.subf %896, %954 : vector<8x128xf32>
    %956 = vector.broadcast %952 : vector<1x128xf32> to vector<8x128xf32>
    %957 = arith.mulf %956, %951 : vector<8x128xf32>
    %958 = arith.subf %899, %957 : vector<8x128xf32>
    %959 = vector.extract_strided_slice %906 {offsets = [3, 0], sizes = [1, 128], strides = [1, 1]} : vector<8x128xf32> to vector<1x128xf32>
    %960 = vector.broadcast %959 : vector<1x128xf32> to vector<8x128xf32>
    %961 = arith.mulf %960, %949 : vector<8x128xf32>
    %962 = arith.subf %903, %961 : vector<8x128xf32>
    %963 = vector.broadcast %959 : vector<1x128xf32> to vector<8x128xf32>
    %964 = arith.mulf %963, %951 : vector<8x128xf32>
    %965 = arith.subf %906, %964 : vector<8x128xf32>
    %966 = vector.extract_strided_slice %892 {offsets = [3, 0], sizes = [1, 128], strides = [1, 1]} : vector<8x128xf32> to vector<1x128xf32>
    %967 = vector.broadcast %966 : vector<1x128xf32> to vector<8x128xf32>
    %968 = arith.mulf %967, %949 : vector<8x128xf32>
    %969 = arith.subf %890, %968 : vector<8x128xf32>
    %970 = vector.broadcast %966 : vector<1x128xf32> to vector<8x128xf32>
    %971 = arith.mulf %970, %951 : vector<8x128xf32>
    %972 = arith.subf %892, %971 : vector<8x128xf32>
    %973 = vector.extract_strided_slice %920 {offsets = [3, 0], sizes = [1, 128], strides = [1, 1]} : vector<8x128xf32> to vector<1x128xf32>
    %974 = vector.broadcast %973 : vector<1x128xf32> to vector<8x128xf32>
    %975 = arith.mulf %974, %949 : vector<8x128xf32>
    %976 = arith.subf %917, %975 : vector<8x128xf32>
    %977 = vector.broadcast %973 : vector<1x128xf32> to vector<8x128xf32>
    %978 = arith.mulf %977, %951 : vector<8x128xf32>
    %979 = arith.subf %920, %978 : vector<8x128xf32>
    %980 = vector.extract_strided_slice %927 {offsets = [3, 0], sizes = [1, 128], strides = [1, 1]} : vector<8x128xf32> to vector<1x128xf32>
    %981 = vector.broadcast %980 : vector<1x128xf32> to vector<8x128xf32>
    %982 = arith.mulf %981, %949 : vector<8x128xf32>
    %983 = arith.subf %924, %982 : vector<8x128xf32>
    %984 = vector.broadcast %980 : vector<1x128xf32> to vector<8x128xf32>
    %985 = arith.mulf %984, %951 : vector<8x128xf32>
    %986 = arith.subf %927, %985 : vector<8x128xf32>
    %987 = vector.extract_strided_slice %934 {offsets = [3, 0], sizes = [1, 128], strides = [1, 1]} : vector<8x128xf32> to vector<1x128xf32>
    %988 = vector.broadcast %987 : vector<1x128xf32> to vector<8x128xf32>
    %989 = arith.mulf %988, %949 : vector<8x128xf32>
    %990 = arith.subf %931, %989 : vector<8x128xf32>
    %991 = vector.broadcast %987 : vector<1x128xf32> to vector<8x128xf32>
    %992 = arith.mulf %991, %951 : vector<8x128xf32>
    %993 = arith.subf %934, %992 : vector<8x128xf32>
    %994 = vector.extract_strided_slice %941 {offsets = [3, 0], sizes = [1, 128], strides = [1, 1]} : vector<8x128xf32> to vector<1x128xf32>
    %995 = vector.broadcast %994 : vector<1x128xf32> to vector<8x128xf32>
    %996 = arith.mulf %995, %949 : vector<8x128xf32>
    %997 = arith.subf %938, %996 : vector<8x128xf32>
    %998 = vector.broadcast %994 : vector<1x128xf32> to vector<8x128xf32>
    %999 = arith.mulf %998, %951 : vector<8x128xf32>
    %1000 = arith.subf %941, %999 : vector<8x128xf32>
    %1001 = vector.extract_strided_slice %979 {offsets = [4, 0], sizes = [1, 128], strides = [1, 1]} : vector<8x128xf32> to vector<1x128xf32>
    %1002 = tpu.reciprocal %1001 {approx = true} : vector<1x128xf32> -> vector<1x128xf32>
    %1003 = arith.mulf %1001, %1002 : vector<1x128xf32>
    %cst_101 = arith.constant 2.000000e+00 : f32
    %1004 = vector.broadcast %cst_101 : f32 to vector<1x128xf32>
    %1005 = arith.subf %1004, %1003 : vector<1x128xf32>
    %1006 = arith.mulf %1002, %1005 : vector<1x128xf32>
    %1007 = vector.broadcast %1006 : vector<1x128xf32> to vector<8x128xf32>
    %1008 = arith.mulf %976, %1007 : vector<8x128xf32>
    %1009 = vector.broadcast %1006 : vector<1x128xf32> to vector<8x128xf32>
    %1010 = arith.mulf %979, %1009 : vector<8x128xf32>
    %1011 = vector.extract_strided_slice %958 {offsets = [4, 0], sizes = [1, 128], strides = [1, 1]} : vector<8x128xf32> to vector<1x128xf32>
    %1012 = vector.broadcast %1011 : vector<1x128xf32> to vector<8x128xf32>
    %1013 = arith.mulf %1012, %1008 : vector<8x128xf32>
    %1014 = arith.subf %955, %1013 : vector<8x128xf32>
    %1015 = vector.broadcast %1011 : vector<1x128xf32> to vector<8x128xf32>
    %1016 = arith.mulf %1015, %1010 : vector<8x128xf32>
    %1017 = arith.subf %958, %1016 : vector<8x128xf32>
    %1018 = vector.extract_strided_slice %965 {offsets = [4, 0], sizes = [1, 128], strides = [1, 1]} : vector<8x128xf32> to vector<1x128xf32>
    %1019 = vector.broadcast %1018 : vector<1x128xf32> to vector<8x128xf32>
    %1020 = arith.mulf %1019, %1008 : vector<8x128xf32>
    %1021 = arith.subf %962, %1020 : vector<8x128xf32>
    %1022 = vector.broadcast %1018 : vector<1x128xf32> to vector<8x128xf32>
    %1023 = arith.mulf %1022, %1010 : vector<8x128xf32>
    %1024 = arith.subf %965, %1023 : vector<8x128xf32>
    %1025 = vector.extract_strided_slice %972 {offsets = [4, 0], sizes = [1, 128], strides = [1, 1]} : vector<8x128xf32> to vector<1x128xf32>
    %1026 = vector.broadcast %1025 : vector<1x128xf32> to vector<8x128xf32>
    %1027 = arith.mulf %1026, %1008 : vector<8x128xf32>
    %1028 = arith.subf %969, %1027 : vector<8x128xf32>
    %1029 = vector.broadcast %1025 : vector<1x128xf32> to vector<8x128xf32>
    %1030 = arith.mulf %1029, %1010 : vector<8x128xf32>
    %1031 = arith.subf %972, %1030 : vector<8x128xf32>
    %1032 = vector.extract_strided_slice %951 {offsets = [4, 0], sizes = [1, 128], strides = [1, 1]} : vector<8x128xf32> to vector<1x128xf32>
    %1033 = vector.broadcast %1032 : vector<1x128xf32> to vector<8x128xf32>
    %1034 = arith.mulf %1033, %1008 : vector<8x128xf32>
    %1035 = arith.subf %949, %1034 : vector<8x128xf32>
    %1036 = vector.broadcast %1032 : vector<1x128xf32> to vector<8x128xf32>
    %1037 = arith.mulf %1036, %1010 : vector<8x128xf32>
    %1038 = arith.subf %951, %1037 : vector<8x128xf32>
    %1039 = vector.extract_strided_slice %986 {offsets = [4, 0], sizes = [1, 128], strides = [1, 1]} : vector<8x128xf32> to vector<1x128xf32>
    %1040 = vector.broadcast %1039 : vector<1x128xf32> to vector<8x128xf32>
    %1041 = arith.mulf %1040, %1008 : vector<8x128xf32>
    %1042 = arith.subf %983, %1041 : vector<8x128xf32>
    %1043 = vector.broadcast %1039 : vector<1x128xf32> to vector<8x128xf32>
    %1044 = arith.mulf %1043, %1010 : vector<8x128xf32>
    %1045 = arith.subf %986, %1044 : vector<8x128xf32>
    %1046 = vector.extract_strided_slice %993 {offsets = [4, 0], sizes = [1, 128], strides = [1, 1]} : vector<8x128xf32> to vector<1x128xf32>
    %1047 = vector.broadcast %1046 : vector<1x128xf32> to vector<8x128xf32>
    %1048 = arith.mulf %1047, %1008 : vector<8x128xf32>
    %1049 = arith.subf %990, %1048 : vector<8x128xf32>
    %1050 = vector.broadcast %1046 : vector<1x128xf32> to vector<8x128xf32>
    %1051 = arith.mulf %1050, %1010 : vector<8x128xf32>
    %1052 = arith.subf %993, %1051 : vector<8x128xf32>
    %1053 = vector.extract_strided_slice %1000 {offsets = [4, 0], sizes = [1, 128], strides = [1, 1]} : vector<8x128xf32> to vector<1x128xf32>
    %1054 = vector.broadcast %1053 : vector<1x128xf32> to vector<8x128xf32>
    %1055 = arith.mulf %1054, %1008 : vector<8x128xf32>
    %1056 = arith.subf %997, %1055 : vector<8x128xf32>
    %1057 = vector.broadcast %1053 : vector<1x128xf32> to vector<8x128xf32>
    %1058 = arith.mulf %1057, %1010 : vector<8x128xf32>
    %1059 = arith.subf %1000, %1058 : vector<8x128xf32>
    %1060 = vector.extract_strided_slice %1045 {offsets = [5, 0], sizes = [1, 128], strides = [1, 1]} : vector<8x128xf32> to vector<1x128xf32>
    %1061 = tpu.reciprocal %1060 {approx = true} : vector<1x128xf32> -> vector<1x128xf32>
    %1062 = arith.mulf %1060, %1061 : vector<1x128xf32>
    %cst_102 = arith.constant 2.000000e+00 : f32
    %1063 = vector.broadcast %cst_102 : f32 to vector<1x128xf32>
    %1064 = arith.subf %1063, %1062 : vector<1x128xf32>
    %1065 = arith.mulf %1061, %1064 : vector<1x128xf32>
    %1066 = vector.broadcast %1065 : vector<1x128xf32> to vector<8x128xf32>
    %1067 = arith.mulf %1042, %1066 : vector<8x128xf32>
    %1068 = vector.broadcast %1065 : vector<1x128xf32> to vector<8x128xf32>
    %1069 = arith.mulf %1045, %1068 : vector<8x128xf32>
    %1070 = vector.extract_strided_slice %1017 {offsets = [5, 0], sizes = [1, 128], strides = [1, 1]} : vector<8x128xf32> to vector<1x128xf32>
    %1071 = vector.broadcast %1070 : vector<1x128xf32> to vector<8x128xf32>
    %1072 = arith.mulf %1071, %1067 : vector<8x128xf32>
    %1073 = arith.subf %1014, %1072 : vector<8x128xf32>
    %1074 = vector.broadcast %1070 : vector<1x128xf32> to vector<8x128xf32>
    %1075 = arith.mulf %1074, %1069 : vector<8x128xf32>
    %1076 = arith.subf %1017, %1075 : vector<8x128xf32>
    %1077 = vector.extract_strided_slice %1024 {offsets = [5, 0], sizes = [1, 128], strides = [1, 1]} : vector<8x128xf32> to vector<1x128xf32>
    %1078 = vector.broadcast %1077 : vector<1x128xf32> to vector<8x128xf32>
    %1079 = arith.mulf %1078, %1067 : vector<8x128xf32>
    %1080 = arith.subf %1021, %1079 : vector<8x128xf32>
    %1081 = vector.broadcast %1077 : vector<1x128xf32> to vector<8x128xf32>
    %1082 = arith.mulf %1081, %1069 : vector<8x128xf32>
    %1083 = arith.subf %1024, %1082 : vector<8x128xf32>
    %1084 = vector.extract_strided_slice %1031 {offsets = [5, 0], sizes = [1, 128], strides = [1, 1]} : vector<8x128xf32> to vector<1x128xf32>
    %1085 = vector.broadcast %1084 : vector<1x128xf32> to vector<8x128xf32>
    %1086 = arith.mulf %1085, %1067 : vector<8x128xf32>
    %1087 = arith.subf %1028, %1086 : vector<8x128xf32>
    %1088 = vector.broadcast %1084 : vector<1x128xf32> to vector<8x128xf32>
    %1089 = arith.mulf %1088, %1069 : vector<8x128xf32>
    %1090 = arith.subf %1031, %1089 : vector<8x128xf32>
    %1091 = vector.extract_strided_slice %1038 {offsets = [5, 0], sizes = [1, 128], strides = [1, 1]} : vector<8x128xf32> to vector<1x128xf32>
    %1092 = vector.broadcast %1091 : vector<1x128xf32> to vector<8x128xf32>
    %1093 = arith.mulf %1092, %1067 : vector<8x128xf32>
    %1094 = arith.subf %1035, %1093 : vector<8x128xf32>
    %1095 = vector.broadcast %1091 : vector<1x128xf32> to vector<8x128xf32>
    %1096 = arith.mulf %1095, %1069 : vector<8x128xf32>
    %1097 = arith.subf %1038, %1096 : vector<8x128xf32>
    %1098 = vector.extract_strided_slice %1010 {offsets = [5, 0], sizes = [1, 128], strides = [1, 1]} : vector<8x128xf32> to vector<1x128xf32>
    %1099 = vector.broadcast %1098 : vector<1x128xf32> to vector<8x128xf32>
    %1100 = arith.mulf %1099, %1067 : vector<8x128xf32>
    %1101 = arith.subf %1008, %1100 : vector<8x128xf32>
    %1102 = vector.broadcast %1098 : vector<1x128xf32> to vector<8x128xf32>
    %1103 = arith.mulf %1102, %1069 : vector<8x128xf32>
    %1104 = arith.subf %1010, %1103 : vector<8x128xf32>
    %1105 = vector.extract_strided_slice %1052 {offsets = [5, 0], sizes = [1, 128], strides = [1, 1]} : vector<8x128xf32> to vector<1x128xf32>
    %1106 = vector.broadcast %1105 : vector<1x128xf32> to vector<8x128xf32>
    %1107 = arith.mulf %1106, %1067 : vector<8x128xf32>
    %1108 = arith.subf %1049, %1107 : vector<8x128xf32>
    %1109 = vector.broadcast %1105 : vector<1x128xf32> to vector<8x128xf32>
    %1110 = arith.mulf %1109, %1069 : vector<8x128xf32>
    %1111 = arith.subf %1052, %1110 : vector<8x128xf32>
    %1112 = vector.extract_strided_slice %1059 {offsets = [5, 0], sizes = [1, 128], strides = [1, 1]} : vector<8x128xf32> to vector<1x128xf32>
    %1113 = vector.broadcast %1112 : vector<1x128xf32> to vector<8x128xf32>
    %1114 = arith.mulf %1113, %1067 : vector<8x128xf32>
    %1115 = arith.subf %1056, %1114 : vector<8x128xf32>
    %1116 = vector.broadcast %1112 : vector<1x128xf32> to vector<8x128xf32>
    %1117 = arith.mulf %1116, %1069 : vector<8x128xf32>
    %1118 = arith.subf %1059, %1117 : vector<8x128xf32>
    %1119 = vector.extract_strided_slice %1111 {offsets = [6, 0], sizes = [1, 128], strides = [1, 1]} : vector<8x128xf32> to vector<1x128xf32>
    %1120 = tpu.reciprocal %1119 {approx = true} : vector<1x128xf32> -> vector<1x128xf32>
    %1121 = arith.mulf %1119, %1120 : vector<1x128xf32>
    %cst_103 = arith.constant 2.000000e+00 : f32
    %1122 = vector.broadcast %cst_103 : f32 to vector<1x128xf32>
    %1123 = arith.subf %1122, %1121 : vector<1x128xf32>
    %1124 = arith.mulf %1120, %1123 : vector<1x128xf32>
    %1125 = vector.broadcast %1124 : vector<1x128xf32> to vector<8x128xf32>
    %1126 = arith.mulf %1108, %1125 : vector<8x128xf32>
    %1127 = vector.broadcast %1124 : vector<1x128xf32> to vector<8x128xf32>
    %1128 = arith.mulf %1111, %1127 : vector<8x128xf32>
    %1129 = vector.extract_strided_slice %1076 {offsets = [6, 0], sizes = [1, 128], strides = [1, 1]} : vector<8x128xf32> to vector<1x128xf32>
    %1130 = vector.broadcast %1129 : vector<1x128xf32> to vector<8x128xf32>
    %1131 = arith.mulf %1130, %1126 : vector<8x128xf32>
    %1132 = arith.subf %1073, %1131 : vector<8x128xf32>
    %1133 = vector.broadcast %1129 : vector<1x128xf32> to vector<8x128xf32>
    %1134 = arith.mulf %1133, %1128 : vector<8x128xf32>
    %1135 = arith.subf %1076, %1134 : vector<8x128xf32>
    %1136 = vector.extract_strided_slice %1083 {offsets = [6, 0], sizes = [1, 128], strides = [1, 1]} : vector<8x128xf32> to vector<1x128xf32>
    %1137 = vector.broadcast %1136 : vector<1x128xf32> to vector<8x128xf32>
    %1138 = arith.mulf %1137, %1126 : vector<8x128xf32>
    %1139 = arith.subf %1080, %1138 : vector<8x128xf32>
    %1140 = vector.broadcast %1136 : vector<1x128xf32> to vector<8x128xf32>
    %1141 = arith.mulf %1140, %1128 : vector<8x128xf32>
    %1142 = arith.subf %1083, %1141 : vector<8x128xf32>
    %1143 = vector.extract_strided_slice %1090 {offsets = [6, 0], sizes = [1, 128], strides = [1, 1]} : vector<8x128xf32> to vector<1x128xf32>
    %1144 = vector.broadcast %1143 : vector<1x128xf32> to vector<8x128xf32>
    %1145 = arith.mulf %1144, %1126 : vector<8x128xf32>
    %1146 = arith.subf %1087, %1145 : vector<8x128xf32>
    %1147 = vector.broadcast %1143 : vector<1x128xf32> to vector<8x128xf32>
    %1148 = arith.mulf %1147, %1128 : vector<8x128xf32>
    %1149 = arith.subf %1090, %1148 : vector<8x128xf32>
    %1150 = vector.extract_strided_slice %1097 {offsets = [6, 0], sizes = [1, 128], strides = [1, 1]} : vector<8x128xf32> to vector<1x128xf32>
    %1151 = vector.broadcast %1150 : vector<1x128xf32> to vector<8x128xf32>
    %1152 = arith.mulf %1151, %1126 : vector<8x128xf32>
    %1153 = arith.subf %1094, %1152 : vector<8x128xf32>
    %1154 = vector.broadcast %1150 : vector<1x128xf32> to vector<8x128xf32>
    %1155 = arith.mulf %1154, %1128 : vector<8x128xf32>
    %1156 = arith.subf %1097, %1155 : vector<8x128xf32>
    %1157 = vector.extract_strided_slice %1104 {offsets = [6, 0], sizes = [1, 128], strides = [1, 1]} : vector<8x128xf32> to vector<1x128xf32>
    %1158 = vector.broadcast %1157 : vector<1x128xf32> to vector<8x128xf32>
    %1159 = arith.mulf %1158, %1126 : vector<8x128xf32>
    %1160 = arith.subf %1101, %1159 : vector<8x128xf32>
    %1161 = vector.broadcast %1157 : vector<1x128xf32> to vector<8x128xf32>
    %1162 = arith.mulf %1161, %1128 : vector<8x128xf32>
    %1163 = arith.subf %1104, %1162 : vector<8x128xf32>
    %1164 = vector.extract_strided_slice %1069 {offsets = [6, 0], sizes = [1, 128], strides = [1, 1]} : vector<8x128xf32> to vector<1x128xf32>
    %1165 = vector.broadcast %1164 : vector<1x128xf32> to vector<8x128xf32>
    %1166 = arith.mulf %1165, %1126 : vector<8x128xf32>
    %1167 = arith.subf %1067, %1166 : vector<8x128xf32>
    %1168 = vector.broadcast %1164 : vector<1x128xf32> to vector<8x128xf32>
    %1169 = arith.mulf %1168, %1128 : vector<8x128xf32>
    %1170 = arith.subf %1069, %1169 : vector<8x128xf32>
    %1171 = vector.extract_strided_slice %1118 {offsets = [6, 0], sizes = [1, 128], strides = [1, 1]} : vector<8x128xf32> to vector<1x128xf32>
    %1172 = vector.broadcast %1171 : vector<1x128xf32> to vector<8x128xf32>
    %1173 = arith.mulf %1172, %1126 : vector<8x128xf32>
    %1174 = arith.subf %1115, %1173 : vector<8x128xf32>
    %1175 = vector.broadcast %1171 : vector<1x128xf32> to vector<8x128xf32>
    %1176 = arith.mulf %1175, %1128 : vector<8x128xf32>
    %1177 = arith.subf %1118, %1176 : vector<8x128xf32>
    %1178 = vector.extract_strided_slice %1177 {offsets = [7, 0], sizes = [1, 128], strides = [1, 1]} : vector<8x128xf32> to vector<1x128xf32>
    %1179 = tpu.reciprocal %1178 {approx = true} : vector<1x128xf32> -> vector<1x128xf32>
    %1180 = arith.mulf %1178, %1179 : vector<1x128xf32>
    %cst_104 = arith.constant 2.000000e+00 : f32
    %1181 = vector.broadcast %cst_104 : f32 to vector<1x128xf32>
    %1182 = arith.subf %1181, %1180 : vector<1x128xf32>
    %1183 = arith.mulf %1179, %1182 : vector<1x128xf32>
    %1184 = vector.broadcast %1183 : vector<1x128xf32> to vector<8x128xf32>
    %1185 = arith.mulf %1174, %1184 : vector<8x128xf32>
    %1186 = vector.extract_strided_slice %1135 {offsets = [7, 0], sizes = [1, 128], strides = [1, 1]} : vector<8x128xf32> to vector<1x128xf32>
    %1187 = vector.broadcast %1186 : vector<1x128xf32> to vector<8x128xf32>
    %1188 = arith.mulf %1187, %1185 : vector<8x128xf32>
    %1189 = arith.subf %1132, %1188 : vector<8x128xf32>
    %1190 = vector.extract_strided_slice %1142 {offsets = [7, 0], sizes = [1, 128], strides = [1, 1]} : vector<8x128xf32> to vector<1x128xf32>
    %1191 = vector.broadcast %1190 : vector<1x128xf32> to vector<8x128xf32>
    %1192 = arith.mulf %1191, %1185 : vector<8x128xf32>
    %1193 = arith.subf %1139, %1192 : vector<8x128xf32>
    %1194 = vector.extract_strided_slice %1149 {offsets = [7, 0], sizes = [1, 128], strides = [1, 1]} : vector<8x128xf32> to vector<1x128xf32>
    %1195 = vector.broadcast %1194 : vector<1x128xf32> to vector<8x128xf32>
    %1196 = arith.mulf %1195, %1185 : vector<8x128xf32>
    %1197 = arith.subf %1146, %1196 : vector<8x128xf32>
    %1198 = vector.extract_strided_slice %1156 {offsets = [7, 0], sizes = [1, 128], strides = [1, 1]} : vector<8x128xf32> to vector<1x128xf32>
    %1199 = vector.broadcast %1198 : vector<1x128xf32> to vector<8x128xf32>
    %1200 = arith.mulf %1199, %1185 : vector<8x128xf32>
    %1201 = arith.subf %1153, %1200 : vector<8x128xf32>
    %1202 = vector.extract_strided_slice %1163 {offsets = [7, 0], sizes = [1, 128], strides = [1, 1]} : vector<8x128xf32> to vector<1x128xf32>
    %1203 = vector.broadcast %1202 : vector<1x128xf32> to vector<8x128xf32>
    %1204 = arith.mulf %1203, %1185 : vector<8x128xf32>
    %1205 = arith.subf %1160, %1204 : vector<8x128xf32>
    %1206 = vector.extract_strided_slice %1170 {offsets = [7, 0], sizes = [1, 128], strides = [1, 1]} : vector<8x128xf32> to vector<1x128xf32>
    %1207 = vector.broadcast %1206 : vector<1x128xf32> to vector<8x128xf32>
    %1208 = arith.mulf %1207, %1185 : vector<8x128xf32>
    %1209 = arith.subf %1167, %1208 : vector<8x128xf32>
    %1210 = vector.extract_strided_slice %1128 {offsets = [7, 0], sizes = [1, 128], strides = [1, 1]} : vector<8x128xf32> to vector<1x128xf32>
    %1211 = vector.broadcast %1210 : vector<1x128xf32> to vector<8x128xf32>
    %1212 = arith.mulf %1211, %1185 : vector<8x128xf32>
    %1213 = arith.subf %1126, %1212 : vector<8x128xf32>
    %1214 = tpu.concatenate %1189, %1193, %1197, %1201, %1205, %1209, %1213, %1185 in 0 : vector<8x128xf32>, vector<8x128xf32>, vector<8x128xf32>, vector<8x128xf32>, vector<8x128xf32>, vector<8x128xf32>, vector<8x128xf32>, vector<8x128xf32> -> vector<64x128xf32>
    %c0_105 = arith.constant 0 : index
    %1215 = arith.index_cast %611 : i32 to index
    %1216 = vector.load %arg2[%c0_105, %1215] : memref<64x256xf32, #tpu.memory_space<vmem>>, vector<64x128xf32>
    tpu.vector_store %arg2[%c0_105, %1215], %1214 {strides = array<i32>} : memref<64x256xf32, #tpu.memory_space<vmem>>, vector<64x128xf32>,
    %c1_i32_106 = arith.constant 1 : i32
    return
  }
  func.func @transform_0(%arg0: i32) -> (i32, i32) {
    %c0_i32 = arith.constant 0 : i32
    %c0_i32_0 = arith.constant 0 : i32
    return %c0_i32, %arg0 : i32, i32
  }
  func.func @transform_1(%arg0: i32) -> (i32, i32) {
    %c0_i32 = arith.constant 0 : i32
    %c0_i32_0 = arith.constant 0 : i32
    return %c0_i32, %arg0 : i32, i32
  }
}

</mosaic_0001>

<llo_original>
// kernel: tpu_custom_call.1
$region0: #{tpu_custom_call.1}
  #allocation0 [shape = 'u32[]', space=smem, size = 0x4, offset = 0x4, fixed_abs, tag = 'smem constant byte address 0x4 - core index']
  #allocation1 [shape = 'u32[144,128]{1,0:T(1,128)}', space=vmem, size = 0x12000, scoped, tag = 'internal scratch']
  %s0 = inlined_call_operand.hbm [shape: f32[16,256], index: 0, kind: input, shape index: {}]
  %s1 = inlined_call_operand.hbm [shape: f32[64,256], index: 1, kind: output, shape index: {}]
  %s2 = sld [smem:[#allocation0]]
  $region18: #{tpu_custom_call.1} parent=0
    _
  %s4 = ssub.s32 1, %s2
  %s5 = scalar_select 0, %s4, %s2
  $region1: #{tpu_custom_call.1} parent=0
    #allocation2 [shape = 'u8[16384]{0}', space=vmem, size = 0x4000, scoped, tag = 'input window, operand 0, single buffered']
    #allocation3 [shape = 's32[1]{0}', space=sflag, size = 0x4, scoped, tag = 'scoped memory for tpu_custom_call.1']
    #allocation4 [shape = 's32[1]{0}', space=sflag, size = 0x4, scoped, tag = 'scoped memory for tpu_custom_call.1']
    #allocation5 [shape = 'u8[65536]{0}', space=vmem, size = 0x10000, scoped, tag = 'output window, operand 0, single buffered']
    %6 = vsyncpa [#allocation3], 0
    %7 = vsyncpa [#allocation4], 0
    // Predicated region
    $region2: #{tpu_custom_call.1} parent=1 // pred_check
      _
    $region3: #{tpu_custom_call.1} parent=1 // pred_check_branch
      %9 = sbr.rel (0) target = $region5
    $region4: #{tpu_custom_call.1} parent=1 // pred_region
      %s11 = ssub.s32 512, 512
      %12 = vsyncadd [#allocation3], %s11
      %s13 = sshll.u32 [#allocation2], 4
      %s14 = int_to_ptr.vmem [resolvable:$true] %s13
      %19 = dma.hbm_to_vmem [thread:$0]  %s0, 512, %s14, [#allocation3], 256, 256, 16
    $region5: #{tpu_custom_call.1} parent=1 // pred_fallthru
      _
    // Predicated region
    $region6: #{tpu_custom_call.1} parent=1 // pred_check
      _
    $region7: #{tpu_custom_call.1} parent=1 // pred_check_branch
      %21 = sbr.rel (0) target = $region9
    $region8: #{tpu_custom_call.1} parent=1 // pred_region
      %22 = dma.done [#allocation3], 512
    $region9: #{tpu_custom_call.1} parent=1 // pred_fallthru
      _
    %v23 = vlaneseq
    %v24 = vshrl.u32 %v23, 7
    %vm25 = vcmp.eq.s32.totalorder %v24, 0
    %v26 = vld [vmem:[#allocation2] sm:$0xff]
    %v27 = vld [vmem:[#allocation2 + $0x10] sm:$0xff]
    %v29 = vcombine.high %v26, %v26
    %v31 = vunpack.c.l.s4 1966171168
    %v32 = vunpack.c.0.s8 %v31
    %v33 = vlaneseq
    %v34 = vshrl.u32 %v33, 7
    %v35 = vsub.s32 %v32, %v34
    %v36 = vrot.slane %v26, %v35
    %v38 = vunpack.c.l.s4 1966171168
    %v39 = vunpack.c.0.s8 %v38
    %v40 = vlaneseq
    %v41 = vshrl.u32 %v40, 7
    %v42 = vsub.s32 %v39, %v41
    %v43 = vrot.slane %v29, %v42
    %v44 = vcombine.high %v36, %v36
    %v45 = vcombine.high %v43, %v43
    %v47 = vunpack.c.l.s4 1966171168
    %v48 = vunpack.c.0.s8 %v47
    %v49 = vlaneseq
    %v50 = vshrl.u32 %v49, 7
    %v51 = vsub.s32 %v48, %v50
    %v52 = vrot.slane %v36, %v51
    %v54 = vunpack.c.l.s4 1966171168
    %v55 = vunpack.c.0.s8 %v54
    %v56 = vlaneseq
    %v57 = vshrl.u32 %v56, 7
    %v58 = vsub.s32 %v55, %v57
    %v59 = vrot.slane %v43, %v58
    %v61 = vunpack.c.l.s4 1966171168
    %v62 = vunpack.c.0.s8 %v61
    %v63 = vlaneseq
    %v64 = vshrl.u32 %v63, 7
    %v65 = vsub.s32 %v62, %v64
    %v66 = vrot.slane %v44, %v65
    %v68 = vunpack.c.l.s4 1966171168
    %v69 = vunpack.c.0.s8 %v68
    %v70 = vlaneseq
    %v71 = vshrl.u32 %v70, 7
    %v72 = vsub.s32 %v69, %v71
    %v73 = vrot.slane %v45, %v72
    %v74 = vcombine.high %v52, %v52
    %v75 = vcombine.high %v59, %v59
    %v76 = vcombine.high %v66, %v66
    %v77 = vcombine.high %v73, %v73
    %v78 = vlaneseq
    %v79 = vshrl.u32 %v78, 7
    %v80 = vsub.s32 0, %v79
    %v81 = vrot.slane %v52, %v80
    %v82 = vlaneseq
    %v83 = vshrl.u32 %v82, 7
    %v84 = vsub.s32 0, %v83
    %v85 = vrot.slane %v66, %v84
    %v86 = vlaneseq
    %v87 = vshrl.u32 %v86, 7
    %v88 = vsub.s32 0, %v87
    %v89 = vrot.slane %v74, %v88
    %v90 = vlaneseq
    %v91 = vshrl.u32 %v90, 7
    %v92 = vsub.s32 0, %v91
    %v93 = vrot.slane %v76, %v92
    %v94 = vlaneseq
    %v95 = vshrl.u32 %v94, 7
    %v96 = vsub.s32 0, %v95
    %v97 = vrot.slane %v59, %v96
    %v98 = vlaneseq
    %v99 = vshrl.u32 %v98, 7
    %v100 = vsub.s32 0, %v99
    %v101 = vrot.slane %v73, %v100
    %v102 = vlaneseq
    %v103 = vshrl.u32 %v102, 7
    %v104 = vsub.s32 0, %v103
    %v105 = vrot.slane %v75, %v104
    %v106 = vlaneseq
    %v107 = vshrl.u32 %v106, 7
    %v108 = vsub.s32 0, %v107
    %v109 = vrot.slane %v77, %v108
    %v118 = vsub.f32 %v81, %v26
    %v119 = vsub.f32 %v85, %v26
    %v120 = vsub.f32 %v89, %v26
    %v121 = vsub.f32 %v93, %v26
    %v122 = vsub.f32 %v97, %v26
    %v123 = vsub.f32 %v101, %v26
    %v124 = vsub.f32 %v105, %v26
    %v125 = vsub.f32 %v109, %v26
    %v126 = vmul.f32 %v118, %v118
    %v127 = vmul.f32 %v119, %v119
    %v128 = vmul.f32 %v120, %v120
    %v129 = vmul.f32 %v121, %v121
    %v130 = vmul.f32 %v122, %v122
    %v131 = vmul.f32 %v123, %v123
    %v132 = vmul.f32 %v124, %v124
    %v133 = vmul.f32 %v125, %v125
    %v135 = vcombine.high %v27, %v27
    %v137 = vunpack.c.l.s4 1966171168
    %v138 = vunpack.c.0.s8 %v137
    %v139 = vlaneseq
    %v140 = vshrl.u32 %v139, 7
    %v141 = vsub.s32 %v138, %v140
    %v142 = vrot.slane %v27, %v141
    %v144 = vunpack.c.l.s4 1966171168
    %v145 = vunpack.c.0.s8 %v144
    %v146 = vlaneseq
    %v147 = vshrl.u32 %v146, 7
    %v148 = vsub.s32 %v145, %v147
    %v149 = vrot.slane %v135, %v148
    %v150 = vcombine.high %v142, %v142
    %v151 = vcombine.high %v149, %v149
    %v153 = vunpack.c.l.s4 1966171168
    %v154 = vunpack.c.0.s8 %v153
    %v155 = vlaneseq
    %v156 = vshrl.u32 %v155, 7
    %v157 = vsub.s32 %v154, %v156
    %v158 = vrot.slane %v142, %v157
    %v160 = vunpack.c.l.s4 1966171168
    %v161 = vunpack.c.0.s8 %v160
    %v162 = vlaneseq
    %v163 = vshrl.u32 %v162, 7
    %v164 = vsub.s32 %v161, %v163
    %v165 = vrot.slane %v149, %v164
    %v167 = vunpack.c.l.s4 1966171168
    %v168 = vunpack.c.0.s8 %v167
    %v169 = vlaneseq
    %v170 = vshrl.u32 %v169, 7
    %v171 = vsub.s32 %v168, %v170
    %v172 = vrot.slane %v150, %v171
    %v174 = vunpack.c.l.s4 1966171168
    %v175 = vunpack.c.0.s8 %v174
    %v176 = vlaneseq
    %v177 = vshrl.u32 %v176, 7
    %v178 = vsub.s32 %v175, %v177
    %v179 = vrot.slane %v151, %v178
    %v180 = vcombine.high %v158, %v158
    %v181 = vcombine.high %v165, %v165
    %v182 = vcombine.high %v172, %v172
    %v183 = vcombine.high %v179, %v179
    %v184 = vlaneseq
    %v185 = vshrl.u32 %v184, 7
    %v186 = vsub.s32 0, %v185
    %v187 = vrot.slane %v158, %v186
    %v188 = vlaneseq
    %v189 = vshrl.u32 %v188, 7
    %v190 = vsub.s32 0, %v189
    %v191 = vrot.slane %v172, %v190
    %v192 = vlaneseq
    %v193 = vshrl.u32 %v192, 7
    %v194 = vsub.s32 0, %v193
    %v195 = vrot.slane %v180, %v194
    %v196 = vlaneseq
    %v197 = vshrl.u32 %v196, 7
    %v198 = vsub.s32 0, %v197
    %v199 = vrot.slane %v182, %v198
    %v200 = vlaneseq
    %v201 = vshrl.u32 %v200, 7
    %v202 = vsub.s32 0, %v201
    %v203 = vrot.slane %v165, %v202
    %v204 = vlaneseq
    %v205 = vshrl.u32 %v204, 7
    %v206 = vsub.s32 0, %v205
    %v207 = vrot.slane %v179, %v206
    %v208 = vlaneseq
    %v209 = vshrl.u32 %v208, 7
    %v210 = vsub.s32 0, %v209
    %v211 = vrot.slane %v181, %v210
    %v212 = vlaneseq
    %v213 = vshrl.u32 %v212, 7
    %v214 = vsub.s32 0, %v213
    %v215 = vrot.slane %v183, %v214
    %v224 = vsub.f32 %v187, %v27
    %v225 = vsub.f32 %v191, %v27
    %v226 = vsub.f32 %v195, %v27
    %v227 = vsub.f32 %v199, %v27
    %v228 = vsub.f32 %v203, %v27
    %v229 = vsub.f32 %v207, %v27
    %v230 = vsub.f32 %v211, %v27
    %v231 = vsub.f32 %v215, %v27
    %v232 = vmul.f32 %v224, %v224
    %v233 = vmul.f32 %v225, %v225
    %v234 = vmul.f32 %v226, %v226
    %v235 = vmul.f32 %v227, %v227
    %v236 = vmul.f32 %v228, %v228
    %v237 = vmul.f32 %v229, %v229
    %v238 = vmul.f32 %v230, %v230
    %v239 = vmul.f32 %v231, %v231
    %v240 = vadd.f32 %v126, %v232
    %v241 = vadd.f32 %v127, %v233
    %v242 = vadd.f32 %v128, %v234
    %v243 = vadd.f32 %v129, %v235
    %v244 = vadd.f32 %v130, %v236
    %v245 = vadd.f32 %v131, %v237
    %v246 = vadd.f32 %v132, %v238
    %v247 = vadd.f32 %v133, %v239
    %v248 = vrsqrt.pop %v240
    %v249 = vmul.f32 %v240, %v248
    %vm250 = vcmp.eq.f32.partialorder %v240, inf
    %v251 = vsel %vm250, %v240, %v249
    %vm252 = vcmp.eq.f32.partialorder %v240, 0.0
    %v253 = vand.u32 %v240, 2147483648
    %v254 = vsel %vm252, %v253, %v251
    %v255 = vrsqrt.pop %v241
    %v256 = vmul.f32 %v241, %v255
    %vm257 = vcmp.eq.f32.partialorder %v241, inf
    %v258 = vsel %vm257, %v241, %v256
    %vm259 = vcmp.eq.f32.partialorder %v241, 0.0
    %v260 = vand.u32 %v241, 2147483648
    %v261 = vsel %vm259, %v260, %v258
    %v262 = vrsqrt.pop %v242
    %v263 = vmul.f32 %v242, %v262
    %vm264 = vcmp.eq.f32.partialorder %v242, inf
    %v265 = vsel %vm264, %v242, %v263
    %vm266 = vcmp.eq.f32.partialorder %v242, 0.0
    %v267 = vand.u32 %v242, 2147483648
    %v268 = vsel %vm266, %v267, %v265
    %v269 = vrsqrt.pop %v243
    %v270 = vmul.f32 %v243, %v269
    %vm271 = vcmp.eq.f32.partialorder %v243, inf
    %v272 = vsel %vm271, %v243, %v270
    %vm273 = vcmp.eq.f32.partialorder %v243, 0.0
    %v274 = vand.u32 %v243, 2147483648
    %v275 = vsel %vm273, %v274, %v272
    %v276 = vrsqrt.pop %v244
    %v277 = vmul.f32 %v244, %v276
    %vm278 = vcmp.eq.f32.partialorder %v244, inf
    %v279 = vsel %vm278, %v244, %v277
    %vm280 = vcmp.eq.f32.partialorder %v244, 0.0
    %v281 = vand.u32 %v244, 2147483648
    %v282 = vsel %vm280, %v281, %v279
    %v283 = vrsqrt.pop %v245
    %v284 = vmul.f32 %v245, %v283
    %vm285 = vcmp.eq.f32.partialorder %v245, inf
    %v286 = vsel %vm285, %v245, %v284
    %vm287 = vcmp.eq.f32.partialorder %v245, 0.0
    %v288 = vand.u32 %v245, 2147483648
    %v289 = vsel %vm287, %v288, %v286
    %v290 = vrsqrt.pop %v246
    %v291 = vmul.f32 %v246, %v290
    %vm292 = vcmp.eq.f32.partialorder %v246, inf
    %v293 = vsel %vm292, %v246, %v291
    %vm294 = vcmp.eq.f32.partialorder %v246, 0.0
    %v295 = vand.u32 %v246, 2147483648
    %v296 = vsel %vm294, %v295, %v293
    %v297 = vrsqrt.pop %v247
    %v298 = vmul.f32 %v247, %v297
    %vm299 = vcmp.eq.f32.partialorder %v247, inf
    %v300 = vsel %vm299, %v247, %v298
    %vm301 = vcmp.eq.f32.partialorder %v247, 0.0
    %v302 = vand.u32 %v247, 2147483648
    %v303 = vsel %vm301, %v302, %v300
    %v304 = vmul.f32 %v254, -0.5
    %v305 = vmul.f32 %v261, -0.5
    %v306 = vmul.f32 %v268, -0.5
    %v307 = vmul.f32 %v275, -0.5
    %v308 = vmul.f32 %v282, -0.5
    %v309 = vmul.f32 %v289, -0.5
    %v310 = vmul.f32 %v296, -0.5
    %v311 = vmul.f32 %v303, -0.5
    %v312 = vmul.f32 %v304, 1.442695
    %v313 = vpow.pop %v312
    %v314 = vmul.f32 %v305, 1.442695
    %v315 = vpow.pop %v314
    %v316 = vmul.f32 %v306, 1.442695
    %v317 = vpow.pop %v316
    %v318 = vmul.f32 %v307, 1.442695
    %v319 = vpow.pop %v318
    %v320 = vmul.f32 %v308, 1.442695
    %v321 = vpow.pop %v320
    %v322 = vmul.f32 %v309, 1.442695
    %v323 = vpow.pop %v322
    %v324 = vmul.f32 %v310, 1.442695
    %v325 = vpow.pop %v324
    %v326 = vmul.f32 %v311, 1.442695
    %v327 = vpow.pop %v326
    %v328 = vmul.f32 %v313, 2.25
    %v329 = vmul.f32 %v315, 2.25
    %v330 = vmul.f32 %v317, 2.25
    %v331 = vmul.f32 %v319, 2.25
    %v332 = vmul.f32 %v321, 2.25
    %v333 = vmul.f32 %v323, 2.25
    %v334 = vmul.f32 %v325, 2.25
    %v335 = vmul.f32 %v327, 2.25
    %v336 = vadd.f32 %v328, 0.25
    %v337 = vsel %vm25, %v336, %v328
    %vm338 = vcmp.eq.s32.totalorder %v24, 1
    %v339 = vadd.f32 %v329, 0.25
    %v340 = vsel %vm338, %v339, %v329
    %vm341 = vcmp.eq.s32.totalorder %v24, 2
    %v342 = vadd.f32 %v330, 0.25
    %v343 = vsel %vm341, %v342, %v330
    %vm344 = vcmp.eq.s32.totalorder %v24, 3
    %v345 = vadd.f32 %v331, 0.25
    %v346 = vsel %vm344, %v345, %v331
    %vm347 = vcmp.eq.s32.totalorder %v24, 4
    %v348 = vadd.f32 %v332, 0.25
    %v349 = vsel %vm347, %v348, %v332
    %vm350 = vcmp.eq.s32.totalorder %v24, 5
    %v351 = vadd.f32 %v333, 0.25
    %v352 = vsel %vm350, %v351, %v333
    %vm353 = vcmp.eq.s32.totalorder %v24, 6
    %v354 = vadd.f32 %v334, 0.25
    %v355 = vsel %vm353, %v354, %v334
    %vm356 = vcmp.eq.s32.totalorder %v24, 7
    %v357 = vadd.f32 %v335, 0.25
    %v358 = vsel %vm356, %v357, %v335
    %v359 = vrcp.pop %v337
    %v360 = vmul.f32 %v337, %v359
    %v361 = vsub.f32 2.0, %v360
    %v362 = vmul.f32 %v359, %v361
    %v363 = vlaneseq
    %v364 = vshrl.u32 %v363, 7
    %v365 = vsub.s32 0, %v364
    %v366 = vrot.slane %v362, %v365
    %v367 = vmul.f32 %v337, %v366
    %v368 = vsel %vm25, %v366, 0.0
    %v369 = vlaneseq
    %v370 = vshrl.u32 %v369, 7
    %v371 = vsub.s32 0, %v370
    %v372 = vrot.slane %v340, %v371
    %v373 = vmul.f32 %v372, %v367
    %v374 = vsub.f32 %v340, %v373
    %v375 = vmul.f32 %v340, %v362
    %v376 = vsub.f32 0.0, %v375
    %v377 = vlaneseq
    %v378 = vshrl.u32 %v377, 7
    %v379 = vsub.s32 0, %v378
    %v380 = vrot.slane %v376, %v379
    %v381 = vsel %vm25, %v380, 0.0
    %v382 = vsel %vm338, 1.0, %v381
    %v383 = vlaneseq
    %v384 = vshrl.u32 %v383, 7
    %v385 = vsub.s32 0, %v384
    %v386 = vrot.slane %v343, %v385
    %v387 = vmul.f32 %v386, %v367
    %v388 = vsub.f32 %v343, %v387
    %v389 = vmul.f32 %v343, %v362
    %v390 = vsub.f32 0.0, %v389
    %v391 = vlaneseq
    %v392 = vshrl.u32 %v391, 7
    %v393 = vsub.s32 0, %v392
    %v394 = vrot.slane %v390, %v393
    %v395 = vsel %vm25, %v394, 0.0
    %v396 = vsel %vm341, 1.0, %v395
    %v397 = vlaneseq
    %v398 = vshrl.u32 %v397, 7
    %v399 = vsub.s32 0, %v398
    %v400 = vrot.slane %v346, %v399
    %v401 = vmul.f32 %v400, %v367
    %v402 = vsub.f32 %v346, %v401
    %v403 = vmul.f32 %v346, %v362
    %v404 = vsub.f32 0.0, %v403
    %v405 = vlaneseq
    %v406 = vshrl.u32 %v405, 7
    %v407 = vsub.s32 0, %v406
    %v408 = vrot.slane %v404, %v407
    %v409 = vsel %vm25, %v408, 0.0
    %v410 = vsel %vm344, 1.0, %v409
    %v411 = vlaneseq
    %v412 = vshrl.u32 %v411, 7
    %v413 = vsub.s32 0, %v412
    %v414 = vrot.slane %v349, %v413
    %v415 = vmul.f32 %v414, %v367
    %v416 = vsub.f32 %v349, %v415
    %v417 = vmul.f32 %v349, %v362
    %v418 = vsub.f32 0.0, %v417
    %v419 = vlaneseq
    %v420 = vshrl.u32 %v419, 7
    %v421 = vsub.s32 0, %v420
    %v422 = vrot.slane %v418, %v421
    %v423 = vsel %vm25, %v422, 0.0
    %v424 = vsel %vm347, 1.0, %v423
    %v425 = vlaneseq
    %v426 = vshrl.u32 %v425, 7
    %v427 = vsub.s32 0, %v426
    %v428 = vrot.slane %v352, %v427
    %v429 = vmul.f32 %v428, %v367
    %v430 = vsub.f32 %v352, %v429
    %v431 = vmul.f32 %v352, %v362
    %v432 = vsub.f32 0.0, %v431
    %v433 = vlaneseq
    %v434 = vshrl.u32 %v433, 7
    %v435 = vsub.s32 0, %v434
    %v436 = vrot.slane %v432, %v435
    %v437 = vsel %vm25, %v436, 0.0
    %v438 = vsel %vm350, 1.0, %v437
    %v439 = vlaneseq
    %v440 = vshrl.u32 %v439, 7
    %v441 = vsub.s32 0, %v440
    %v442 = vrot.slane %v355, %v441
    %v443 = vmul.f32 %v442, %v367
    %v444 = vsub.f32 %v355, %v443
    %v445 = vmul.f32 %v355, %v362
    %v446 = vsub.f32 0.0, %v445
    %v447 = vlaneseq
    %v448 = vshrl.u32 %v447, 7
    %v449 = vsub.s32 0, %v448
    %v450 = vrot.slane %v446, %v449
    %v451 = vsel %vm25, %v450, 0.0
    %v452 = vsel %vm353, 1.0, %v451
    %v453 = vlaneseq
    %v454 = vshrl.u32 %v453, 7
    %v455 = vsub.s32 0, %v454
    %v456 = vrot.slane %v358, %v455
    %v457 = vmul.f32 %v456, %v367
    %v458 = vsub.f32 %v358, %v457
    %v459 = vmul.f32 %v358, %v362
    %v460 = vsub.f32 0.0, %v459
    %v461 = vlaneseq
    %v462 = vshrl.u32 %v461, 7
    %v463 = vsub.s32 0, %v462
    %v464 = vrot.slane %v460, %v463
    %v465 = vsel %vm25, %v464, 0.0
    %v466 = vsel %vm356, 1.0, %v465
    %v467 = vrcp.pop %v374
    %v468 = vmul.f32 %v374, %v467
    %v469 = vsub.f32 2.0, %v468
    %v470 = vmul.f32 %v467, %v469
    %v471 = vlaneseq
    %v472 = vshrl.u32 %v471, 7
    %v473 = vsub.s32 1, %v472
    %v474 = vrot.slane %v470, %v473
    %v475 = vmul.f32 %v382, %v474
    %v476 = vmul.f32 %v374, %v474
    %v477 = vlaneseq
    %v478 = vshrl.u32 %v477, 7
    %v479 = vsub.s32 1, %v478
    %v480 = vrot.slane %v367, %v479
    %v481 = vmul.f32 %v480, %v475
    %v482 = vsub.f32 %v368, %v481
    %v483 = vmul.f32 %v480, %v476
    %v484 = vsub.f32 %v367, %v483
    %v485 = vlaneseq
    %v486 = vshrl.u32 %v485, 7
    %v487 = vsub.s32 1, %v486
    %v488 = vrot.slane %v388, %v487
    %v489 = vmul.f32 %v488, %v475
    %v490 = vsub.f32 %v396, %v489
    %v491 = vmul.f32 %v488, %v476
    %v492 = vsub.f32 %v388, %v491
    %v493 = vlaneseq
    %v494 = vshrl.u32 %v493, 7
    %v495 = vsub.s32 1, %v494
    %v496 = vrot.slane %v402, %v495
    %v497 = vmul.f32 %v496, %v475
    %v498 = vsub.f32 %v410, %v497
    %v499 = vmul.f32 %v496, %v476
    %v500 = vsub.f32 %v402, %v499
    %v501 = vlaneseq
    %v502 = vshrl.u32 %v501, 7
    %v503 = vsub.s32 1, %v502
    %v504 = vrot.slane %v416, %v503
    %v505 = vmul.f32 %v504, %v475
    %v506 = vsub.f32 %v424, %v505
    %v507 = vmul.f32 %v504, %v476
    %v508 = vsub.f32 %v416, %v507
    %v509 = vlaneseq
    %v510 = vshrl.u32 %v509, 7
    %v511 = vsub.s32 1, %v510
    %v512 = vrot.slane %v430, %v511
    %v513 = vmul.f32 %v512, %v475
    %v514 = vsub.f32 %v438, %v513
    %v515 = vmul.f32 %v512, %v476
    %v516 = vsub.f32 %v430, %v515
    %v517 = vlaneseq
    %v518 = vshrl.u32 %v517, 7
    %v519 = vsub.s32 1, %v518
    %v520 = vrot.slane %v444, %v519
    %v521 = vmul.f32 %v520, %v475
    %v522 = vsub.f32 %v452, %v521
    %v523 = vmul.f32 %v520, %v476
    %v524 = vsub.f32 %v444, %v523
    %v525 = vlaneseq
    %v526 = vshrl.u32 %v525, 7
    %v527 = vsub.s32 1, %v526
    %v528 = vrot.slane %v458, %v527
    %v529 = vmul.f32 %v528, %v475
    %v530 = vsub.f32 %v466, %v529
    %v531 = vmul.f32 %v528, %v476
    %v532 = vsub.f32 %v458, %v531
    %v533 = vrcp.pop %v492
    %v534 = vmul.f32 %v492, %v533
    %v535 = vsub.f32 2.0, %v534
    %v536 = vmul.f32 %v533, %v535
    %v537 = vlaneseq
    %v538 = vshrl.u32 %v537, 7
    %v539 = vsub.s32 2, %v538
    %v540 = vrot.slane %v536, %v539
    %v541 = vmul.f32 %v490, %v540
    %v542 = vmul.f32 %v492, %v540
    %v543 = vlaneseq
    %v544 = vshrl.u32 %v543, 7
    %v545 = vsub.s32 2, %v544
    %v546 = vrot.slane %v484, %v545
    %v547 = vmul.f32 %v546, %v541
    %v548 = vsub.f32 %v482, %v547
    %v549 = vmul.f32 %v546, %v542
    %v550 = vsub.f32 %v484, %v549
    %v551 = vlaneseq
    %v552 = vshrl.u32 %v551, 7
    %v553 = vsub.s32 2, %v552
    %v554 = vrot.slane %v476, %v553
    %v555 = vmul.f32 %v554, %v541
    %v556 = vsub.f32 %v475, %v555
    %v557 = vmul.f32 %v554, %v542
    %v558 = vsub.f32 %v476, %v557
    %v559 = vlaneseq
    %v560 = vshrl.u32 %v559, 7
    %v561 = vsub.s32 2, %v560
    %v562 = vrot.slane %v500, %v561
    %v563 = vmul.f32 %v562, %v541
    %v564 = vsub.f32 %v498, %v563
    %v565 = vmul.f32 %v562, %v542
    %v566 = vsub.f32 %v500, %v565
    %v567 = vlaneseq
    %v568 = vshrl.u32 %v567, 7
    %v569 = vsub.s32 2, %v568
    %v570 = vrot.slane %v508, %v569
    %v571 = vmul.f32 %v570, %v541
    %v572 = vsub.f32 %v506, %v571
    %v573 = vmul.f32 %v570, %v542
    %v574 = vsub.f32 %v508, %v573
    %v575 = vlaneseq
    %v576 = vshrl.u32 %v575, 7
    %v577 = vsub.s32 2, %v576
    %v578 = vrot.slane %v516, %v577
    %v579 = vmul.f32 %v578, %v541
    %v580 = vsub.f32 %v514, %v579
    %v581 = vmul.f32 %v578, %v542
    %v582 = vsub.f32 %v516, %v581
    %v583 = vlaneseq
    %v584 = vshrl.u32 %v583, 7
    %v585 = vsub.s32 2, %v584
    %v586 = vrot.slane %v524, %v585
    %v587 = vmul.f32 %v586, %v541
    %v588 = vsub.f32 %v522, %v587
    %v589 = vmul.f32 %v586, %v542
    %v590 = vsub.f32 %v524, %v589
    %v591 = vlaneseq
    %v592 = vshrl.u32 %v591, 7
    %v593 = vsub.s32 2, %v592
    %v594 = vrot.slane %v532, %v593
    %v595 = vmul.f32 %v594, %v541
    %v596 = vsub.f32 %v530, %v595
    %v597 = vmul.f32 %v594, %v542
    %v598 = vsub.f32 %v532, %v597
    %v599 = vrcp.pop %v566
    %v600 = vmul.f32 %v566, %v599
    %v601 = vsub.f32 2.0, %v600
    %v602 = vmul.f32 %v599, %v601
    %v603 = vlaneseq
    %v604 = vshrl.u32 %v603, 7
    %v605 = vsub.s32 3, %v604
    %v606 = vrot.slane %v602, %v605
    %v607 = vmul.f32 %v564, %v606
    %v608 = vmul.f32 %v566, %v606
    %v609 = vlaneseq
    %v610 = vshrl.u32 %v609, 7
    %v611 = vsub.s32 3, %v610
    %v612 = vrot.slane %v550, %v611
    %v613 = vmul.f32 %v612, %v607
    %v614 = vsub.f32 %v548, %v613
    %v615 = vmul.f32 %v612, %v608
    %v616 = vsub.f32 %v550, %v615
    %v617 = vlaneseq
    %v618 = vshrl.u32 %v617, 7
    %v619 = vsub.s32 3, %v618
    %v620 = vrot.slane %v558, %v619
    %v621 = vmul.f32 %v620, %v607
    %v622 = vsub.f32 %v556, %v621
    %v623 = vmul.f32 %v620, %v608
    %v624 = vsub.f32 %v558, %v623
    %v625 = vlaneseq
    %v626 = vshrl.u32 %v625, 7
    %v627 = vsub.s32 3, %v626
    %v628 = vrot.slane %v542, %v627
    %v629 = vmul.f32 %v628, %v607
    %v630 = vsub.f32 %v541, %v629
    %v631 = vmul.f32 %v628, %v608
    %v632 = vsub.f32 %v542, %v631
    %v633 = vlaneseq
    %v634 = vshrl.u32 %v633, 7
    %v635 = vsub.s32 3, %v634
    %v636 = vrot.slane %v574, %v635
    %v637 = vmul.f32 %v636, %v607
    %v638 = vsub.f32 %v572, %v637
    %v639 = vmul.f32 %v636, %v608
    %v640 = vsub.f32 %v574, %v639
    %v641 = vlaneseq
    %v642 = vshrl.u32 %v641, 7
    %v643 = vsub.s32 3, %v642
    %v644 = vrot.slane %v582, %v643
    %v645 = vmul.f32 %v644, %v607
    %v646 = vsub.f32 %v580, %v645
    %v647 = vmul.f32 %v644, %v608
    %v648 = vsub.f32 %v582, %v647
    %v649 = vlaneseq
    %v650 = vshrl.u32 %v649, 7
    %v651 = vsub.s32 3, %v650
    %v652 = vrot.slane %v590, %v651
    %v653 = vmul.f32 %v652, %v607
    %v654 = vsub.f32 %v588, %v653
    %v655 = vmul.f32 %v652, %v608
    %v656 = vsub.f32 %v590, %v655
    %v657 = vlaneseq
    %v658 = vshrl.u32 %v657, 7
    %v659 = vsub.s32 3, %v658
    %v660 = vrot.slane %v598, %v659
    %v661 = vmul.f32 %v660, %v607
    %v662 = vsub.f32 %v596, %v661
    %v663 = vmul.f32 %v660, %v608
    %v664 = vsub.f32 %v598, %v663
    %v665 = vrcp.pop %v640
    %v666 = vmul.f32 %v640, %v665
    %v667 = vsub.f32 2.0, %v666
    %v668 = vmul.f32 %v665, %v667
    %v669 = vlaneseq
    %v670 = vshrl.u32 %v669, 7
    %v671 = vsub.s32 4, %v670
    %v672 = vrot.slane %v668, %v671
    %v673 = vmul.f32 %v638, %v672
    %v674 = vmul.f32 %v640, %v672
    %v675 = vlaneseq
    %v676 = vshrl.u32 %v675, 7
    %v677 = vsub.s32 4, %v676
    %v678 = vrot.slane %v616, %v677
    %v679 = vmul.f32 %v678, %v673
    %v680 = vsub.f32 %v614, %v679
    %v681 = vmul.f32 %v678, %v674
    %v682 = vsub.f32 %v616, %v681
    %v683 = vlaneseq
    %v684 = vshrl.u32 %v683, 7
    %v685 = vsub.s32 4, %v684
    %v686 = vrot.slane %v624, %v685
    %v687 = vmul.f32 %v686, %v673
    %v688 = vsub.f32 %v622, %v687
    %v689 = vmul.f32 %v686, %v674
    %v690 = vsub.f32 %v624, %v689
    %v691 = vlaneseq
    %v692 = vshrl.u32 %v691, 7
    %v693 = vsub.s32 4, %v692
    %v694 = vrot.slane %v632, %v693
    %v695 = vmul.f32 %v694, %v673
    %v696 = vsub.f32 %v630, %v695
    %v697 = vmul.f32 %v694, %v674
    %v698 = vsub.f32 %v632, %v697
    %v699 = vlaneseq
    %v700 = vshrl.u32 %v699, 7
    %v701 = vsub.s32 4, %v700
    %v702 = vrot.slane %v608, %v701
    %v703 = vmul.f32 %v702, %v673
    %v704 = vsub.f32 %v607, %v703
    %v705 = vmul.f32 %v702, %v674
    %v706 = vsub.f32 %v608, %v705
    %v707 = vlaneseq
    %v708 = vshrl.u32 %v707, 7
    %v709 = vsub.s32 4, %v708
    %v710 = vrot.slane %v648, %v709
    %v711 = vmul.f32 %v710, %v673
    %v712 = vsub.f32 %v646, %v711
    %v713 = vmul.f32 %v710, %v674
    %v714 = vsub.f32 %v648, %v713
    %v715 = vlaneseq
    %v716 = vshrl.u32 %v715, 7
    %v717 = vsub.s32 4, %v716
    %v718 = vrot.slane %v656, %v717
    %v719 = vmul.f32 %v718, %v673
    %v720 = vsub.f32 %v654, %v719
    %v721 = vmul.f32 %v718, %v674
    %v722 = vsub.f32 %v656, %v721
    %v723 = vlaneseq
    %v724 = vshrl.u32 %v723, 7
    %v725 = vsub.s32 4, %v724
    %v726 = vrot.slane %v664, %v725
    %v727 = vmul.f32 %v726, %v673
    %v728 = vsub.f32 %v662, %v727
    %v729 = vmul.f32 %v726, %v674
    %v730 = vsub.f32 %v664, %v729
    %v731 = vrcp.pop %v714
    %v732 = vmul.f32 %v714, %v731
    %v733 = vsub.f32 2.0, %v732
    %v734 = vmul.f32 %v731, %v733
    %v735 = vlaneseq
    %v736 = vshrl.u32 %v735, 7
    %v737 = vsub.s32 5, %v736
    %v738 = vrot.slane %v734, %v737
    %v739 = vmul.f32 %v712, %v738
    %v740 = vmul.f32 %v714, %v738
    %v741 = vlaneseq
    %v742 = vshrl.u32 %v741, 7
    %v743 = vsub.s32 5, %v742
    %v744 = vrot.slane %v682, %v743
    %v745 = vmul.f32 %v744, %v739
    %v746 = vsub.f32 %v680, %v745
    %v747 = vmul.f32 %v744, %v740
    %v748 = vsub.f32 %v682, %v747
    %v749 = vlaneseq
    %v750 = vshrl.u32 %v749, 7
    %v751 = vsub.s32 5, %v750
    %v752 = vrot.slane %v690, %v751
    %v753 = vmul.f32 %v752, %v739
    %v754 = vsub.f32 %v688, %v753
    %v755 = vmul.f32 %v752, %v740
    %v756 = vsub.f32 %v690, %v755
    %v757 = vlaneseq
    %v758 = vshrl.u32 %v757, 7
    %v759 = vsub.s32 5, %v758
    %v760 = vrot.slane %v698, %v759
    %v761 = vmul.f32 %v760, %v739
    %v762 = vsub.f32 %v696, %v761
    %v763 = vmul.f32 %v760, %v740
    %v764 = vsub.f32 %v698, %v763
    %v765 = vlaneseq
    %v766 = vshrl.u32 %v765, 7
    %v767 = vsub.s32 5, %v766
    %v768 = vrot.slane %v706, %v767
    %v769 = vmul.f32 %v768, %v739
    %v770 = vsub.f32 %v704, %v769
    %v771 = vmul.f32 %v768, %v740
    %v772 = vsub.f32 %v706, %v771
    %v773 = vlaneseq
    %v774 = vshrl.u32 %v773, 7
    %v775 = vsub.s32 5, %v774
    %v776 = vrot.slane %v674, %v775
    %v777 = vmul.f32 %v776, %v739
    %v778 = vsub.f32 %v673, %v777
    %v779 = vmul.f32 %v776, %v740
    %v780 = vsub.f32 %v674, %v779
    %v781 = vlaneseq
    %v782 = vshrl.u32 %v781, 7
    %v783 = vsub.s32 5, %v782
    %v784 = vrot.slane %v722, %v783
    %v785 = vmul.f32 %v784, %v739
    %v786 = vsub.f32 %v720, %v785
    %v787 = vmul.f32 %v784, %v740
    %v788 = vsub.f32 %v722, %v787
    %v789 = vlaneseq
    %v790 = vshrl.u32 %v789, 7
    %v791 = vsub.s32 5, %v790
    %v792 = vrot.slane %v730, %v791
    %v793 = vmul.f32 %v792, %v739
    %v794 = vsub.f32 %v728, %v793
    %v795 = vmul.f32 %v792, %v740
    %v796 = vsub.f32 %v730, %v795
    %v797 = vrcp.pop %v788
    %v798 = vmul.f32 %v788, %v797
    %v799 = vsub.f32 2.0, %v798
    %v800 = vmul.f32 %v797, %v799
    %v801 = vlaneseq
    %v802 = vshrl.u32 %v801, 7
    %v803 = vsub.s32 6, %v802
    %v804 = vrot.slane %v800, %v803
    %v805 = vmul.f32 %v786, %v804
    %v806 = vmul.f32 %v788, %v804
    %v807 = vlaneseq
    %v808 = vshrl.u32 %v807, 7
    %v809 = vsub.s32 6, %v808
    %v810 = vrot.slane %v748, %v809
    %v811 = vmul.f32 %v810, %v805
    %v812 = vsub.f32 %v746, %v811
    %v813 = vmul.f32 %v810, %v806
    %v814 = vsub.f32 %v748, %v813
    %v815 = vlaneseq
    %v816 = vshrl.u32 %v815, 7
    %v817 = vsub.s32 6, %v816
    %v818 = vrot.slane %v756, %v817
    %v819 = vmul.f32 %v818, %v805
    %v820 = vsub.f32 %v754, %v819
    %v821 = vmul.f32 %v818, %v806
    %v822 = vsub.f32 %v756, %v821
    %v823 = vlaneseq
    %v824 = vshrl.u32 %v823, 7
    %v825 = vsub.s32 6, %v824
    %v826 = vrot.slane %v764, %v825
    %v827 = vmul.f32 %v826, %v805
    %v828 = vsub.f32 %v762, %v827
    %v829 = vmul.f32 %v826, %v806
    %v830 = vsub.f32 %v764, %v829
    %v831 = vlaneseq
    %v832 = vshrl.u32 %v831, 7
    %v833 = vsub.s32 6, %v832
    %v834 = vrot.slane %v772, %v833
    %v835 = vmul.f32 %v834, %v805
    %v836 = vsub.f32 %v770, %v835
    %v837 = vmul.f32 %v834, %v806
    %v838 = vsub.f32 %v772, %v837
    %v839 = vlaneseq
    %v840 = vshrl.u32 %v839, 7
    %v841 = vsub.s32 6, %v840
    %v842 = vrot.slane %v780, %v841
    %v843 = vmul.f32 %v842, %v805
    %v844 = vsub.f32 %v778, %v843
    %v845 = vmul.f32 %v842, %v806
    %v846 = vsub.f32 %v780, %v845
    %v847 = vlaneseq
    %v848 = vshrl.u32 %v847, 7
    %v849 = vsub.s32 6, %v848
    %v850 = vrot.slane %v740, %v849
    %v851 = vmul.f32 %v850, %v805
    %v852 = vsub.f32 %v739, %v851
    %v853 = vmul.f32 %v850, %v806
    %v854 = vsub.f32 %v740, %v853
    %v855 = vlaneseq
    %v856 = vshrl.u32 %v855, 7
    %v857 = vsub.s32 6, %v856
    %v858 = vrot.slane %v796, %v857
    %v859 = vmul.f32 %v858, %v805
    %v860 = vsub.f32 %v794, %v859
    %v861 = vmul.f32 %v858, %v806
    %v862 = vsub.f32 %v796, %v861
    %v863 = vrcp.pop %v862
    %v864 = vmul.f32 %v862, %v863
    %v865 = vsub.f32 2.0, %v864
    %v866 = vmul.f32 %v863, %v865
    %v867 = vlaneseq
    %v868 = vshrl.u32 %v867, 7
    %v869 = vsub.s32 7, %v868
    %v870 = vrot.slane %v866, %v869
    %v871 = vmul.f32 %v860, %v870
    %v872 = vlaneseq
    %v873 = vshrl.u32 %v872, 7
    %v874 = vsub.s32 7, %v873
    %v875 = vrot.slane %v814, %v874
    %v876 = vmul.f32 %v875, %v871
    %v877 = vsub.f32 %v812, %v876
    %v878 = vlaneseq
    %v879 = vshrl.u32 %v878, 7
    %v880 = vsub.s32 7, %v879
    %v881 = vrot.slane %v822, %v880
    %v882 = vmul.f32 %v881, %v871
    %v883 = vsub.f32 %v820, %v882
    %v884 = vlaneseq
    %v885 = vshrl.u32 %v884, 7
    %v886 = vsub.s32 7, %v885
    %v887 = vrot.slane %v830, %v886
    %v888 = vmul.f32 %v887, %v871
    %v889 = vsub.f32 %v828, %v888
    %v890 = vlaneseq
    %v891 = vshrl.u32 %v890, 7
    %v892 = vsub.s32 7, %v891
    %v893 = vrot.slane %v838, %v892
    %v894 = vmul.f32 %v893, %v871
    %v895 = vsub.f32 %v836, %v894
    %v896 = vlaneseq
    %v897 = vshrl.u32 %v896, 7
    %v898 = vsub.s32 7, %v897
    %v899 = vrot.slane %v846, %v898
    %v900 = vmul.f32 %v899, %v871
    %v901 = vsub.f32 %v844, %v900
    %v902 = vlaneseq
    %v903 = vshrl.u32 %v902, 7
    %v904 = vsub.s32 7, %v903
    %v905 = vrot.slane %v854, %v904
    %v906 = vmul.f32 %v905, %v871
    %v907 = vsub.f32 %v852, %v906
    %v908 = vlaneseq
    %v909 = vshrl.u32 %v908, 7
    %v910 = vsub.s32 7, %v909
    %v911 = vrot.slane %v806, %v910
    %v912 = vmul.f32 %v911, %v871
    %v913 = vsub.f32 %v805, %v912
    %914 = vst [vmem:[#allocation5] sm:$0xff] %v877
    %915 = vst [vmem:[#allocation5 + $0x10] sm:$0xff] %v883
    %916 = vst [vmem:[#allocation5 + $0x20] sm:$0xff] %v889
    %917 = vst [vmem:[#allocation5 + $0x30] sm:$0xff] %v895
    %918 = vst [vmem:[#allocation5 + $0x40] sm:$0xff] %v901
    %919 = vst [vmem:[#allocation5 + $0x50] sm:$0xff] %v907
    %920 = vst [vmem:[#allocation5 + $0x60] sm:$0xff] %v913
    %921 = vst [vmem:[#allocation5 + $0x70] sm:$0xff] %v871
    %s922 = sadd.s32 0, 128
    %s923 = sshra.s32 %s922, 7
    %s924 = sand.u32 %s922, 127
    %s925 = smul.addr %s923, 8
    %s926 = scalar_lea.vmem [#allocation2], %s925
    %v927 = vld [vmem:[%s926] sm:$0xff]
    %v928 = vld [vmem:[%s926 + $0x10] sm:$0xff]
    %v930 = vcombine.high %v927, %v927
    %v932 = vunpack.c.l.s4 1966171168
    %v933 = vunpack.c.0.s8 %v932
    %v934 = vlaneseq
    %v935 = vshrl.u32 %v934, 7
    %v936 = vsub.s32 %v933, %v935
    %v937 = vrot.slane %v927, %v936
    %v939 = vunpack.c.l.s4 1966171168
    %v940 = vunpack.c.0.s8 %v939
    %v941 = vlaneseq
    %v942 = vshrl.u32 %v941, 7
    %v943 = vsub.s32 %v940, %v942
    %v944 = vrot.slane %v930, %v943
    %v945 = vcombine.high %v937, %v937
    %v946 = vcombine.high %v944, %v944
    %v948 = vunpack.c.l.s4 1966171168
    %v949 = vunpack.c.0.s8 %v948
    %v950 = vlaneseq
    %v951 = vshrl.u32 %v950, 7
    %v952 = vsub.s32 %v949, %v951
    %v953 = vrot.slane %v937, %v952
    %v955 = vunpack.c.l.s4 1966171168
    %v956 = vunpack.c.0.s8 %v955
    %v957 = vlaneseq
    %v958 = vshrl.u32 %v957, 7
    %v959 = vsub.s32 %v956, %v958
    %v960 = vrot.slane %v944, %v959
    %v962 = vunpack.c.l.s4 1966171168
    %v963 = vunpack.c.0.s8 %v962
    %v964 = vlaneseq
    %v965 = vshrl.u32 %v964, 7
    %v966 = vsub.s32 %v963, %v965
    %v967 = vrot.slane %v945, %v966
    %v969 = vunpack.c.l.s4 1966171168
    %v970 = vunpack.c.0.s8 %v969
    %v971 = vlaneseq
    %v972 = vshrl.u32 %v971, 7
    %v973 = vsub.s32 %v970, %v972
    %v974 = vrot.slane %v946, %v973
    %v975 = vcombine.high %v953, %v953
    %v976 = vcombine.high %v960, %v960
    %v977 = vcombine.high %v967, %v967
    %v978 = vcombine.high %v974, %v974
    %v979 = vlaneseq
    %v980 = vshrl.u32 %v979, 7
    %v981 = vsub.s32 0, %v980
    %v982 = vrot.slane %v953, %v981
    %v983 = vlaneseq
    %v984 = vshrl.u32 %v983, 7
    %v985 = vsub.s32 0, %v984
    %v986 = vrot.slane %v967, %v985
    %v987 = vlaneseq
    %v988 = vshrl.u32 %v987, 7
    %v989 = vsub.s32 0, %v988
    %v990 = vrot.slane %v975, %v989
    %v991 = vlaneseq
    %v992 = vshrl.u32 %v991, 7
    %v993 = vsub.s32 0, %v992
    %v994 = vrot.slane %v977, %v993
    %v995 = vlaneseq
    %v996 = vshrl.u32 %v995, 7
    %v997 = vsub.s32 0, %v996
    %v998 = vrot.slane %v960, %v997
    %v999 = vlaneseq
    %v1000 = vshrl.u32 %v999, 7
    %v1001 = vsub.s32 0, %v1000
    %v1002 = vrot.slane %v974, %v1001
    %v1003 = vlaneseq
    %v1004 = vshrl.u32 %v1003, 7
    %v1005 = vsub.s32 0, %v1004
    %v1006 = vrot.slane %v976, %v1005
    %v1007 = vlaneseq
    %v1008 = vshrl.u32 %v1007, 7
    %v1009 = vsub.s32 0, %v1008
    %v1010 = vrot.slane %v978, %v1009
    %v1019 = vsub.f32 %v982, %v927
    %v1020 = vsub.f32 %v986, %v927
    %v1021 = vsub.f32 %v990, %v927
    %v1022 = vsub.f32 %v994, %v927
    %v1023 = vsub.f32 %v998, %v927
    %v1024 = vsub.f32 %v1002, %v927
    %v1025 = vsub.f32 %v1006, %v927
    %v1026 = vsub.f32 %v1010, %v927
    %v1027 = vmul.f32 %v1019, %v1019
    %v1028 = vmul.f32 %v1020, %v1020
    %v1029 = vmul.f32 %v1021, %v1021
    %v1030 = vmul.f32 %v1022, %v1022
    %v1031 = vmul.f32 %v1023, %v1023
    %v1032 = vmul.f32 %v1024, %v1024
    %v1033 = vmul.f32 %v1025, %v1025
    %v1034 = vmul.f32 %v1026, %v1026
    %v1036 = vcombine.high %v928, %v928
    %v1038 = vunpack.c.l.s4 1966171168
    %v1039 = vunpack.c.0.s8 %v1038
    %v1040 = vlaneseq
    %v1041 = vshrl.u32 %v1040, 7
    %v1042 = vsub.s32 %v1039, %v1041
    %v1043 = vrot.slane %v928, %v1042
    %v1045 = vunpack.c.l.s4 1966171168
    %v1046 = vunpack.c.0.s8 %v1045
    %v1047 = vlaneseq
    %v1048 = vshrl.u32 %v1047, 7
    %v1049 = vsub.s32 %v1046, %v1048
    %v1050 = vrot.slane %v1036, %v1049
    %v1051 = vcombine.high %v1043, %v1043
    %v1052 = vcombine.high %v1050, %v1050
    %v1054 = vunpack.c.l.s4 1966171168
    %v1055 = vunpack.c.0.s8 %v1054
    %v1056 = vlaneseq
    %v1057 = vshrl.u32 %v1056, 7
    %v1058 = vsub.s32 %v1055, %v1057
    %v1059 = vrot.slane %v1043, %v1058
    %v1061 = vunpack.c.l.s4 1966171168
    %v1062 = vunpack.c.0.s8 %v1061
    %v1063 = vlaneseq
    %v1064 = vshrl.u32 %v1063, 7
    %v1065 = vsub.s32 %v1062, %v1064
    %v1066 = vrot.slane %v1050, %v1065
    %v1068 = vunpack.c.l.s4 1966171168
    %v1069 = vunpack.c.0.s8 %v1068
    %v1070 = vlaneseq
    %v1071 = vshrl.u32 %v1070, 7
    %v1072 = vsub.s32 %v1069, %v1071
    %v1073 = vrot.slane %v1051, %v1072
    %v1075 = vunpack.c.l.s4 1966171168
    %v1076 = vunpack.c.0.s8 %v1075
    %v1077 = vlaneseq
    %v1078 = vshrl.u32 %v1077, 7
    %v1079 = vsub.s32 %v1076, %v1078
    %v1080 = vrot.slane %v1052, %v1079
    %v1081 = vcombine.high %v1059, %v1059
    %v1082 = vcombine.high %v1066, %v1066
    %v1083 = vcombine.high %v1073, %v1073
    %v1084 = vcombine.high %v1080, %v1080
    %v1085 = vlaneseq
    %v1086 = vshrl.u32 %v1085, 7
    %v1087 = vsub.s32 0, %v1086
    %v1088 = vrot.slane %v1059, %v1087
    %v1089 = vlaneseq
    %v1090 = vshrl.u32 %v1089, 7
    %v1091 = vsub.s32 0, %v1090
    %v1092 = vrot.slane %v1073, %v1091
    %v1093 = vlaneseq
    %v1094 = vshrl.u32 %v1093, 7
    %v1095 = vsub.s32 0, %v1094
    %v1096 = vrot.slane %v1081, %v1095
    %v1097 = vlaneseq
    %v1098 = vshrl.u32 %v1097, 7
    %v1099 = vsub.s32 0, %v1098
    %v1100 = vrot.slane %v1083, %v1099
    %v1101 = vlaneseq
    %v1102 = vshrl.u32 %v1101, 7
    %v1103 = vsub.s32 0, %v1102
    %v1104 = vrot.slane %v1066, %v1103
    %v1105 = vlaneseq
    %v1106 = vshrl.u32 %v1105, 7
    %v1107 = vsub.s32 0, %v1106
    %v1108 = vrot.slane %v1080, %v1107
    %v1109 = vlaneseq
    %v1110 = vshrl.u32 %v1109, 7
    %v1111 = vsub.s32 0, %v1110
    %v1112 = vrot.slane %v1082, %v1111
    %v1113 = vlaneseq
    %v1114 = vshrl.u32 %v1113, 7
    %v1115 = vsub.s32 0, %v1114
    %v1116 = vrot.slane %v1084, %v1115
    %v1125 = vsub.f32 %v1088, %v928
    %v1126 = vsub.f32 %v1092, %v928
    %v1127 = vsub.f32 %v1096, %v928
    %v1128 = vsub.f32 %v1100, %v928
    %v1129 = vsub.f32 %v1104, %v928
    %v1130 = vsub.f32 %v1108, %v928
    %v1131 = vsub.f32 %v1112, %v928
    %v1132 = vsub.f32 %v1116, %v928
    %v1133 = vmul.f32 %v1125, %v1125
    %v1134 = vmul.f32 %v1126, %v1126
    %v1135 = vmul.f32 %v1127, %v1127
    %v1136 = vmul.f32 %v1128, %v1128
    %v1137 = vmul.f32 %v1129, %v1129
    %v1138 = vmul.f32 %v1130, %v1130
    %v1139 = vmul.f32 %v1131, %v1131
    %v1140 = vmul.f32 %v1132, %v1132
    %v1141 = vadd.f32 %v1027, %v1133
    %v1142 = vadd.f32 %v1028, %v1134
    %v1143 = vadd.f32 %v1029, %v1135
    %v1144 = vadd.f32 %v1030, %v1136
    %v1145 = vadd.f32 %v1031, %v1137
    %v1146 = vadd.f32 %v1032, %v1138
    %v1147 = vadd.f32 %v1033, %v1139
    %v1148 = vadd.f32 %v1034, %v1140
    %v1149 = vrsqrt.pop %v1141
    %v1150 = vmul.f32 %v1141, %v1149
    %vm1151 = vcmp.eq.f32.partialorder %v1141, inf
    %v1152 = vsel %vm1151, %v1141, %v1150
    %vm1153 = vcmp.eq.f32.partialorder %v1141, 0.0
    %v1154 = vand.u32 %v1141, 2147483648
    %v1155 = vsel %vm1153, %v1154, %v1152
    %v1156 = vrsqrt.pop %v1142
    %v1157 = vmul.f32 %v1142, %v1156
    %vm1158 = vcmp.eq.f32.partialorder %v1142, inf
    %v1159 = vsel %vm1158, %v1142, %v1157
    %vm1160 = vcmp.eq.f32.partialorder %v1142, 0.0
    %v1161 = vand.u32 %v1142, 2147483648
    %v1162 = vsel %vm1160, %v1161, %v1159
    %v1163 = vrsqrt.pop %v1143
    %v1164 = vmul.f32 %v1143, %v1163
    %vm1165 = vcmp.eq.f32.partialorder %v1143, inf
    %v1166 = vsel %vm1165, %v1143, %v1164
    %vm1167 = vcmp.eq.f32.partialorder %v1143, 0.0
    %v1168 = vand.u32 %v1143, 2147483648
    %v1169 = vsel %vm1167, %v1168, %v1166
    %v1170 = vrsqrt.pop %v1144
    %v1171 = vmul.f32 %v1144, %v1170
    %vm1172 = vcmp.eq.f32.partialorder %v1144, inf
    %v1173 = vsel %vm1172, %v1144, %v1171
    %vm1174 = vcmp.eq.f32.partialorder %v1144, 0.0
    %v1175 = vand.u32 %v1144, 2147483648
    %v1176 = vsel %vm1174, %v1175, %v1173
    %v1177 = vrsqrt.pop %v1145
    %v1178 = vmul.f32 %v1145, %v1177
    %vm1179 = vcmp.eq.f32.partialorder %v1145, inf
    %v1180 = vsel %vm1179, %v1145, %v1178
    %vm1181 = vcmp.eq.f32.partialorder %v1145, 0.0
    %v1182 = vand.u32 %v1145, 2147483648
    %v1183 = vsel %vm1181, %v1182, %v1180
    %v1184 = vrsqrt.pop %v1146
    %v1185 = vmul.f32 %v1146, %v1184
    %vm1186 = vcmp.eq.f32.partialorder %v1146, inf
    %v1187 = vsel %vm1186, %v1146, %v1185
    %vm1188 = vcmp.eq.f32.partialorder %v1146, 0.0
    %v1189 = vand.u32 %v1146, 2147483648
    %v1190 = vsel %vm1188, %v1189, %v1187
    %v1191 = vrsqrt.pop %v1147
    %v1192 = vmul.f32 %v1147, %v1191
    %vm1193 = vcmp.eq.f32.partialorder %v1147, inf
    %v1194 = vsel %vm1193, %v1147, %v1192
    %vm1195 = vcmp.eq.f32.partialorder %v1147, 0.0
    %v1196 = vand.u32 %v1147, 2147483648
    %v1197 = vsel %vm1195, %v1196, %v1194
    %v1198 = vrsqrt.pop %v1148
    %v1199 = vmul.f32 %v1148, %v1198
    %vm1200 = vcmp.eq.f32.partialorder %v1148, inf
    %v1201 = vsel %vm1200, %v1148, %v1199
    %vm1202 = vcmp.eq.f32.partialorder %v1148, 0.0
    %v1203 = vand.u32 %v1148, 2147483648
    %v1204 = vsel %vm1202, %v1203, %v1201
    %v1205 = vmul.f32 %v1155, -0.5
    %v1206 = vmul.f32 %v1162, -0.5
    %v1207 = vmul.f32 %v1169, -0.5
    %v1208 = vmul.f32 %v1176, -0.5
    %v1209 = vmul.f32 %v1183, -0.5
    %v1210 = vmul.f32 %v1190, -0.5
    %v1211 = vmul.f32 %v1197, -0.5
    %v1212 = vmul.f32 %v1204, -0.5
    %v1213 = vmul.f32 %v1205, 1.442695
    %v1214 = vpow.pop %v1213
    %v1215 = vmul.f32 %v1206, 1.442695
    %v1216 = vpow.pop %v1215
    %v1217 = vmul.f32 %v1207, 1.442695
    %v1218 = vpow.pop %v1217
    %v1219 = vmul.f32 %v1208, 1.442695
    %v1220 = vpow.pop %v1219
    %v1221 = vmul.f32 %v1209, 1.442695
    %v1222 = vpow.pop %v1221
    %v1223 = vmul.f32 %v1210, 1.442695
    %v1224 = vpow.pop %v1223
    %v1225 = vmul.f32 %v1211, 1.442695
    %v1226 = vpow.pop %v1225
    %v1227 = vmul.f32 %v1212, 1.442695
    %v1228 = vpow.pop %v1227
    %v1229 = vmul.f32 %v1214, 2.25
    %v1230 = vmul.f32 %v1216, 2.25
    %v1231 = vmul.f32 %v1218, 2.25
    %v1232 = vmul.f32 %v1220, 2.25
    %v1233 = vmul.f32 %v1222, 2.25
    %v1234 = vmul.f32 %v1224, 2.25
    %v1235 = vmul.f32 %v1226, 2.25
    %v1236 = vmul.f32 %v1228, 2.25
    %v1237 = vadd.f32 %v1229, 0.25
    %v1238 = vsel %vm25, %v1237, %v1229
    %v1239 = vadd.f32 %v1230, 0.25
    %v1240 = vsel %vm338, %v1239, %v1230
    %v1241 = vadd.f32 %v1231, 0.25
    %v1242 = vsel %vm341, %v1241, %v1231
    %v1243 = vadd.f32 %v1232, 0.25
    %v1244 = vsel %vm344, %v1243, %v1232
    %v1245 = vadd.f32 %v1233, 0.25
    %v1246 = vsel %vm347, %v1245, %v1233
    %v1247 = vadd.f32 %v1234, 0.25
    %v1248 = vsel %vm350, %v1247, %v1234
    %v1249 = vadd.f32 %v1235, 0.25
    %v1250 = vsel %vm353, %v1249, %v1235
    %v1251 = vadd.f32 %v1236, 0.25
    %v1252 = vsel %vm356, %v1251, %v1236
    %v1253 = vrcp.pop %v1238
    %v1254 = vmul.f32 %v1238, %v1253
    %v1255 = vsub.f32 2.0, %v1254
    %v1256 = vmul.f32 %v1253, %v1255
    %v1257 = vlaneseq
    %v1258 = vshrl.u32 %v1257, 7
    %v1259 = vsub.s32 0, %v1258
    %v1260 = vrot.slane %v1256, %v1259
    %v1261 = vmul.f32 %v1238, %v1260
    %v1262 = vsel %vm25, %v1260, 0.0
    %v1263 = vlaneseq
    %v1264 = vshrl.u32 %v1263, 7
    %v1265 = vsub.s32 0, %v1264
    %v1266 = vrot.slane %v1240, %v1265
    %v1267 = vmul.f32 %v1266, %v1261
    %v1268 = vsub.f32 %v1240, %v1267
    %v1269 = vmul.f32 %v1240, %v1256
    %v1270 = vsub.f32 0.0, %v1269
    %v1271 = vlaneseq
    %v1272 = vshrl.u32 %v1271, 7
    %v1273 = vsub.s32 0, %v1272
    %v1274 = vrot.slane %v1270, %v1273
    %v1275 = vsel %vm25, %v1274, 0.0
    %v1276 = vsel %vm338, 1.0, %v1275
    %v1277 = vlaneseq
    %v1278 = vshrl.u32 %v1277, 7
    %v1279 = vsub.s32 0, %v1278
    %v1280 = vrot.slane %v1242, %v1279
    %v1281 = vmul.f32 %v1280, %v1261
    %v1282 = vsub.f32 %v1242, %v1281
    %v1283 = vmul.f32 %v1242, %v1256
    %v1284 = vsub.f32 0.0, %v1283
    %v1285 = vlaneseq
    %v1286 = vshrl.u32 %v1285, 7
    %v1287 = vsub.s32 0, %v1286
    %v1288 = vrot.slane %v1284, %v1287
    %v1289 = vsel %vm25, %v1288, 0.0
    %v1290 = vsel %vm341, 1.0, %v1289
    %v1291 = vlaneseq
    %v1292 = vshrl.u32 %v1291, 7
    %v1293 = vsub.s32 0, %v1292
    %v1294 = vrot.slane %v1244, %v1293
    %v1295 = vmul.f32 %v1294, %v1261
    %v1296 = vsub.f32 %v1244, %v1295
    %v1297 = vmul.f32 %v1244, %v1256
    %v1298 = vsub.f32 0.0, %v1297
    %v1299 = vlaneseq
    %v1300 = vshrl.u32 %v1299, 7
    %v1301 = vsub.s32 0, %v1300
    %v1302 = vrot.slane %v1298, %v1301
    %v1303 = vsel %vm25, %v1302, 0.0
    %v1304 = vsel %vm344, 1.0, %v1303
    %v1305 = vlaneseq
    %v1306 = vshrl.u32 %v1305, 7
    %v1307 = vsub.s32 0, %v1306
    %v1308 = vrot.slane %v1246, %v1307
    %v1309 = vmul.f32 %v1308, %v1261
    %v1310 = vsub.f32 %v1246, %v1309
    %v1311 = vmul.f32 %v1246, %v1256
    %v1312 = vsub.f32 0.0, %v1311
    %v1313 = vlaneseq
    %v1314 = vshrl.u32 %v1313, 7
    %v1315 = vsub.s32 0, %v1314
    %v1316 = vrot.slane %v1312, %v1315
    %v1317 = vsel %vm25, %v1316, 0.0
    %v1318 = vsel %vm347, 1.0, %v1317
    %v1319 = vlaneseq
    %v1320 = vshrl.u32 %v1319, 7
    %v1321 = vsub.s32 0, %v1320
    %v1322 = vrot.slane %v1248, %v1321
    %v1323 = vmul.f32 %v1322, %v1261
    %v1324 = vsub.f32 %v1248, %v1323
    %v1325 = vmul.f32 %v1248, %v1256
    %v1326 = vsub.f32 0.0, %v1325
    %v1327 = vlaneseq
    %v1328 = vshrl.u32 %v1327, 7
    %v1329 = vsub.s32 0, %v1328
    %v1330 = vrot.slane %v1326, %v1329
    %v1331 = vsel %vm25, %v1330, 0.0
    %v1332 = vsel %vm350, 1.0, %v1331
    %v1333 = vlaneseq
    %v1334 = vshrl.u32 %v1333, 7
    %v1335 = vsub.s32 0, %v1334
    %v1336 = vrot.slane %v1250, %v1335
    %v1337 = vmul.f32 %v1336, %v1261
    %v1338 = vsub.f32 %v1250, %v1337
    %v1339 = vmul.f32 %v1250, %v1256
    %v1340 = vsub.f32 0.0, %v1339
    %v1341 = vlaneseq
    %v1342 = vshrl.u32 %v1341, 7
    %v1343 = vsub.s32 0, %v1342
    %v1344 = vrot.slane %v1340, %v1343
    %v1345 = vsel %vm25, %v1344, 0.0
    %v1346 = vsel %vm353, 1.0, %v1345
    %v1347 = vlaneseq
    %v1348 = vshrl.u32 %v1347, 7
    %v1349 = vsub.s32 0, %v1348
    %v1350 = vrot.slane %v1252, %v1349
    %v1351 = vmul.f32 %v1350, %v1261
    %v1352 = vsub.f32 %v1252, %v1351
    %v1353 = vmul.f32 %v1252, %v1256
    %v1354 = vsub.f32 0.0, %v1353
    %v1355 = vlaneseq
    %v1356 = vshrl.u32 %v1355, 7
    %v1357 = vsub.s32 0, %v1356
    %v1358 = vrot.slane %v1354, %v1357
    %v1359 = vsel %vm25, %v1358, 0.0
    %v1360 = vsel %vm356, 1.0, %v1359
    %v1361 = vrcp.pop %v1268
    %v1362 = vmul.f32 %v1268, %v1361
    %v1363 = vsub.f32 2.0, %v1362
    %v1364 = vmul.f32 %v1361, %v1363
    %v1365 = vlaneseq
    %v1366 = vshrl.u32 %v1365, 7
    %v1367 = vsub.s32 1, %v1366
    %v1368 = vrot.slane %v1364, %v1367
    %v1369 = vmul.f32 %v1276, %v1368
    %v1370 = vmul.f32 %v1268, %v1368
    %v1371 = vlaneseq
    %v1372 = vshrl.u32 %v1371, 7
    %v1373 = vsub.s32 1, %v1372
    %v1374 = vrot.slane %v1261, %v1373
    %v1375 = vmul.f32 %v1374, %v1369
    %v1376 = vsub.f32 %v1262, %v1375
    %v1377 = vmul.f32 %v1374, %v1370
    %v1378 = vsub.f32 %v1261, %v1377
    %v1379 = vlaneseq
    %v1380 = vshrl.u32 %v1379, 7
    %v1381 = vsub.s32 1, %v1380
    %v1382 = vrot.slane %v1282, %v1381
    %v1383 = vmul.f32 %v1382, %v1369
    %v1384 = vsub.f32 %v1290, %v1383
    %v1385 = vmul.f32 %v1382, %v1370
    %v1386 = vsub.f32 %v1282, %v1385
    %v1387 = vlaneseq
    %v1388 = vshrl.u32 %v1387, 7
    %v1389 = vsub.s32 1, %v1388
    %v1390 = vrot.slane %v1296, %v1389
    %v1391 = vmul.f32 %v1390, %v1369
    %v1392 = vsub.f32 %v1304, %v1391
    %v1393 = vmul.f32 %v1390, %v1370
    %v1394 = vsub.f32 %v1296, %v1393
    %v1395 = vlaneseq
    %v1396 = vshrl.u32 %v1395, 7
    %v1397 = vsub.s32 1, %v1396
    %v1398 = vrot.slane %v1310, %v1397
    %v1399 = vmul.f32 %v1398, %v1369
    %v1400 = vsub.f32 %v1318, %v1399
    %v1401 = vmul.f32 %v1398, %v1370
    %v1402 = vsub.f32 %v1310, %v1401
    %v1403 = vlaneseq
    %v1404 = vshrl.u32 %v1403, 7
    %v1405 = vsub.s32 1, %v1404
    %v1406 = vrot.slane %v1324, %v1405
    %v1407 = vmul.f32 %v1406, %v1369
    %v1408 = vsub.f32 %v1332, %v1407
    %v1409 = vmul.f32 %v1406, %v1370
    %v1410 = vsub.f32 %v1324, %v1409
    %v1411 = vlaneseq
    %v1412 = vshrl.u32 %v1411, 7
    %v1413 = vsub.s32 1, %v1412
    %v1414 = vrot.slane %v1338, %v1413
    %v1415 = vmul.f32 %v1414, %v1369
    %v1416 = vsub.f32 %v1346, %v1415
    %v1417 = vmul.f32 %v1414, %v1370
    %v1418 = vsub.f32 %v1338, %v1417
    %v1419 = vlaneseq
    %v1420 = vshrl.u32 %v1419, 7
    %v1421 = vsub.s32 1, %v1420
    %v1422 = vrot.slane %v1352, %v1421
    %v1423 = vmul.f32 %v1422, %v1369
    %v1424 = vsub.f32 %v1360, %v1423
    %v1425 = vmul.f32 %v1422, %v1370
    %v1426 = vsub.f32 %v1352, %v1425
    %v1427 = vrcp.pop %v1386
    %v1428 = vmul.f32 %v1386, %v1427
    %v1429 = vsub.f32 2.0, %v1428
    %v1430 = vmul.f32 %v1427, %v1429
    %v1431 = vlaneseq
    %v1432 = vshrl.u32 %v1431, 7
    %v1433 = vsub.s32 2, %v1432
    %v1434 = vrot.slane %v1430, %v1433
    %v1435 = vmul.f32 %v1384, %v1434
    %v1436 = vmul.f32 %v1386, %v1434
    %v1437 = vlaneseq
    %v1438 = vshrl.u32 %v1437, 7
    %v1439 = vsub.s32 2, %v1438
    %v1440 = vrot.slane %v1378, %v1439
    %v1441 = vmul.f32 %v1440, %v1435
    %v1442 = vsub.f32 %v1376, %v1441
    %v1443 = vmul.f32 %v1440, %v1436
    %v1444 = vsub.f32 %v1378, %v1443
    %v1445 = vlaneseq
    %v1446 = vshrl.u32 %v1445, 7
    %v1447 = vsub.s32 2, %v1446
    %v1448 = vrot.slane %v1370, %v1447
    %v1449 = vmul.f32 %v1448, %v1435
    %v1450 = vsub.f32 %v1369, %v1449
    %v1451 = vmul.f32 %v1448, %v1436
    %v1452 = vsub.f32 %v1370, %v1451
    %v1453 = vlaneseq
    %v1454 = vshrl.u32 %v1453, 7
    %v1455 = vsub.s32 2, %v1454
    %v1456 = vrot.slane %v1394, %v1455
    %v1457 = vmul.f32 %v1456, %v1435
    %v1458 = vsub.f32 %v1392, %v1457
    %v1459 = vmul.f32 %v1456, %v1436
    %v1460 = vsub.f32 %v1394, %v1459
    %v1461 = vlaneseq
    %v1462 = vshrl.u32 %v1461, 7
    %v1463 = vsub.s32 2, %v1462
    %v1464 = vrot.slane %v1402, %v1463
    %v1465 = vmul.f32 %v1464, %v1435
    %v1466 = vsub.f32 %v1400, %v1465
    %v1467 = vmul.f32 %v1464, %v1436
    %v1468 = vsub.f32 %v1402, %v1467
    %v1469 = vlaneseq
    %v1470 = vshrl.u32 %v1469, 7
    %v1471 = vsub.s32 2, %v1470
    %v1472 = vrot.slane %v1410, %v1471
    %v1473 = vmul.f32 %v1472, %v1435
    %v1474 = vsub.f32 %v1408, %v1473
    %v1475 = vmul.f32 %v1472, %v1436
    %v1476 = vsub.f32 %v1410, %v1475
    %v1477 = vlaneseq
    %v1478 = vshrl.u32 %v1477, 7
    %v1479 = vsub.s32 2, %v1478
    %v1480 = vrot.slane %v1418, %v1479
    %v1481 = vmul.f32 %v1480, %v1435
    %v1482 = vsub.f32 %v1416, %v1481
    %v1483 = vmul.f32 %v1480, %v1436
    %v1484 = vsub.f32 %v1418, %v1483
    %v1485 = vlaneseq
    %v1486 = vshrl.u32 %v1485, 7
    %v1487 = vsub.s32 2, %v1486
    %v1488 = vrot.slane %v1426, %v1487
    %v1489 = vmul.f32 %v1488, %v1435
    %v1490 = vsub.f32 %v1424, %v1489
    %v1491 = vmul.f32 %v1488, %v1436
    %v1492 = vsub.f32 %v1426, %v1491
    %v1493 = vrcp.pop %v1460
    %v1494 = vmul.f32 %v1460, %v1493
    %v1495 = vsub.f32 2.0, %v1494
    %v1496 = vmul.f32 %v1493, %v1495
    %v1497 = vlaneseq
    %v1498 = vshrl.u32 %v1497, 7
    %v1499 = vsub.s32 3, %v1498
    %v1500 = vrot.slane %v1496, %v1499
    %v1501 = vmul.f32 %v1458, %v1500
    %v1502 = vmul.f32 %v1460, %v1500
    %v1503 = vlaneseq
    %v1504 = vshrl.u32 %v1503, 7
    %v1505 = vsub.s32 3, %v1504
    %v1506 = vrot.slane %v1444, %v1505
    %v1507 = vmul.f32 %v1506, %v1501
    %v1508 = vsub.f32 %v1442, %v1507
    %v1509 = vmul.f32 %v1506, %v1502
    %v1510 = vsub.f32 %v1444, %v1509
    %v1511 = vlaneseq
    %v1512 = vshrl.u32 %v1511, 7
    %v1513 = vsub.s32 3, %v1512
    %v1514 = vrot.slane %v1452, %v1513
    %v1515 = vmul.f32 %v1514, %v1501
    %v1516 = vsub.f32 %v1450, %v1515
    %v1517 = vmul.f32 %v1514, %v1502
    %v1518 = vsub.f32 %v1452, %v1517
    %v1519 = vlaneseq
    %v1520 = vshrl.u32 %v1519, 7
    %v1521 = vsub.s32 3, %v1520
    %v1522 = vrot.slane %v1436, %v1521
    %v1523 = vmul.f32 %v1522, %v1501
    %v1524 = vsub.f32 %v1435, %v1523
    %v1525 = vmul.f32 %v1522, %v1502
    %v1526 = vsub.f32 %v1436, %v1525
    %v1527 = vlaneseq
    %v1528 = vshrl.u32 %v1527, 7
    %v1529 = vsub.s32 3, %v1528
    %v1530 = vrot.slane %v1468, %v1529
    %v1531 = vmul.f32 %v1530, %v1501
    %v1532 = vsub.f32 %v1466, %v1531
    %v1533 = vmul.f32 %v1530, %v1502
    %v1534 = vsub.f32 %v1468, %v1533
    %v1535 = vlaneseq
    %v1536 = vshrl.u32 %v1535, 7
    %v1537 = vsub.s32 3, %v1536
    %v1538 = vrot.slane %v1476, %v1537
    %v1539 = vmul.f32 %v1538, %v1501
    %v1540 = vsub.f32 %v1474, %v1539
    %v1541 = vmul.f32 %v1538, %v1502
    %v1542 = vsub.f32 %v1476, %v1541
    %v1543 = vlaneseq
    %v1544 = vshrl.u32 %v1543, 7
    %v1545 = vsub.s32 3, %v1544
    %v1546 = vrot.slane %v1484, %v1545
    %v1547 = vmul.f32 %v1546, %v1501
    %v1548 = vsub.f32 %v1482, %v1547
    %v1549 = vmul.f32 %v1546, %v1502
    %v1550 = vsub.f32 %v1484, %v1549
    %v1551 = vlaneseq
    %v1552 = vshrl.u32 %v1551, 7
    %v1553 = vsub.s32 3, %v1552
    %v1554 = vrot.slane %v1492, %v1553
    %v1555 = vmul.f32 %v1554, %v1501
    %v1556 = vsub.f32 %v1490, %v1555
    %v1557 = vmul.f32 %v1554, %v1502
    %v1558 = vsub.f32 %v1492, %v1557
    %v1559 = vrcp.pop %v1534
    %v1560 = vmul.f32 %v1534, %v1559
    %v1561 = vsub.f32 2.0, %v1560
    %v1562 = vmul.f32 %v1559, %v1561
    %v1563 = vlaneseq
    %v1564 = vshrl.u32 %v1563, 7
    %v1565 = vsub.s32 4, %v1564
    %v1566 = vrot.slane %v1562, %v1565
    %v1567 = vmul.f32 %v1532, %v1566
    %v1568 = vmul.f32 %v1534, %v1566
    %v1569 = vlaneseq
    %v1570 = vshrl.u32 %v1569, 7
    %v1571 = vsub.s32 4, %v1570
    %v1572 = vrot.slane %v1510, %v1571
    %v1573 = vmul.f32 %v1572, %v1567
    %v1574 = vsub.f32 %v1508, %v1573
    %v1575 = vmul.f32 %v1572, %v1568
    %v1576 = vsub.f32 %v1510, %v1575
    %v1577 = vlaneseq
    %v1578 = vshrl.u32 %v1577, 7
    %v1579 = vsub.s32 4, %v1578
    %v1580 = vrot.slane %v1518, %v1579
    %v1581 = vmul.f32 %v1580, %v1567
    %v1582 = vsub.f32 %v1516, %v1581
    %v1583 = vmul.f32 %v1580, %v1568
    %v1584 = vsub.f32 %v1518, %v1583
    %v1585 = vlaneseq
    %v1586 = vshrl.u32 %v1585, 7
    %v1587 = vsub.s32 4, %v1586
    %v1588 = vrot.slane %v1526, %v1587
    %v1589 = vmul.f32 %v1588, %v1567
    %v1590 = vsub.f32 %v1524, %v1589
    %v1591 = vmul.f32 %v1588, %v1568
    %v1592 = vsub.f32 %v1526, %v1591
    %v1593 = vlaneseq
    %v1594 = vshrl.u32 %v1593, 7
    %v1595 = vsub.s32 4, %v1594
    %v1596 = vrot.slane %v1502, %v1595
    %v1597 = vmul.f32 %v1596, %v1567
    %v1598 = vsub.f32 %v1501, %v1597
    %v1599 = vmul.f32 %v1596, %v1568
    %v1600 = vsub.f32 %v1502, %v1599
    %v1601 = vlaneseq
    %v1602 = vshrl.u32 %v1601, 7
    %v1603 = vsub.s32 4, %v1602
    %v1604 = vrot.slane %v1542, %v1603
    %v1605 = vmul.f32 %v1604, %v1567
    %v1606 = vsub.f32 %v1540, %v1605
    %v1607 = vmul.f32 %v1604, %v1568
    %v1608 = vsub.f32 %v1542, %v1607
    %v1609 = vlaneseq
    %v1610 = vshrl.u32 %v1609, 7
    %v1611 = vsub.s32 4, %v1610
    %v1612 = vrot.slane %v1550, %v1611
    %v1613 = vmul.f32 %v1612, %v1567
    %v1614 = vsub.f32 %v1548, %v1613
    %v1615 = vmul.f32 %v1612, %v1568
    %v1616 = vsub.f32 %v1550, %v1615
    %v1617 = vlaneseq
    %v1618 = vshrl.u32 %v1617, 7
    %v1619 = vsub.s32 4, %v1618
    %v1620 = vrot.slane %v1558, %v1619
    %v1621 = vmul.f32 %v1620, %v1567
    %v1622 = vsub.f32 %v1556, %v1621
    %v1623 = vmul.f32 %v1620, %v1568
    %v1624 = vsub.f32 %v1558, %v1623
    %v1625 = vrcp.pop %v1608
    %v1626 = vmul.f32 %v1608, %v1625
    %v1627 = vsub.f32 2.0, %v1626
    %v1628 = vmul.f32 %v1625, %v1627
    %v1629 = vlaneseq
    %v1630 = vshrl.u32 %v1629, 7
    %v1631 = vsub.s32 5, %v1630
    %v1632 = vrot.slane %v1628, %v1631
    %v1633 = vmul.f32 %v1606, %v1632
    %v1634 = vmul.f32 %v1608, %v1632
    %v1635 = vlaneseq
    %v1636 = vshrl.u32 %v1635, 7
    %v1637 = vsub.s32 5, %v1636
    %v1638 = vrot.slane %v1576, %v1637
    %v1639 = vmul.f32 %v1638, %v1633
    %v1640 = vsub.f32 %v1574, %v1639
    %v1641 = vmul.f32 %v1638, %v1634
    %v1642 = vsub.f32 %v1576, %v1641
    %v1643 = vlaneseq
    %v1644 = vshrl.u32 %v1643, 7
    %v1645 = vsub.s32 5, %v1644
    %v1646 = vrot.slane %v1584, %v1645
    %v1647 = vmul.f32 %v1646, %v1633
    %v1648 = vsub.f32 %v1582, %v1647
    %v1649 = vmul.f32 %v1646, %v1634
    %v1650 = vsub.f32 %v1584, %v1649
    %v1651 = vlaneseq
    %v1652 = vshrl.u32 %v1651, 7
    %v1653 = vsub.s32 5, %v1652
    %v1654 = vrot.slane %v1592, %v1653
    %v1655 = vmul.f32 %v1654, %v1633
    %v1656 = vsub.f32 %v1590, %v1655
    %v1657 = vmul.f32 %v1654, %v1634
    %v1658 = vsub.f32 %v1592, %v1657
    %v1659 = vlaneseq
    %v1660 = vshrl.u32 %v1659, 7
    %v1661 = vsub.s32 5, %v1660
    %v1662 = vrot.slane %v1600, %v1661
    %v1663 = vmul.f32 %v1662, %v1633
    %v1664 = vsub.f32 %v1598, %v1663
    %v1665 = vmul.f32 %v1662, %v1634
    %v1666 = vsub.f32 %v1600, %v1665
    %v1667 = vlaneseq
    %v1668 = vshrl.u32 %v1667, 7
    %v1669 = vsub.s32 5, %v1668
    %v1670 = vrot.slane %v1568, %v1669
    %v1671 = vmul.f32 %v1670, %v1633
    %v1672 = vsub.f32 %v1567, %v1671
    %v1673 = vmul.f32 %v1670, %v1634
    %v1674 = vsub.f32 %v1568, %v1673
    %v1675 = vlaneseq
    %v1676 = vshrl.u32 %v1675, 7
    %v1677 = vsub.s32 5, %v1676
    %v1678 = vrot.slane %v1616, %v1677
    %v1679 = vmul.f32 %v1678, %v1633
    %v1680 = vsub.f32 %v1614, %v1679
    %v1681 = vmul.f32 %v1678, %v1634
    %v1682 = vsub.f32 %v1616, %v1681
    %v1683 = vlaneseq
    %v1684 = vshrl.u32 %v1683, 7
    %v1685 = vsub.s32 5, %v1684
    %v1686 = vrot.slane %v1624, %v1685
    %v1687 = vmul.f32 %v1686, %v1633
    %v1688 = vsub.f32 %v1622, %v1687
    %v1689 = vmul.f32 %v1686, %v1634
    %v1690 = vsub.f32 %v1624, %v1689
    %v1691 = vrcp.pop %v1682
    %v1692 = vmul.f32 %v1682, %v1691
    %v1693 = vsub.f32 2.0, %v1692
    %v1694 = vmul.f32 %v1691, %v1693
    %v1695 = vlaneseq
    %v1696 = vshrl.u32 %v1695, 7
    %v1697 = vsub.s32 6, %v1696
    %v1698 = vrot.slane %v1694, %v1697
    %v1699 = vmul.f32 %v1680, %v1698
    %v1700 = vmul.f32 %v1682, %v1698
    %v1701 = vlaneseq
    %v1702 = vshrl.u32 %v1701, 7
    %v1703 = vsub.s32 6, %v1702
    %v1704 = vrot.slane %v1642, %v1703
    %v1705 = vmul.f32 %v1704, %v1699
    %v1706 = vsub.f32 %v1640, %v1705
    %v1707 = vmul.f32 %v1704, %v1700
    %v1708 = vsub.f32 %v1642, %v1707
    %v1709 = vlaneseq
    %v1710 = vshrl.u32 %v1709, 7
    %v1711 = vsub.s32 6, %v1710
    %v1712 = vrot.slane %v1650, %v1711
    %v1713 = vmul.f32 %v1712, %v1699
    %v1714 = vsub.f32 %v1648, %v1713
    %v1715 = vmul.f32 %v1712, %v1700
    %v1716 = vsub.f32 %v1650, %v1715
    %v1717 = vlaneseq
    %v1718 = vshrl.u32 %v1717, 7
    %v1719 = vsub.s32 6, %v1718
    %v1720 = vrot.slane %v1658, %v1719
    %v1721 = vmul.f32 %v1720, %v1699
    %v1722 = vsub.f32 %v1656, %v1721
    %v1723 = vmul.f32 %v1720, %v1700
    %v1724 = vsub.f32 %v1658, %v1723
    %v1725 = vlaneseq
    %v1726 = vshrl.u32 %v1725, 7
    %v1727 = vsub.s32 6, %v1726
    %v1728 = vrot.slane %v1666, %v1727
    %v1729 = vmul.f32 %v1728, %v1699
    %v1730 = vsub.f32 %v1664, %v1729
    %v1731 = vmul.f32 %v1728, %v1700
    %v1732 = vsub.f32 %v1666, %v1731
    %v1733 = vlaneseq
    %v1734 = vshrl.u32 %v1733, 7
    %v1735 = vsub.s32 6, %v1734
    %v1736 = vrot.slane %v1674, %v1735
    %v1737 = vmul.f32 %v1736, %v1699
    %v1738 = vsub.f32 %v1672, %v1737
    %v1739 = vmul.f32 %v1736, %v1700
    %v1740 = vsub.f32 %v1674, %v1739
    %v1741 = vlaneseq
    %v1742 = vshrl.u32 %v1741, 7
    %v1743 = vsub.s32 6, %v1742
    %v1744 = vrot.slane %v1634, %v1743
    %v1745 = vmul.f32 %v1744, %v1699
    %v1746 = vsub.f32 %v1633, %v1745
    %v1747 = vmul.f32 %v1744, %v1700
    %v1748 = vsub.f32 %v1634, %v1747
    %v1749 = vlaneseq
    %v1750 = vshrl.u32 %v1749, 7
    %v1751 = vsub.s32 6, %v1750
    %v1752 = vrot.slane %v1690, %v1751
    %v1753 = vmul.f32 %v1752, %v1699
    %v1754 = vsub.f32 %v1688, %v1753
    %v1755 = vmul.f32 %v1752, %v1700
    %v1756 = vsub.f32 %v1690, %v1755
    %v1757 = vrcp.pop %v1756
    %v1758 = vmul.f32 %v1756, %v1757
    %v1759 = vsub.f32 2.0, %v1758
    %v1760 = vmul.f32 %v1757, %v1759
    %v1761 = vlaneseq
    %v1762 = vshrl.u32 %v1761, 7
    %v1763 = vsub.s32 7, %v1762
    %v1764 = vrot.slane %v1760, %v1763
    %v1765 = vmul.f32 %v1754, %v1764
    %v1766 = vlaneseq
    %v1767 = vshrl.u32 %v1766, 7
    %v1768 = vsub.s32 7, %v1767
    %v1769 = vrot.slane %v1708, %v1768
    %v1770 = vmul.f32 %v1769, %v1765
    %v1771 = vsub.f32 %v1706, %v1770
    %v1772 = vlaneseq
    %v1773 = vshrl.u32 %v1772, 7
    %v1774 = vsub.s32 7, %v1773
    %v1775 = vrot.slane %v1716, %v1774
    %v1776 = vmul.f32 %v1775, %v1765
    %v1777 = vsub.f32 %v1714, %v1776
    %v1778 = vlaneseq
    %v1779 = vshrl.u32 %v1778, 7
    %v1780 = vsub.s32 7, %v1779
    %v1781 = vrot.slane %v1724, %v1780
    %v1782 = vmul.f32 %v1781, %v1765
    %v1783 = vsub.f32 %v1722, %v1782
    %v1784 = vlaneseq
    %v1785 = vshrl.u32 %v1784, 7
    %v1786 = vsub.s32 7, %v1785
    %v1787 = vrot.slane %v1732, %v1786
    %v1788 = vmul.f32 %v1787, %v1765
    %v1789 = vsub.f32 %v1730, %v1788
    %v1790 = vlaneseq
    %v1791 = vshrl.u32 %v1790, 7
    %v1792 = vsub.s32 7, %v1791
    %v1793 = vrot.slane %v1740, %v1792
    %v1794 = vmul.f32 %v1793, %v1765
    %v1795 = vsub.f32 %v1738, %v1794
    %v1796 = vlaneseq
    %v1797 = vshrl.u32 %v1796, 7
    %v1798 = vsub.s32 7, %v1797
    %v1799 = vrot.slane %v1748, %v1798
    %v1800 = vmul.f32 %v1799, %v1765
    %v1801 = vsub.f32 %v1746, %v1800
    %v1802 = vlaneseq
    %v1803 = vshrl.u32 %v1802, 7
    %v1804 = vsub.s32 7, %v1803
    %v1805 = vrot.slane %v1700, %v1804
    %v1806 = vmul.f32 %v1805, %v1765
    %v1807 = vsub.f32 %v1699, %v1806
    %s1808 = smul.addr %s923, 8
    %s1809 = scalar_lea.vmem [#allocation5], %s1808
    %1810 = vst [vmem:[%s1809] sm:$0xff] %v1771
    %1811 = vst [vmem:[%s1809 + $0x10] sm:$0xff] %v1777
    %1812 = vst [vmem:[%s1809 + $0x20] sm:$0xff] %v1783
    %1813 = vst [vmem:[%s1809 + $0x30] sm:$0xff] %v1789
    %1814 = vst [vmem:[%s1809 + $0x40] sm:$0xff] %v1795
    %1815 = vst [vmem:[%s1809 + $0x50] sm:$0xff] %v1801
    %1816 = vst [vmem:[%s1809 + $0x60] sm:$0xff] %v1807
    %1817 = vst [vmem:[%s1809 + $0x70] sm:$0xff] %v1765
    // Predicated region
    $region10: #{tpu_custom_call.1} parent=1 // pred_check
      _
    $region11: #{tpu_custom_call.1} parent=1 // pred_check_branch
      %1819 = sbr.rel (0) target = $region13
    $region12: #{tpu_custom_call.1} parent=1 // pred_region
      %s1821 = ssub.s32 2048, 2048
      %1822 = vsyncadd [#allocation4], %s1821
      %s1823 = sshll.u32 [#allocation5], 4
      %s1824 = int_to_ptr.vmem [resolvable:$true] %s1823
      %1829 = dma.vmem_to_hbm [thread:$0]  %s1824, 2048, %s1, [#allocation4], 256, 256, 16
    $region13: #{tpu_custom_call.1} parent=1 // pred_fallthru
      _
    // Predicated region
    $region14: #{tpu_custom_call.1} parent=1 // pred_check
      _
    $region15: #{tpu_custom_call.1} parent=1 // pred_check_branch
      %1831 = sbr.rel (0) target = $region17
    $region16: #{tpu_custom_call.1} parent=1 // pred_region
      %1832 = dma.done [#allocation4], 2048
    $region17: #{tpu_custom_call.1} parent=1 // pred_fallthru
      _
    %1833 = vsyncpa [#allocation3], 1
    %1834 = vsyncpa [#allocation4], 1

</llo_original>
